<compile_context>
chip_gen: v5e
topology: v5e:2x2
jax: 0.10.0
libtpu: 0.0.40
codegen_flags: <defaults>
</compile_context>

<pallas_src>
import functools
import math

import jax
import jax.numpy as jnp
from jax.experimental import pallas as pl
from jax.experimental.pallas import tpu as pltpu

EPS = 1e-5


# ---------------------------------------------------------------------------
# Architecture construction (mirrors ParametricFCModel.__init__ sizing logic)
# ---------------------------------------------------------------------------
def build_architecture(in_channels, input_size, fft_channels, fft_size, hyper, n_classes):
    conv_cfg = []
    L = input_size
    count = 0
    for i in range(hyper['n_cnn_layers']):
        K = hyper['cnn_kernel_size']
        P = hyper['max_pooling_kernel_size']
        L_ = math.floor((L + 2 * 0 - (K - 1) - 1) / 1 + 1)
        L_ = math.floor((L_ - (P - 1) - 1) / P + 1)
        if L_ > 10:
            cin = in_channels if i == 0 else i * hyper['cnn_output_channels']
            cout = (i + 1) * hyper['cnn_output_channels']
            conv_cfg.append(dict(cin=cin, cout=cout, K=K, P=P,
                                 Lin=int(L), Lout=int(L) - K + 1, Lpool=int(L_)))
            L = int(L_)
            count += 1
        else:
            break
    assert count >= 1, "chosen config must keep at least one CNN layer"
    flat_cnn = count * int(hyper['cnn_output_channels'] * L)
    assert flat_cnn == conv_cfg[-1]['cout'] * int(L)
    fc_in = flat_cnn + fft_channels * fft_size
    fc_dims = []
    for i in range(hyper['n_fc_layers'] + 1):
        if i == 0:
            fc_dims.append((fc_in, hyper['neurons']))
        elif i == hyper['n_fc_layers']:
            fc_dims.append((hyper['neurons'], n_classes))
        else:
            fc_dims.append((hyper['neurons'], hyper['neurons']))
    return conv_cfg, flat_cnn, fc_dims


def init_model_params(key, in_channels, input_size, fft_channels, fft_size,
                      conv_cfg, flat_cnn, fc_dims):
    keys = iter(jax.random.split(key, 64))

    def bn_affine(k, shape):
        k1, k2, k3, k4 = jax.random.split(k, 4)
        gamma = jax.random.uniform(k1, shape, jnp.float32, 0.5, 1.5)
        beta = 0.1 * jax.random.normal(k2, shape, jnp.float32)
        mean = 0.1 * jax.random.normal(k3, shape, jnp.float32)
        var = jax.random.uniform(k4, shape, jnp.float32, 0.5, 1.5)
        scale = gamma * jax.lax.rsqrt(var + EPS)
        return scale, beta - mean * scale

    p = {}
    p['bn0_scale'], p['bn0_shift'] = bn_affine(next(keys), (in_channels, input_size))
    p['bnfft_scale'], p['bnfft_shift'] = bn_affine(next(keys), (fft_channels, fft_size))
    p['conv_w'], p['conv_b'] = [], []
    for cfg in conv_cfg:
        # stored as (K, Cin, Cout) == torch conv weight (Cout, Cin, K) transposed
        p['conv_w'].append(0.1 * jax.random.normal(
            next(keys), (cfg['K'], cfg['cin'], cfg['cout']), jnp.float32))
        p['conv_b'].append(0.05 * jax.random.normal(next(keys), (cfg['cout'],), jnp.float32))
    p['bn1_scale'], p['bn1_shift'] = bn_affine(next(keys), (flat_cnn,))
    p['fc_w'], p['fc_b'] = [], []
    for (din, dout) in fc_dims:
        # stored as (in, out) == torch Linear weight.T
        p['fc_w'].append((1.0 / math.sqrt(din)) *
                         jax.random.normal(next(keys), (din, dout), jnp.float32))
        p['fc_b'].append(0.05 * jax.random.normal(next(keys), (dout,), jnp.float32))
    return p


# ---------------------------------------------------------------------------
# One-time parameter folding / permutation (host-side; done once, not per step)
# ---------------------------------------------------------------------------
def prepare_params(params, conv_cfg, flat_cnn):
    prep = {}
    # BN0 is per-(channel, position); activations are length-major (L, C) in the
    # kernel, so pre-transpose scale/shift once.
    prep['bn0_scale_t'] = params['bn0_scale'].T              # (L_time, C_time)
    prep['bn0_shift_t'] = params['bn0_shift'].T
    # Conv weights reshaped for the single im2col matmul; row order = (k, cin).
    prep['conv_w'] = [w.reshape(-1, w.shape[-1]) for w in params['conv_w']]
    prep['conv_b'] = [b[None, :] for b in params['conv_b']]

    # ---- fold BN1 / BNfft into FC layer 0 and permute W0's CNN rows from the
    # torch channel-major flatten order (c, l) to the kernel's length-major (l, c).
    w0 = params['fc_w'][0]                                    # (fc_in, neurons)
    b0 = params['fc_b'][0]
    w0_cnn = w0[:flat_cnn]                                    # rows in (c, l) order
    w0_fft = w0[flat_cnn:]                                    # rows in (c_fft, l_fft) order
    w0_cnn_eff = params['bn1_scale'][:, None] * w0_cnn        # fold BN1 scale
    b0_extra = params['bn1_shift'] @ w0_cnn                   # fold BN1 shift
    cout_last, lpool_last = conv_cfg[-1]['cout'], conv_cfg[-1]['Lpool']
    w0a = (w0_cnn_eff.reshape(cout_last, lpool_last, -1)
           .transpose(1, 0, 2).reshape(flat_cnn, -1))         # (c,l) -> (l,c) rows
    bnf_scale = params['bnfft_scale'].reshape(-1)
    bnf_shift = params['bnfft_shift'].reshape(-1)
    w0b = bnf_scale[:, None] * w0_fft                         # fold BNfft scale
    b0_extra = b0_extra + bnf_shift @ w0_fft                  # fold BNfft shift
    prep['fc0_wa'] = w0a
    prep['fc0_wb'] = w0b
    prep['fc0_b'] = (b0 + b0_extra)[None, :]
    prep['fc_w'] = list(params['fc_w'][1:])
    prep['fc_b'] = [b[None, :] for b in params['fc_b'][1:]]
    return prep


# ---------------------------------------------------------------------------
# Fused forward kernel: BN0 + conv/ReLU/pool stack + flatten + FC stack
# ---------------------------------------------------------------------------
def _make_fused_kernel(B, conv_cfg, n_fc, tsne_layer, n_classes, neurons, out_pad):
    n_conv = len(conv_cfg)
    assert n_fc >= 2 and 0 <= tsne_layer < n_fc

    def kernel(*refs):
        it = iter(refs)
        x_ref = next(it)
        bn0s_ref = next(it)
        bn0b_ref = next(it)
        conv_refs = [(next(it), next(it)) for _ in range(n_conv)]
        xfft_ref = next(it)
        w0a_ref, w0b_ref, b0_ref = next(it), next(it), next(it)
        fc_refs = [(next(it), next(it)) for _ in range(n_fc - 1)]
        o_ref = next(it)

        # ---- BN0 (eval-mode affine, per (position, channel); first layer only) ----
        x = x_ref[...] * bn0s_ref[...] + bn0b_ref[...]          # (B, L, C)

        # ---- CNN stack: im2col conv + bias + ReLU + MaxPool on the full batch ----
        for li, cfg in enumerate(conv_cfg):
            K, P, Cin, Cout = cfg['K'], cfg['P'], cfg['cin'], cfg['cout']
            Lout, Lpool = cfg['Lout'], cfg['Lpool']
            w_ref, b_ref = conv_refs[li]
            # im2col -> one (B*Lout, K*Cin) @ (K*Cin, Cout) MXU matmul.
            cols = jnp.concatenate([x[:, k:k + Lout, :] for k in range(K)], axis=-1)
            acc = jnp.dot(cols.reshape(B * Lout, K * Cin), w_ref[...],
                          preferred_element_type=jnp.float32)
            acc = jnp.maximum(acc + b_ref[...], 0.0)            # bias + ReLU
            # MaxPool1d(kernel=stride=P): single sublane reduction; remainder dropped.
            a = acc.reshape(B, Lout, Cout)[:, :Lpool * P, :]
            x = jnp.max(a.reshape(B * Lpool, P, Cout), axis=1).reshape(B, Lpool, Cout)

        # ---- flatten (length-major, lane-dense; W0 rows were permuted host-side) ----
        Lp = conv_cfg[-1]['Lpool']
        x_cnn = jnp.concatenate([x[:, l, :] for l in range(Lp)], axis=-1)  # (B, flat_cnn)

        # ---- FC stack (BN1/BNfft already folded into layer-0 weights/bias) ----
        # TODO(synk): Dropout is identity (inference mode); training-mode dropout /
        # batch-statistic BatchNorm are not implemented.
        z = (jnp.dot(x_cnn, w0a_ref[...], preferred_element_type=jnp.float32)
             + jnp.dot(xfft_ref[...], w0b_ref[...], preferred_element_type=jnp.float32)
             + b0_ref[...])
        h = jnp.maximum(z, 0.0)
        tsne = h                                                # valid iff tsne_layer == 0
        logits = None
        for i in range(1, n_fc):
            w_ref, b_ref = fc_refs[i - 1]
            z = jnp.dot(h, w_ref[...], preferred_element_type=jnp.float32) + b_ref[...]
            if i == n_fc - 1:
                logits = z
                if i == tsne_layer:
                    tsne = h                                    # torch: input of last Linear
            else:
                h = jnp.maximum(z, 0.0)
                if i == tsne_layer:
                    tsne = h

        # ---- single lane-dense store: [logits | tsne | zero pad] ----
        pad = out_pad - (n_classes + neurons)
        pieces = [logits, tsne]
        if pad > 0:
            pieces.append(jnp.zeros((B, pad), jnp.float32))
        o_ref[...] = jnp.concatenate(pieces, axis=-1)

    return kernel


# ---------------------------------------------------------------------------
# Full forward pass (one pallas_call)
# ---------------------------------------------------------------------------
def parametric_fc_forward(xin, xin_fft, prep, conv_cfg, fc_dims, tsne_layer):
    B = xin.shape[0]
    n_fc = len(fc_dims)
    neurons = fc_dims[0][1]
    n_classes = fc_dims[-1][1]
    out_pad = ((n_classes + neurons + 127) // 128) * 128

    x_t = jnp.transpose(xin, (0, 2, 1)).astype(jnp.float32)     # (B, L, C) length-major
    x_fft = xin_fft.astype(jnp.float32).reshape(B, -1)          # torch (c, l) flatten order

    operands = [x_t, prep['bn0_scale_t'], prep['bn0_shift_t']]
    for w, b in zip(prep['conv_w'], prep['conv_b']):
        operands += [w, b]
    operands += [x_fft, prep['fc0_wa'], prep['fc0_wb'], prep['fc0_b']]
    for w, b in zip(prep['fc_w'], prep['fc_b']):
        operands += [w, b]

    vmem = pl.BlockSpec(memory_space=pltpu.MemorySpace.VMEM)
    slab = pl.pallas_call(
        _make_fused_kernel(B, conv_cfg, n_fc, tsne_layer, n_classes, neurons, out_pad),
        out_shape=jax.ShapeDtypeStruct((B, out_pad), jnp.float32),
        in_specs=[vmem] * len(operands),
        out_specs=vmem,
    )(*operands)

    x_out = slab[:, :n_classes]
    tsne = slab[:, n_classes:n_classes + neurons]
    x_hole = 0
    x_day = 0
    return x_out, x_hole, x_day, tsne


if __name__ == "__main__":
    # small shapes consistent with the module (time signal long enough that at
    # least one CNN layer survives the ">10" sizing rule)
    B, C_time, L_time = 4, 3, 64
    C_fft, L_fft = 3, 16
    hyper = dict(n_cnn_layers=3, cnn_kernel_size=5, max_pooling_kernel_size=2,
                 cnn_output_channels=8, n_fc_layers=2, neurons=32,
                 dropout=0.25, tsne_layer=0)
    n_classes = 3   # len(args.classes)

    conv_cfg, flat_cnn, fc_dims = build_architecture(
        C_time, L_time, C_fft, L_fft, hyper, n_classes)

    key = jax.random.PRNGKey(0)
    k_par, k_x, k_f = jax.random.split(key, 3)
    params = init_model_params(k_par, C_time, L_time, C_fft, L_fft,
                               conv_cfg, flat_cnn, fc_dims)
    # One-time host-side folding/permutation of parameters (not part of the step).
    prep = prepare_params(params, conv_cfg, flat_cnn)

    xin = jax.random.normal(k_x, (B, C_time, L_time), jnp.float32)
    xin_fft = jax.random.normal(k_f, (B, C_fft, L_fft), jnp.float32)

    fwd = jax.jit(functools.partial(parametric_fc_forward,
                                    conv_cfg=conv_cfg, fc_dims=fc_dims,
                                    tsne_layer=hyper['tsne_layer']))
    x_out, x_hole, x_day, tsne = fwd(xin, xin_fft, prep)
    jax.block_until_ready((x_out, tsne))

    assert x_out.shape == (B, n_classes)
    assert tsne.shape == (B, hyper['neurons'])
    print("KERNEL_OK")
</pallas_src>

<mosaic_0001>
module attributes {stable_mosaic.version = 11 : i64} {
  func.func @kernel(%arg0: memref<4x64x3xf32, #tpu.memory_space<vmem>>, %arg1: memref<64x3xf32, #tpu.memory_space<vmem>>, %arg2: memref<64x3xf32, #tpu.memory_space<vmem>>, %arg3: memref<15x8xf32, #tpu.memory_space<vmem>>, %arg4: memref<1x8xf32, #tpu.memory_space<vmem>>, %arg5: memref<40x16xf32, #tpu.memory_space<vmem>>, %arg6: memref<1x16xf32, #tpu.memory_space<vmem>>, %arg7: memref<4x48xf32, #tpu.memory_space<vmem>>, %arg8: memref<208x32xf32, #tpu.memory_space<vmem>>, %arg9: memref<48x32xf32, #tpu.memory_space<vmem>>, %arg10: memref<1x32xf32, #tpu.memory_space<vmem>>, %arg11: memref<32x32xf32, #tpu.memory_space<vmem>>, %arg12: memref<1x32xf32, #tpu.memory_space<vmem>>, %arg13: memref<32x3xf32, #tpu.memory_space<vmem>>, %arg14: memref<1x3xf32, #tpu.memory_space<vmem>>, %arg15: memref<4x128xf32, #tpu.memory_space<vmem>>) attributes {dimension_semantics = [], scalar_prefetch = 0 : i64, scratch_operands = 0 : i64, tpu.core_type = #tpu.core_type<tc>} {
    %c0 = arith.constant 0 : index
    %c0_0 = arith.constant 0 : index
    %c0_1 = arith.constant 0 : index
    %0 = vector.load %arg0[%c0, %c0_0, %c0_1] : memref<4x64x3xf32, #tpu.memory_space<vmem>>, vector<4x64x3xf32>
    %c0_2 = arith.constant 0 : index
    %c0_3 = arith.constant 0 : index
    %1 = vector.load %arg1[%c0_2, %c0_3] : memref<64x3xf32, #tpu.memory_space<vmem>>, vector<64x3xf32>
    %2 = vector.shape_cast %1 : vector<64x3xf32> to vector<1x64x3xf32>
    %3 = vector.broadcast %2 : vector<1x64x3xf32> to vector<4x64x3xf32>
    %4 = arith.mulf %0, %3 : vector<4x64x3xf32>
    %c0_4 = arith.constant 0 : index
    %c0_5 = arith.constant 0 : index
    %5 = vector.load %arg2[%c0_4, %c0_5] : memref<64x3xf32, #tpu.memory_space<vmem>>, vector<64x3xf32>
    %6 = vector.shape_cast %5 : vector<64x3xf32> to vector<1x64x3xf32>
    %7 = vector.broadcast %6 : vector<1x64x3xf32> to vector<4x64x3xf32>
    %8 = arith.addf %4, %7 : vector<4x64x3xf32>
    %9 = vector.extract_strided_slice %8 {offsets = [0, 0, 0], sizes = [4, 60, 3], strides = [1, 1, 1]} : vector<4x64x3xf32> to vector<4x60x3xf32>
    %10 = vector.extract_strided_slice %8 {offsets = [0, 1, 0], sizes = [4, 60, 3], strides = [1, 1, 1]} : vector<4x64x3xf32> to vector<4x60x3xf32>
    %11 = vector.extract_strided_slice %8 {offsets = [0, 2, 0], sizes = [4, 60, 3], strides = [1, 1, 1]} : vector<4x64x3xf32> to vector<4x60x3xf32>
    %12 = vector.extract_strided_slice %8 {offsets = [0, 3, 0], sizes = [4, 60, 3], strides = [1, 1, 1]} : vector<4x64x3xf32> to vector<4x60x3xf32>
    %13 = vector.extract_strided_slice %8 {offsets = [0, 4, 0], sizes = [4, 60, 3], strides = [1, 1, 1]} : vector<4x64x3xf32> to vector<4x60x3xf32>
    %14 = tpu.concatenate %9, %10, %11, %12, %13 in 2 : vector<4x60x3xf32>, vector<4x60x3xf32>, vector<4x60x3xf32>, vector<4x60x3xf32>, vector<4x60x3xf32> -> vector<4x60x15xf32>
    %15 = vector.shape_cast %14 : vector<4x60x15xf32> to vector<240x15xf32>
    %c0_6 = arith.constant 0 : index
    %c0_7 = arith.constant 0 : index
    %16 = vector.load %arg3[%c0_6, %c0_7] : memref<15x8xf32, #tpu.memory_space<vmem>>, vector<15x8xf32>
    %cst = arith.constant dense<0.000000e+00> : vector<240x8xf32>
    %17 = tpu.matmul %15, %16, %cst {dimension_numbers = #tpu.dot_dimension_numbers<[1], [0], [0], [1], [0, 0, 1, 1], [], []>} : vector<240x15xf32>, vector<15x8xf32>, vector<240x8xf32> -> vector<240x8xf32>
    %c0_8 = arith.constant 0 : index
    %c0_9 = arith.constant 0 : index
    %18 = vector.load %arg4[%c0_8, %c0_9] : memref<1x8xf32, #tpu.memory_space<vmem>>, vector<1x8xf32>
    %19 = vector.broadcast %18 : vector<1x8xf32> to vector<240x8xf32>
    %20 = arith.addf %17, %19 : vector<240x8xf32>
    %cst_10 = arith.constant 0.000000e+00 : f32
    %21 = vector.broadcast %cst_10 : f32 to vector<240x8xf32>
    %22 = arith.maximumf %20, %21 : vector<240x8xf32>
    %23 = vector.shape_cast %22 : vector<240x8xf32> to vector<4x60x8xf32>
    %24 = vector.shape_cast %23 : vector<4x60x8xf32> to vector<120x2x8xf32>
    %cst_11 = arith.constant dense<0xFF800000> : vector<120x8xf32>
    %25 = vector.multi_reduction <maximumf>, %24, %cst_11 [1] : vector<120x2x8xf32> to vector<120x8xf32>
    %26 = vector.shape_cast %25 : vector<120x8xf32> to vector<4x30x8xf32>
    %27 = vector.extract_strided_slice %26 {offsets = [0, 0, 0], sizes = [4, 26, 8], strides = [1, 1, 1]} : vector<4x30x8xf32> to vector<4x26x8xf32>
    %28 = vector.extract_strided_slice %26 {offsets = [0, 1, 0], sizes = [4, 26, 8], strides = [1, 1, 1]} : vector<4x30x8xf32> to vector<4x26x8xf32>
    %29 = vector.extract_strided_slice %26 {offsets = [0, 2, 0], sizes = [4, 26, 8], strides = [1, 1, 1]} : vector<4x30x8xf32> to vector<4x26x8xf32>
    %30 = vector.extract_strided_slice %26 {offsets = [0, 3, 0], sizes = [4, 26, 8], strides = [1, 1, 1]} : vector<4x30x8xf32> to vector<4x26x8xf32>
    %31 = vector.extract_strided_slice %26 {offsets = [0, 4, 0], sizes = [4, 26, 8], strides = [1, 1, 1]} : vector<4x30x8xf32> to vector<4x26x8xf32>
    %32 = tpu.concatenate %27, %28, %29, %30, %31 in 2 : vector<4x26x8xf32>, vector<4x26x8xf32>, vector<4x26x8xf32>, vector<4x26x8xf32>, vector<4x26x8xf32> -> vector<4x26x40xf32>
    %33 = vector.shape_cast %32 : vector<4x26x40xf32> to vector<104x40xf32>
    %c0_12 = arith.constant 0 : index
    %c0_13 = arith.constant 0 : index
    %34 = vector.load %arg5[%c0_12, %c0_13] : memref<40x16xf32, #tpu.memory_space<vmem>>, vector<40x16xf32>
    %cst_14 = arith.constant dense<0.000000e+00> : vector<104x16xf32>
    %35 = tpu.matmul %33, %34, %cst_14 {dimension_numbers = #tpu.dot_dimension_numbers<[1], [0], [0], [1], [0, 0, 1, 1], [], []>} : vector<104x40xf32>, vector<40x16xf32>, vector<104x16xf32> -> vector<104x16xf32>
    %c0_15 = arith.constant 0 : index
    %c0_16 = arith.constant 0 : index
    %36 = vector.load %arg6[%c0_15, %c0_16] : memref<1x16xf32, #tpu.memory_space<vmem>>, vector<1x16xf32>
    %37 = vector.broadcast %36 : vector<1x16xf32> to vector<104x16xf32>
    %38 = arith.addf %35, %37 : vector<104x16xf32>
    %cst_17 = arith.constant 0.000000e+00 : f32
    %39 = vector.broadcast %cst_17 : f32 to vector<104x16xf32>
    %40 = arith.maximumf %38, %39 : vector<104x16xf32>
    %41 = vector.shape_cast %40 : vector<104x16xf32> to vector<4x26x16xf32>
    %42 = vector.shape_cast %41 : vector<4x26x16xf32> to vector<52x2x16xf32>
    %cst_18 = arith.constant dense<0xFF800000> : vector<52x16xf32>
    %43 = vector.multi_reduction <maximumf>, %42, %cst_18 [1] : vector<52x2x16xf32> to vector<52x16xf32>
    %44 = vector.shape_cast %43 : vector<52x16xf32> to vector<4x13x16xf32>
    %45 = vector.extract_strided_slice %44 {offsets = [0, 0, 0], sizes = [4, 1, 16], strides = [1, 1, 1]} : vector<4x13x16xf32> to vector<4x1x16xf32>
    %46 = vector.shape_cast %45 : vector<4x1x16xf32> to vector<4x16xf32>
    %47 = vector.extract_strided_slice %44 {offsets = [0, 1, 0], sizes = [4, 1, 16], strides = [1, 1, 1]} : vector<4x13x16xf32> to vector<4x1x16xf32>
    %48 = vector.shape_cast %47 : vector<4x1x16xf32> to vector<4x16xf32>
    %49 = vector.extract_strided_slice %44 {offsets = [0, 2, 0], sizes = [4, 1, 16], strides = [1, 1, 1]} : vector<4x13x16xf32> to vector<4x1x16xf32>
    %50 = vector.shape_cast %49 : vector<4x1x16xf32> to vector<4x16xf32>
    %51 = vector.extract_strided_slice %44 {offsets = [0, 3, 0], sizes = [4, 1, 16], strides = [1, 1, 1]} : vector<4x13x16xf32> to vector<4x1x16xf32>
    %52 = vector.shape_cast %51 : vector<4x1x16xf32> to vector<4x16xf32>
    %53 = vector.extract_strided_slice %44 {offsets = [0, 4, 0], sizes = [4, 1, 16], strides = [1, 1, 1]} : vector<4x13x16xf32> to vector<4x1x16xf32>
    %54 = vector.shape_cast %53 : vector<4x1x16xf32> to vector<4x16xf32>
    %55 = vector.extract_strided_slice %44 {offsets = [0, 5, 0], sizes = [4, 1, 16], strides = [1, 1, 1]} : vector<4x13x16xf32> to vector<4x1x16xf32>
    %56 = vector.shape_cast %55 : vector<4x1x16xf32> to vector<4x16xf32>
    %57 = vector.extract_strided_slice %44 {offsets = [0, 6, 0], sizes = [4, 1, 16], strides = [1, 1, 1]} : vector<4x13x16xf32> to vector<4x1x16xf32>
    %58 = vector.shape_cast %57 : vector<4x1x16xf32> to vector<4x16xf32>
    %59 = vector.extract_strided_slice %44 {offsets = [0, 7, 0], sizes = [4, 1, 16], strides = [1, 1, 1]} : vector<4x13x16xf32> to vector<4x1x16xf32>
    %60 = vector.shape_cast %59 : vector<4x1x16xf32> to vector<4x16xf32>
    %61 = vector.extract_strided_slice %44 {offsets = [0, 8, 0], sizes = [4, 1, 16], strides = [1, 1, 1]} : vector<4x13x16xf32> to vector<4x1x16xf32>
    %62 = vector.shape_cast %61 : vector<4x1x16xf32> to vector<4x16xf32>
    %63 = vector.extract_strided_slice %44 {offsets = [0, 9, 0], sizes = [4, 1, 16], strides = [1, 1, 1]} : vector<4x13x16xf32> to vector<4x1x16xf32>
    %64 = vector.shape_cast %63 : vector<4x1x16xf32> to vector<4x16xf32>
    %65 = vector.extract_strided_slice %44 {offsets = [0, 10, 0], sizes = [4, 1, 16], strides = [1, 1, 1]} : vector<4x13x16xf32> to vector<4x1x16xf32>
    %66 = vector.shape_cast %65 : vector<4x1x16xf32> to vector<4x16xf32>
    %67 = vector.extract_strided_slice %44 {offsets = [0, 11, 0], sizes = [4, 1, 16], strides = [1, 1, 1]} : vector<4x13x16xf32> to vector<4x1x16xf32>
    %68 = vector.shape_cast %67 : vector<4x1x16xf32> to vector<4x16xf32>
    %69 = vector.extract_strided_slice %44 {offsets = [0, 12, 0], sizes = [4, 1, 16], strides = [1, 1, 1]} : vector<4x13x16xf32> to vector<4x1x16xf32>
    %70 = vector.shape_cast %69 : vector<4x1x16xf32> to vector<4x16xf32>
    %71 = tpu.concatenate %46, %48, %50, %52, %54, %56, %58, %60, %62, %64, %66, %68, %70 in 1 : vector<4x16xf32>, vector<4x16xf32>, vector<4x16xf32>, vector<4x16xf32>, vector<4x16xf32>, vector<4x16xf32>, vector<4x16xf32>, vector<4x16xf32>, vector<4x16xf32>, vector<4x16xf32>, vector<4x16xf32>, vector<4x16xf32>, vector<4x16xf32> -> vector<4x208xf32>
    %c0_19 = arith.constant 0 : index
    %c0_20 = arith.constant 0 : index
    %72 = vector.load %arg8[%c0_19, %c0_20] : memref<208x32xf32, #tpu.memory_space<vmem>>, vector<208x32xf32>
    %cst_21 = arith.constant dense<0.000000e+00> : vector<4x32xf32>
    %73 = tpu.matmul %71, %72, %cst_21 {dimension_numbers = #tpu.dot_dimension_numbers<[1], [0], [0], [1], [0, 0, 1, 1], [], []>} : vector<4x208xf32>, vector<208x32xf32>, vector<4x32xf32> -> vector<4x32xf32>
    %c0_22 = arith.constant 0 : index
    %c0_23 = arith.constant 0 : index
    %74 = vector.load %arg7[%c0_22, %c0_23] : memref<4x48xf32, #tpu.memory_space<vmem>>, vector<4x48xf32>
    %c0_24 = arith.constant 0 : index
    %c0_25 = arith.constant 0 : index
    %75 = vector.load %arg9[%c0_24, %c0_25] : memref<48x32xf32, #tpu.memory_space<vmem>>, vector<48x32xf32>
    %cst_26 = arith.constant dense<0.000000e+00> : vector<4x32xf32>
    %76 = tpu.matmul %74, %75, %cst_26 {dimension_numbers = #tpu.dot_dimension_numbers<[1], [0], [0], [1], [0, 0, 1, 1], [], []>} : vector<4x48xf32>, vector<48x32xf32>, vector<4x32xf32> -> vector<4x32xf32>
    %77 = arith.addf %73, %76 : vector<4x32xf32>
    %c0_27 = arith.constant 0 : index
    %c0_28 = arith.constant 0 : index
    %78 = vector.load %arg10[%c0_27, %c0_28] : memref<1x32xf32, #tpu.memory_space<vmem>>, vector<1x32xf32>
    %79 = vector.broadcast %78 : vector<1x32xf32> to vector<4x32xf32>
    %80 = arith.addf %77, %79 : vector<4x32xf32>
    %cst_29 = arith.constant 0.000000e+00 : f32
    %81 = vector.broadcast %cst_29 : f32 to vector<4x32xf32>
    %82 = arith.maximumf %80, %81 : vector<4x32xf32>
    %c0_30 = arith.constant 0 : index
    %c0_31 = arith.constant 0 : index
    %83 = vector.load %arg11[%c0_30, %c0_31] : memref<32x32xf32, #tpu.memory_space<vmem>>, vector<32x32xf32>
    %cst_32 = arith.constant dense<0.000000e+00> : vector<4x32xf32>
    %84 = tpu.matmul %82, %83, %cst_32 {dimension_numbers = #tpu.dot_dimension_numbers<[1], [0], [0], [1], [0, 0, 1, 1], [], []>} : vector<4x32xf32>, vector<32x32xf32>, vector<4x32xf32> -> vector<4x32xf32>
    %c0_33 = arith.constant 0 : index
    %c0_34 = arith.constant 0 : index
    %85 = vector.load %arg12[%c0_33, %c0_34] : memref<1x32xf32, #tpu.memory_space<vmem>>, vector<1x32xf32>
    %86 = vector.broadcast %85 : vector<1x32xf32> to vector<4x32xf32>
    %87 = arith.addf %84, %86 : vector<4x32xf32>
    %cst_35 = arith.constant 0.000000e+00 : f32
    %88 = vector.broadcast %cst_35 : f32 to vector<4x32xf32>
    %89 = arith.maximumf %87, %88 : vector<4x32xf32>
    %c0_36 = arith.constant 0 : index
    %c0_37 = arith.constant 0 : index
    %90 = vector.load %arg13[%c0_36, %c0_37] : memref<32x3xf32, #tpu.memory_space<vmem>>, vector<32x3xf32>
    %cst_38 = arith.constant dense<0.000000e+00> : vector<4x3xf32>
    %91 = tpu.matmul %89, %90, %cst_38 {dimension_numbers = #tpu.dot_dimension_numbers<[1], [0], [0], [1], [0, 0, 1, 1], [], []>} : vector<4x32xf32>, vector<32x3xf32>, vector<4x3xf32> -> vector<4x3xf32>
    %c0_39 = arith.constant 0 : index
    %c0_40 = arith.constant 0 : index
    %92 = vector.load %arg14[%c0_39, %c0_40] : memref<1x3xf32, #tpu.memory_space<vmem>>, vector<1x3xf32>
    %93 = vector.broadcast %92 : vector<1x3xf32> to vector<4x3xf32>
    %94 = arith.addf %91, %93 : vector<4x3xf32>
    %cst_41 = arith.constant 0.000000e+00 : f32
    %95 = vector.broadcast %cst_41 : f32 to vector<4x93xf32>
    %96 = tpu.concatenate %94, %82, %95 in 1 : vector<4x3xf32>, vector<4x32xf32>, vector<4x93xf32> -> vector<4x128xf32>
    %c0_42 = arith.constant 0 : index
    %c0_43 = arith.constant 0 : index
    %97 = vector.load %arg15[%c0_42, %c0_43] : memref<4x128xf32, #tpu.memory_space<vmem>>, vector<4x128xf32>
    tpu.vector_store %arg15[%c0_42, %c0_43], %96 {strides = array<i32>} : memref<4x128xf32, #tpu.memory_space<vmem>>, vector<4x128xf32>,
    return
  }
}

</mosaic_0001>

<llo_original>
// kernel: parametric_fc_forward.1
$region0: #{parametric_fc_forward.1}
  #allocation0 [shape = 'u32[]', space=smem, size = 0x4, offset = 0x4, fixed_abs, tag = 'smem constant byte address 0x4 - core index']
  #allocation1 [shape = 'u32[72,128]{1,0:T(1,128)}', space=vmem, size = 0x9000, scoped, tag = 'internal scratch']
  %s0 = inlined_call_operand.vmem [shape: f32[4,64,3], index: 0, kind: input, shape index: {}]
  %s1 = inlined_call_operand.vmem [shape: f32[64,3], index: 1, kind: input, shape index: {}]
  %s2 = inlined_call_operand.vmem [shape: f32[64,3], index: 2, kind: input, shape index: {}]
  %s3 = inlined_call_operand.vmem [shape: f32[15,8], index: 3, kind: input, shape index: {}]
  %s4 = inlined_call_operand.vmem [shape: f32[1,8], index: 4, kind: input, shape index: {}]
  %s5 = inlined_call_operand.vmem [shape: f32[40,16], index: 5, kind: input, shape index: {}]
  %s6 = inlined_call_operand.vmem [shape: f32[1,16], index: 6, kind: input, shape index: {}]
  %s7 = inlined_call_operand.vmem [shape: f32[4,48], index: 7, kind: input, shape index: {}]
  %s8 = inlined_call_operand.vmem [shape: f32[208,32], index: 8, kind: input, shape index: {}]
  %s9 = inlined_call_operand.vmem [shape: f32[48,32], index: 9, kind: input, shape index: {}]
  %s10 = inlined_call_operand.vmem [shape: f32[1,32], index: 10, kind: input, shape index: {}]
  %s11 = inlined_call_operand.vmem [shape: f32[32,32], index: 11, kind: input, shape index: {}]
  %s12 = inlined_call_operand.vmem [shape: f32[1,32], index: 12, kind: input, shape index: {}]
  %s13 = inlined_call_operand.vmem [shape: f32[32,3], index: 13, kind: input, shape index: {}]
  %s14 = inlined_call_operand.vmem [shape: f32[1,3], index: 14, kind: input, shape index: {}]
  %s15 = inlined_call_operand.vmem [shape: f32[4,128], index: 15, kind: output, shape index: {}]
  %s16 = sld [smem:[#allocation0]]
  $region70: #{parametric_fc_forward.1} parent=0
    _
  %s18 = ssub.s32 1, %s16
  %s19 = scalar_select 0, %s18, %s16
  // Predicated region
  $region2: #{parametric_fc_forward.1} parent=0 // pred_check
    _
  $region3: #{parametric_fc_forward.1} parent=0 // pred_check_branch
    %21 = sbr.rel (0) target = $region5
  $region4: #{parametric_fc_forward.1} parent=0 // pred_region
    _
  $region5: #{parametric_fc_forward.1} parent=0 // pred_fallthru
    _
  // Predicated region
  $region6: #{parametric_fc_forward.1} parent=0 // pred_check
    _
  $region7: #{parametric_fc_forward.1} parent=0 // pred_check_branch
    %23 = sbr.rel (0) target = $region9
  $region8: #{parametric_fc_forward.1} parent=0 // pred_region
    _
  $region9: #{parametric_fc_forward.1} parent=0 // pred_fallthru
    _
  // Predicated region
  $region10: #{parametric_fc_forward.1} parent=0 // pred_check
    _
  $region11: #{parametric_fc_forward.1} parent=0 // pred_check_branch
    %25 = sbr.rel (0) target = $region13
  $region12: #{parametric_fc_forward.1} parent=0 // pred_region
    _
  $region13: #{parametric_fc_forward.1} parent=0 // pred_fallthru
    _
  // Predicated region
  $region14: #{parametric_fc_forward.1} parent=0 // pred_check
    _
  $region15: #{parametric_fc_forward.1} parent=0 // pred_check_branch
    %27 = sbr.rel (0) target = $region17
  $region16: #{parametric_fc_forward.1} parent=0 // pred_region
    _
  $region17: #{parametric_fc_forward.1} parent=0 // pred_fallthru
    _
  // Predicated region
  $region18: #{parametric_fc_forward.1} parent=0 // pred_check
    _
  $region19: #{parametric_fc_forward.1} parent=0 // pred_check_branch
    %29 = sbr.rel (0) target = $region21
  $region20: #{parametric_fc_forward.1} parent=0 // pred_region
    _
  $region21: #{parametric_fc_forward.1} parent=0 // pred_fallthru
    _
  // Predicated region
  $region22: #{parametric_fc_forward.1} parent=0 // pred_check
    _
  $region23: #{parametric_fc_forward.1} parent=0 // pred_check_branch
    %31 = sbr.rel (0) target = $region25
  $region24: #{parametric_fc_forward.1} parent=0 // pred_region
    _
  $region25: #{parametric_fc_forward.1} parent=0 // pred_fallthru
    _
  // Predicated region
  $region26: #{parametric_fc_forward.1} parent=0 // pred_check
    _
  $region27: #{parametric_fc_forward.1} parent=0 // pred_check_branch
    %33 = sbr.rel (0) target = $region29
  $region28: #{parametric_fc_forward.1} parent=0 // pred_region
    _
  $region29: #{parametric_fc_forward.1} parent=0 // pred_fallthru
    _
  // Predicated region
  $region30: #{parametric_fc_forward.1} parent=0 // pred_check
    _
  $region31: #{parametric_fc_forward.1} parent=0 // pred_check_branch
    %35 = sbr.rel (0) target = $region33
  $region32: #{parametric_fc_forward.1} parent=0 // pred_region
    _
  $region33: #{parametric_fc_forward.1} parent=0 // pred_fallthru
    _
  // Predicated region
  $region34: #{parametric_fc_forward.1} parent=0 // pred_check
    _
  $region35: #{parametric_fc_forward.1} parent=0 // pred_check_branch
    %37 = sbr.rel (0) target = $region37
  $region36: #{parametric_fc_forward.1} parent=0 // pred_region
    _
  $region37: #{parametric_fc_forward.1} parent=0 // pred_fallthru
    _
  // Predicated region
  $region38: #{parametric_fc_forward.1} parent=0 // pred_check
    _
  $region39: #{parametric_fc_forward.1} parent=0 // pred_check_branch
    %39 = sbr.rel (0) target = $region41
  $region40: #{parametric_fc_forward.1} parent=0 // pred_region
    _
  $region41: #{parametric_fc_forward.1} parent=0 // pred_fallthru
    _
  // Predicated region
  $region42: #{parametric_fc_forward.1} parent=0 // pred_check
    _
  $region43: #{parametric_fc_forward.1} parent=0 // pred_check_branch
    %41 = sbr.rel (0) target = $region45
  $region44: #{parametric_fc_forward.1} parent=0 // pred_region
    _
  $region45: #{parametric_fc_forward.1} parent=0 // pred_fallthru
    _
  // Predicated region
  $region46: #{parametric_fc_forward.1} parent=0 // pred_check
    _
  $region47: #{parametric_fc_forward.1} parent=0 // pred_check_branch
    %43 = sbr.rel (0) target = $region49
  $region48: #{parametric_fc_forward.1} parent=0 // pred_region
    _
  $region49: #{parametric_fc_forward.1} parent=0 // pred_fallthru
    _
  // Predicated region
  $region50: #{parametric_fc_forward.1} parent=0 // pred_check
    _
  $region51: #{parametric_fc_forward.1} parent=0 // pred_check_branch
    %45 = sbr.rel (0) target = $region53
  $region52: #{parametric_fc_forward.1} parent=0 // pred_region
    _
  $region53: #{parametric_fc_forward.1} parent=0 // pred_fallthru
    _
  // Predicated region
  $region54: #{parametric_fc_forward.1} parent=0 // pred_check
    _
  $region55: #{parametric_fc_forward.1} parent=0 // pred_check_branch
    %47 = sbr.rel (0) target = $region57
  $region56: #{parametric_fc_forward.1} parent=0 // pred_region
    _
  $region57: #{parametric_fc_forward.1} parent=0 // pred_fallthru
    _
  // Predicated region
  $region58: #{parametric_fc_forward.1} parent=0 // pred_check
    _
  $region59: #{parametric_fc_forward.1} parent=0 // pred_check_branch
    %49 = sbr.rel (0) target = $region61
  $region60: #{parametric_fc_forward.1} parent=0 // pred_region
    _
  $region61: #{parametric_fc_forward.1} parent=0 // pred_fallthru
    _
  %v50 = vld [vmem:[%s0] sm:$0xff]
  %v51 = vld [vmem:[%s0 + $0x8] sm:$0xff]
  %v52 = vld [vmem:[%s0 + $0x10] sm:$0xff]
  %v53 = vld [vmem:[%s0 + $0x18] sm:$0xff]
  %v54 = vld [vmem:[%s0 + $0x20] sm:$0xff]
  %v55 = vld [vmem:[%s0 + $0x28] sm:$0xff]
  %v56 = vld [vmem:[%s0 + $0x30] sm:$0xff]
  %v57 = vld [vmem:[%s0 + $0x38] sm:$0xff]
  %v58 = vld [vmem:[%s0 + $0x40] sm:$0xff]
  %v59 = vld [vmem:[%s0 + $0x48] sm:$0xff]
  %v60 = vld [vmem:[%s0 + $0x50] sm:$0xff]
  %v61 = vld [vmem:[%s0 + $0x58] sm:$0xff]
  %v62 = vld [vmem:[%s0 + $0x60] sm:$0xff]
  %v63 = vld [vmem:[%s0 + $0x68] sm:$0xff]
  %v64 = vld [vmem:[%s0 + $0x70] sm:$0xff]
  %v65 = vld [vmem:[%s0 + $0x78] sm:$0xff]
  %v66 = vld [vmem:[%s0 + $0x80] sm:$0xff]
  %v67 = vld [vmem:[%s0 + $0x88] sm:$0xff]
  %v68 = vld [vmem:[%s0 + $0x90] sm:$0xff]
  %v69 = vld [vmem:[%s0 + $0x98] sm:$0xff]
  %v70 = vld [vmem:[%s0 + $0xa0] sm:$0xff]
  %v71 = vld [vmem:[%s0 + $0xa8] sm:$0xff]
  %v72 = vld [vmem:[%s0 + $0xb0] sm:$0xff]
  %v73 = vld [vmem:[%s0 + $0xb8] sm:$0xff]
  %v74 = vld [vmem:[%s0 + $0xc0] sm:$0xff]
  %v75 = vld [vmem:[%s0 + $0xc8] sm:$0xff]
  %v76 = vld [vmem:[%s0 + $0xd0] sm:$0xff]
  %v77 = vld [vmem:[%s0 + $0xd8] sm:$0xff]
  %v78 = vld [vmem:[%s0 + $0xe0] sm:$0xff]
  %v79 = vld [vmem:[%s0 + $0xe8] sm:$0xff]
  %v80 = vld [vmem:[%s0 + $0xf0] sm:$0xff]
  %v81 = vld [vmem:[%s0 + $0xf8] sm:$0xff]
  %v82 = vld [vmem:[%s1] sm:$0xff]
  %v83 = vld [vmem:[%s1 + $0x8] sm:$0xff]
  %v84 = vld [vmem:[%s1 + $0x10] sm:$0xff]
  %v85 = vld [vmem:[%s1 + $0x18] sm:$0xff]
  %v86 = vld [vmem:[%s1 + $0x20] sm:$0xff]
  %v87 = vld [vmem:[%s1 + $0x28] sm:$0xff]
  %v88 = vld [vmem:[%s1 + $0x30] sm:$0xff]
  %v89 = vld [vmem:[%s1 + $0x38] sm:$0xff]
  %v90 = vmul.f32 %v50, %v82
  %v91 = vmul.f32 %v51, %v83
  %v92 = vmul.f32 %v52, %v84
  %v93 = vmul.f32 %v53, %v85
  %v94 = vmul.f32 %v54, %v86
  %v95 = vmul.f32 %v55, %v87
  %v96 = vmul.f32 %v56, %v88
  %v97 = vmul.f32 %v57, %v89
  %v98 = vmul.f32 %v58, %v82
  %v99 = vmul.f32 %v59, %v83
  %v100 = vmul.f32 %v60, %v84
  %v101 = vmul.f32 %v61, %v85
  %v102 = vmul.f32 %v62, %v86
  %v103 = vmul.f32 %v63, %v87
  %v104 = vmul.f32 %v64, %v88
  %v105 = vmul.f32 %v65, %v89
  %v106 = vmul.f32 %v66, %v82
  %v107 = vmul.f32 %v67, %v83
  %v108 = vmul.f32 %v68, %v84
  %v109 = vmul.f32 %v69, %v85
  %v110 = vmul.f32 %v70, %v86
  %v111 = vmul.f32 %v71, %v87
  %v112 = vmul.f32 %v72, %v88
  %v113 = vmul.f32 %v73, %v89
  %v114 = vmul.f32 %v74, %v82
  %v115 = vmul.f32 %v75, %v83
  %v116 = vmul.f32 %v76, %v84
  %v117 = vmul.f32 %v77, %v85
  %v118 = vmul.f32 %v78, %v86
  %v119 = vmul.f32 %v79, %v87
  %v120 = vmul.f32 %v80, %v88
  %v121 = vmul.f32 %v81, %v89
  %v122 = vld [vmem:[%s2] sm:$0xff]
  %v123 = vld [vmem:[%s2 + $0x8] sm:$0xff]
  %v124 = vld [vmem:[%s2 + $0x10] sm:$0xff]
  %v125 = vld [vmem:[%s2 + $0x18] sm:$0xff]
  %v126 = vld [vmem:[%s2 + $0x20] sm:$0xff]
  %v127 = vld [vmem:[%s2 + $0x28] sm:$0xff]
  %v128 = vld [vmem:[%s2 + $0x30] sm:$0xff]
  %v129 = vld [vmem:[%s2 + $0x38] sm:$0xff]
  %v130 = vadd.f32 %v90, %v122
  %v131 = vadd.f32 %v91, %v123
  %v132 = vadd.f32 %v92, %v124
  %v133 = vadd.f32 %v93, %v125
  %v134 = vadd.f32 %v94, %v126
  %v135 = vadd.f32 %v95, %v127
  %v136 = vadd.f32 %v96, %v128
  %v137 = vadd.f32 %v97, %v129
  %v138 = vadd.f32 %v98, %v122
  %v139 = vadd.f32 %v99, %v123
  %v140 = vadd.f32 %v100, %v124
  %v141 = vadd.f32 %v101, %v125
  %v142 = vadd.f32 %v102, %v126
  %v143 = vadd.f32 %v103, %v127
  %v144 = vadd.f32 %v104, %v128
  %v145 = vadd.f32 %v105, %v129
  %v146 = vadd.f32 %v106, %v122
  %v147 = vadd.f32 %v107, %v123
  %v148 = vadd.f32 %v108, %v124
  %v149 = vadd.f32 %v109, %v125
  %v150 = vadd.f32 %v110, %v126
  %v151 = vadd.f32 %v111, %v127
  %v152 = vadd.f32 %v112, %v128
  %v153 = vadd.f32 %v113, %v129
  %v154 = vadd.f32 %v114, %v122
  %v155 = vadd.f32 %v115, %v123
  %v156 = vadd.f32 %v116, %v124
  %v157 = vadd.f32 %v117, %v125
  %v158 = vadd.f32 %v118, %v126
  %v159 = vadd.f32 %v119, %v127
  %v160 = vadd.f32 %v120, %v128
  %v161 = vadd.f32 %v121, %v129
  %vm194 = vcmask 1046528
  %v195 = vrot.slane %v130, 1
  %v196 = vrot.slane %v131, 1
  %v197 = vsel %vm194, %v195, %v196
  %v198 = vrot.slane %v132, 1
  %v199 = vsel %vm194, %v196, %v198
  %v200 = vrot.slane %v133, 1
  %v201 = vsel %vm194, %v198, %v200
  %v202 = vrot.slane %v134, 1
  %v203 = vsel %vm194, %v200, %v202
  %v204 = vrot.slane %v135, 1
  %v205 = vsel %vm194, %v202, %v204
  %v206 = vrot.slane %v136, 1
  %v207 = vsel %vm194, %v204, %v206
  %v208 = vrot.slane %v137, 1
  %v209 = vsel %vm194, %v206, %v208
  %v210 = vrot.slane %v138, 1
  %v211 = vrot.slane %v139, 1
  %v212 = vsel %vm194, %v210, %v211
  %v213 = vrot.slane %v140, 1
  %v214 = vsel %vm194, %v211, %v213
  %v215 = vrot.slane %v141, 1
  %v216 = vsel %vm194, %v213, %v215
  %v217 = vrot.slane %v142, 1
  %v218 = vsel %vm194, %v215, %v217
  %v219 = vrot.slane %v143, 1
  %v220 = vsel %vm194, %v217, %v219
  %v221 = vrot.slane %v144, 1
  %v222 = vsel %vm194, %v219, %v221
  %v223 = vrot.slane %v145, 1
  %v224 = vsel %vm194, %v221, %v223
  %v225 = vrot.slane %v146, 1
  %v226 = vrot.slane %v147, 1
  %v227 = vsel %vm194, %v225, %v226
  %v228 = vrot.slane %v148, 1
  %v229 = vsel %vm194, %v226, %v228
  %v230 = vrot.slane %v149, 1
  %v231 = vsel %vm194, %v228, %v230
  %v232 = vrot.slane %v150, 1
  %v233 = vsel %vm194, %v230, %v232
  %v234 = vrot.slane %v151, 1
  %v235 = vsel %vm194, %v232, %v234
  %v236 = vrot.slane %v152, 1
  %v237 = vsel %vm194, %v234, %v236
  %v238 = vrot.slane %v153, 1
  %v239 = vsel %vm194, %v236, %v238
  %v240 = vrot.slane %v154, 1
  %v241 = vrot.slane %v155, 1
  %v242 = vsel %vm194, %v240, %v241
  %v243 = vrot.slane %v156, 1
  %v244 = vsel %vm194, %v241, %v243
  %v245 = vrot.slane %v157, 1
  %v246 = vsel %vm194, %v243, %v245
  %v247 = vrot.slane %v158, 1
  %v248 = vsel %vm194, %v245, %v247
  %v249 = vrot.slane %v159, 1
  %v250 = vsel %vm194, %v247, %v249
  %v251 = vrot.slane %v160, 1
  %v252 = vsel %vm194, %v249, %v251
  %v253 = vrot.slane %v161, 1
  %v254 = vsel %vm194, %v251, %v253
  %255 = vrot.lane.b32.xlu0 %v197, 3
  %v256 = vpop.permute.xlu0 %255
  %257 = vrot.lane.b32.xlu0 %v199, 3
  %v258 = vpop.permute.xlu0 %257
  %259 = vrot.lane.b32.xlu0 %v201, 3
  %v260 = vpop.permute.xlu0 %259
  %261 = vrot.lane.b32.xlu0 %v203, 3
  %v262 = vpop.permute.xlu0 %261
  %263 = vrot.lane.b32.xlu0 %v205, 3
  %v264 = vpop.permute.xlu0 %263
  %265 = vrot.lane.b32.xlu0 %v207, 3
  %v266 = vpop.permute.xlu0 %265
  %267 = vrot.lane.b32.xlu0 %v209, 3
  %v268 = vpop.permute.xlu0 %267
  %269 = vrot.lane.b32.xlu0 %v208, 3
  %v270 = vpop.permute.xlu0 %269
  %271 = vrot.lane.b32.xlu0 %v212, 3
  %v272 = vpop.permute.xlu0 %271
  %273 = vrot.lane.b32.xlu0 %v214, 3
  %v274 = vpop.permute.xlu0 %273
  %275 = vrot.lane.b32.xlu0 %v216, 3
  %v276 = vpop.permute.xlu0 %275
  %277 = vrot.lane.b32.xlu0 %v218, 3
  %v278 = vpop.permute.xlu0 %277
  %279 = vrot.lane.b32.xlu0 %v220, 3
  %v280 = vpop.permute.xlu0 %279
  %281 = vrot.lane.b32.xlu0 %v222, 3
  %v282 = vpop.permute.xlu0 %281
  %283 = vrot.lane.b32.xlu0 %v224, 3
  %v284 = vpop.permute.xlu0 %283
  %285 = vrot.lane.b32.xlu0 %v223, 3
  %v286 = vpop.permute.xlu0 %285
  %287 = vrot.lane.b32.xlu0 %v227, 3
  %v288 = vpop.permute.xlu0 %287
  %289 = vrot.lane.b32.xlu0 %v229, 3
  %v290 = vpop.permute.xlu0 %289
  %291 = vrot.lane.b32.xlu0 %v231, 3
  %v292 = vpop.permute.xlu0 %291
  %293 = vrot.lane.b32.xlu0 %v233, 3
  %v294 = vpop.permute.xlu0 %293
  %295 = vrot.lane.b32.xlu0 %v235, 3
  %v296 = vpop.permute.xlu0 %295
  %297 = vrot.lane.b32.xlu0 %v237, 3
  %v298 = vpop.permute.xlu0 %297
  %299 = vrot.lane.b32.xlu0 %v239, 3
  %v300 = vpop.permute.xlu0 %299
  %301 = vrot.lane.b32.xlu0 %v238, 3
  %v302 = vpop.permute.xlu0 %301
  %303 = vrot.lane.b32.xlu0 %v242, 3
  %v304 = vpop.permute.xlu0 %303
  %305 = vrot.lane.b32.xlu0 %v244, 3
  %v306 = vpop.permute.xlu0 %305
  %307 = vrot.lane.b32.xlu0 %v246, 3
  %v308 = vpop.permute.xlu0 %307
  %309 = vrot.lane.b32.xlu0 %v248, 3
  %v310 = vpop.permute.xlu0 %309
  %311 = vrot.lane.b32.xlu0 %v250, 3
  %v312 = vpop.permute.xlu0 %311
  %313 = vrot.lane.b32.xlu0 %v252, 3
  %v314 = vpop.permute.xlu0 %313
  %315 = vrot.lane.b32.xlu0 %v254, 3
  %v316 = vpop.permute.xlu0 %315
  %317 = vrot.lane.b32.xlu0 %v253, 3
  %v318 = vpop.permute.xlu0 %317
  %vm351 = vcmask 1045504
  %v352 = vrot.slane %v130, 2
  %v353 = vrot.slane %v131, 2
  %v354 = vsel %vm351, %v352, %v353
  %v355 = vrot.slane %v132, 2
  %v356 = vsel %vm351, %v353, %v355
  %v357 = vrot.slane %v133, 2
  %v358 = vsel %vm351, %v355, %v357
  %v359 = vrot.slane %v134, 2
  %v360 = vsel %vm351, %v357, %v359
  %v361 = vrot.slane %v135, 2
  %v362 = vsel %vm351, %v359, %v361
  %v363 = vrot.slane %v136, 2
  %v364 = vsel %vm351, %v361, %v363
  %v365 = vrot.slane %v137, 2
  %v366 = vsel %vm351, %v363, %v365
  %v367 = vrot.slane %v138, 2
  %v368 = vrot.slane %v139, 2
  %v369 = vsel %vm351, %v367, %v368
  %v370 = vrot.slane %v140, 2
  %v371 = vsel %vm351, %v368, %v370
  %v372 = vrot.slane %v141, 2
  %v373 = vsel %vm351, %v370, %v372
  %v374 = vrot.slane %v142, 2
  %v375 = vsel %vm351, %v372, %v374
  %v376 = vrot.slane %v143, 2
  %v377 = vsel %vm351, %v374, %v376
  %v378 = vrot.slane %v144, 2
  %v379 = vsel %vm351, %v376, %v378
  %v380 = vrot.slane %v145, 2
  %v381 = vsel %vm351, %v378, %v380
  %v382 = vrot.slane %v146, 2
  %v383 = vrot.slane %v147, 2
  %v384 = vsel %vm351, %v382, %v383
  %v385 = vrot.slane %v148, 2
  %v386 = vsel %vm351, %v383, %v385
  %v387 = vrot.slane %v149, 2
  %v388 = vsel %vm351, %v385, %v387
  %v389 = vrot.slane %v150, 2
  %v390 = vsel %vm351, %v387, %v389
  %v391 = vrot.slane %v151, 2
  %v392 = vsel %vm351, %v389, %v391
  %v393 = vrot.slane %v152, 2
  %v394 = vsel %vm351, %v391, %v393
  %v395 = vrot.slane %v153, 2
  %v396 = vsel %vm351, %v393, %v395
  %v397 = vrot.slane %v154, 2
  %v398 = vrot.slane %v155, 2
  %v399 = vsel %vm351, %v397, %v398
  %v400 = vrot.slane %v156, 2
  %v401 = vsel %vm351, %v398, %v400
  %v402 = vrot.slane %v157, 2
  %v403 = vsel %vm351, %v400, %v402
  %v404 = vrot.slane %v158, 2
  %v405 = vsel %vm351, %v402, %v404
  %v406 = vrot.slane %v159, 2
  %v407 = vsel %vm351, %v404, %v406
  %v408 = vrot.slane %v160, 2
  %v409 = vsel %vm351, %v406, %v408
  %v410 = vrot.slane %v161, 2
  %v411 = vsel %vm351, %v408, %v410
  %412 = vrot.lane.b32.xlu0 %v354, 6
  %v413 = vpop.permute.xlu0 %412
  %414 = vrot.lane.b32.xlu0 %v356, 6
  %v415 = vpop.permute.xlu0 %414
  %416 = vrot.lane.b32.xlu0 %v358, 6
  %v417 = vpop.permute.xlu0 %416
  %418 = vrot.lane.b32.xlu0 %v360, 6
  %v419 = vpop.permute.xlu0 %418
  %420 = vrot.lane.b32.xlu0 %v362, 6
  %v421 = vpop.permute.xlu0 %420
  %422 = vrot.lane.b32.xlu0 %v364, 6
  %v423 = vpop.permute.xlu0 %422
  %424 = vrot.lane.b32.xlu0 %v366, 6
  %v425 = vpop.permute.xlu0 %424
  %426 = vrot.lane.b32.xlu0 %v365, 6
  %v427 = vpop.permute.xlu0 %426
  %428 = vrot.lane.b32.xlu0 %v369, 6
  %v429 = vpop.permute.xlu0 %428
  %430 = vrot.lane.b32.xlu0 %v371, 6
  %v431 = vpop.permute.xlu0 %430
  %432 = vrot.lane.b32.xlu0 %v373, 6
  %v433 = vpop.permute.xlu0 %432
  %434 = vrot.lane.b32.xlu0 %v375, 6
  %v435 = vpop.permute.xlu0 %434
  %436 = vrot.lane.b32.xlu0 %v377, 6
  %v437 = vpop.permute.xlu0 %436
  %438 = vrot.lane.b32.xlu0 %v379, 6
  %v439 = vpop.permute.xlu0 %438
  %440 = vrot.lane.b32.xlu0 %v381, 6
  %v441 = vpop.permute.xlu0 %440
  %442 = vrot.lane.b32.xlu0 %v380, 6
  %v443 = vpop.permute.xlu0 %442
  %444 = vrot.lane.b32.xlu0 %v384, 6
  %v445 = vpop.permute.xlu0 %444
  %446 = vrot.lane.b32.xlu0 %v386, 6
  %v447 = vpop.permute.xlu0 %446
  %448 = vrot.lane.b32.xlu0 %v388, 6
  %v449 = vpop.permute.xlu0 %448
  %450 = vrot.lane.b32.xlu0 %v390, 6
  %v451 = vpop.permute.xlu0 %450
  %452 = vrot.lane.b32.xlu0 %v392, 6
  %v453 = vpop.permute.xlu0 %452
  %454 = vrot.lane.b32.xlu0 %v394, 6
  %v455 = vpop.permute.xlu0 %454
  %456 = vrot.lane.b32.xlu0 %v396, 6
  %v457 = vpop.permute.xlu0 %456
  %458 = vrot.lane.b32.xlu0 %v395, 6
  %v459 = vpop.permute.xlu0 %458
  %460 = vrot.lane.b32.xlu0 %v399, 6
  %v461 = vpop.permute.xlu0 %460
  %462 = vrot.lane.b32.xlu0 %v401, 6
  %v463 = vpop.permute.xlu0 %462
  %464 = vrot.lane.b32.xlu0 %v403, 6
  %v465 = vpop.permute.xlu0 %464
  %466 = vrot.lane.b32.xlu0 %v405, 6
  %v467 = vpop.permute.xlu0 %466
  %468 = vrot.lane.b32.xlu0 %v407, 6
  %v469 = vpop.permute.xlu0 %468
  %470 = vrot.lane.b32.xlu0 %v409, 6
  %v471 = vpop.permute.xlu0 %470
  %472 = vrot.lane.b32.xlu0 %v411, 6
  %v473 = vpop.permute.xlu0 %472
  %474 = vrot.lane.b32.xlu0 %v410, 6
  %v475 = vpop.permute.xlu0 %474
  %vm508 = vcmask 1044480
  %v509 = vrot.slane %v130, 3
  %v510 = vrot.slane %v131, 3
  %v511 = vsel %vm508, %v509, %v510
  %v512 = vrot.slane %v132, 3
  %v513 = vsel %vm508, %v510, %v512
  %v514 = vrot.slane %v133, 3
  %v515 = vsel %vm508, %v512, %v514
  %v516 = vrot.slane %v134, 3
  %v517 = vsel %vm508, %v514, %v516
  %v518 = vrot.slane %v135, 3
  %v519 = vsel %vm508, %v516, %v518
  %v520 = vrot.slane %v136, 3
  %v521 = vsel %vm508, %v518, %v520
  %v522 = vrot.slane %v137, 3
  %v523 = vsel %vm508, %v520, %v522
  %v524 = vrot.slane %v138, 3
  %v525 = vrot.slane %v139, 3
  %v526 = vsel %vm508, %v524, %v525
  %v527 = vrot.slane %v140, 3
  %v528 = vsel %vm508, %v525, %v527
  %v529 = vrot.slane %v141, 3
  %v530 = vsel %vm508, %v527, %v529
  %v531 = vrot.slane %v142, 3
  %v532 = vsel %vm508, %v529, %v531
  %v533 = vrot.slane %v143, 3
  %v534 = vsel %vm508, %v531, %v533
  %v535 = vrot.slane %v144, 3
  %v536 = vsel %vm508, %v533, %v535
  %v537 = vrot.slane %v145, 3
  %v538 = vsel %vm508, %v535, %v537
  %v539 = vrot.slane %v146, 3
  %v540 = vrot.slane %v147, 3
  %v541 = vsel %vm508, %v539, %v540
  %v542 = vrot.slane %v148, 3
  %v543 = vsel %vm508, %v540, %v542
  %v544 = vrot.slane %v149, 3
  %v545 = vsel %vm508, %v542, %v544
  %v546 = vrot.slane %v150, 3
  %v547 = vsel %vm508, %v544, %v546
  %v548 = vrot.slane %v151, 3
  %v549 = vsel %vm508, %v546, %v548
  %v550 = vrot.slane %v152, 3
  %v551 = vsel %vm508, %v548, %v550
  %v552 = vrot.slane %v153, 3
  %v553 = vsel %vm508, %v550, %v552
  %v554 = vrot.slane %v154, 3
  %v555 = vrot.slane %v155, 3
  %v556 = vsel %vm508, %v554, %v555
  %v557 = vrot.slane %v156, 3
  %v558 = vsel %vm508, %v555, %v557
  %v559 = vrot.slane %v157, 3
  %v560 = vsel %vm508, %v557, %v559
  %v561 = vrot.slane %v158, 3
  %v562 = vsel %vm508, %v559, %v561
  %v563 = vrot.slane %v159, 3
  %v564 = vsel %vm508, %v561, %v563
  %v565 = vrot.slane %v160, 3
  %v566 = vsel %vm508, %v563, %v565
  %v567 = vrot.slane %v161, 3
  %v568 = vsel %vm508, %v565, %v567
  %569 = vrot.lane.b32.xlu0 %v511, 9
  %v570 = vpop.permute.xlu0 %569
  %571 = vrot.lane.b32.xlu0 %v513, 9
  %v572 = vpop.permute.xlu0 %571
  %573 = vrot.lane.b32.xlu0 %v515, 9
  %v574 = vpop.permute.xlu0 %573
  %575 = vrot.lane.b32.xlu0 %v517, 9
  %v576 = vpop.permute.xlu0 %575
  %577 = vrot.lane.b32.xlu0 %v519, 9
  %v578 = vpop.permute.xlu0 %577
  %579 = vrot.lane.b32.xlu0 %v521, 9
  %v580 = vpop.permute.xlu0 %579
  %581 = vrot.lane.b32.xlu0 %v523, 9
  %v582 = vpop.permute.xlu0 %581
  %583 = vrot.lane.b32.xlu0 %v522, 9
  %v584 = vpop.permute.xlu0 %583
  %585 = vrot.lane.b32.xlu0 %v526, 9
  %v586 = vpop.permute.xlu0 %585
  %587 = vrot.lane.b32.xlu0 %v528, 9
  %v588 = vpop.permute.xlu0 %587
  %589 = vrot.lane.b32.xlu0 %v530, 9
  %v590 = vpop.permute.xlu0 %589
  %591 = vrot.lane.b32.xlu0 %v532, 9
  %v592 = vpop.permute.xlu0 %591
  %593 = vrot.lane.b32.xlu0 %v534, 9
  %v594 = vpop.permute.xlu0 %593
  %595 = vrot.lane.b32.xlu0 %v536, 9
  %v596 = vpop.permute.xlu0 %595
  %597 = vrot.lane.b32.xlu0 %v538, 9
  %v598 = vpop.permute.xlu0 %597
  %599 = vrot.lane.b32.xlu0 %v537, 9
  %v600 = vpop.permute.xlu0 %599
  %601 = vrot.lane.b32.xlu0 %v541, 9
  %v602 = vpop.permute.xlu0 %601
  %603 = vrot.lane.b32.xlu0 %v543, 9
  %v604 = vpop.permute.xlu0 %603
  %605 = vrot.lane.b32.xlu0 %v545, 9
  %v606 = vpop.permute.xlu0 %605
  %607 = vrot.lane.b32.xlu0 %v547, 9
  %v608 = vpop.permute.xlu0 %607
  %609 = vrot.lane.b32.xlu0 %v549, 9
  %v610 = vpop.permute.xlu0 %609
  %611 = vrot.lane.b32.xlu0 %v551, 9
  %v612 = vpop.permute.xlu0 %611
  %613 = vrot.lane.b32.xlu0 %v553, 9
  %v614 = vpop.permute.xlu0 %613
  %615 = vrot.lane.b32.xlu0 %v552, 9
  %v616 = vpop.permute.xlu0 %615
  %617 = vrot.lane.b32.xlu0 %v556, 9
  %v618 = vpop.permute.xlu0 %617
  %619 = vrot.lane.b32.xlu0 %v558, 9
  %v620 = vpop.permute.xlu0 %619
  %621 = vrot.lane.b32.xlu0 %v560, 9
  %v622 = vpop.permute.xlu0 %621
  %623 = vrot.lane.b32.xlu0 %v562, 9
  %v624 = vpop.permute.xlu0 %623
  %625 = vrot.lane.b32.xlu0 %v564, 9
  %v626 = vpop.permute.xlu0 %625
  %627 = vrot.lane.b32.xlu0 %v566, 9
  %v628 = vpop.permute.xlu0 %627
  %629 = vrot.lane.b32.xlu0 %v568, 9
  %v630 = vpop.permute.xlu0 %629
  %631 = vrot.lane.b32.xlu0 %v567, 9
  %v632 = vpop.permute.xlu0 %631
  %vm665 = vcmask 1043456
  %v666 = vrot.slane %v130, 4
  %v667 = vrot.slane %v131, 4
  %v668 = vsel %vm665, %v666, %v667
  %v669 = vrot.slane %v132, 4
  %v670 = vsel %vm665, %v667, %v669
  %v671 = vrot.slane %v133, 4
  %v672 = vsel %vm665, %v669, %v671
  %v673 = vrot.slane %v134, 4
  %v674 = vsel %vm665, %v671, %v673
  %v675 = vrot.slane %v135, 4
  %v676 = vsel %vm665, %v673, %v675
  %v677 = vrot.slane %v136, 4
  %v678 = vsel %vm665, %v675, %v677
  %v679 = vrot.slane %v137, 4
  %v680 = vsel %vm665, %v677, %v679
  %v681 = vrot.slane %v138, 4
  %v682 = vrot.slane %v139, 4
  %v683 = vsel %vm665, %v681, %v682
  %v684 = vrot.slane %v140, 4
  %v685 = vsel %vm665, %v682, %v684
  %v686 = vrot.slane %v141, 4
  %v687 = vsel %vm665, %v684, %v686
  %v688 = vrot.slane %v142, 4
  %v689 = vsel %vm665, %v686, %v688
  %v690 = vrot.slane %v143, 4
  %v691 = vsel %vm665, %v688, %v690
  %v692 = vrot.slane %v144, 4
  %v693 = vsel %vm665, %v690, %v692
  %v694 = vrot.slane %v145, 4
  %v695 = vsel %vm665, %v692, %v694
  %v696 = vrot.slane %v146, 4
  %v697 = vrot.slane %v147, 4
  %v698 = vsel %vm665, %v696, %v697
  %v699 = vrot.slane %v148, 4
  %v700 = vsel %vm665, %v697, %v699
  %v701 = vrot.slane %v149, 4
  %v702 = vsel %vm665, %v699, %v701
  %v703 = vrot.slane %v150, 4
  %v704 = vsel %vm665, %v701, %v703
  %v705 = vrot.slane %v151, 4
  %v706 = vsel %vm665, %v703, %v705
  %v707 = vrot.slane %v152, 4
  %v708 = vsel %vm665, %v705, %v707
  %v709 = vrot.slane %v153, 4
  %v710 = vsel %vm665, %v707, %v709
  %v711 = vrot.slane %v154, 4
  %v712 = vrot.slane %v155, 4
  %v713 = vsel %vm665, %v711, %v712
  %v714 = vrot.slane %v156, 4
  %v715 = vsel %vm665, %v712, %v714
  %v716 = vrot.slane %v157, 4
  %v717 = vsel %vm665, %v714, %v716
  %v718 = vrot.slane %v158, 4
  %v719 = vsel %vm665, %v716, %v718
  %v720 = vrot.slane %v159, 4
  %v721 = vsel %vm665, %v718, %v720
  %v722 = vrot.slane %v160, 4
  %v723 = vsel %vm665, %v720, %v722
  %v724 = vrot.slane %v161, 4
  %v725 = vsel %vm665, %v722, %v724
  %726 = vrot.lane.b32.xlu0 %v668, 12
  %v727 = vpop.permute.xlu0 %726
  %728 = vrot.lane.b32.xlu0 %v670, 12
  %v729 = vpop.permute.xlu0 %728
  %730 = vrot.lane.b32.xlu0 %v672, 12
  %v731 = vpop.permute.xlu0 %730
  %732 = vrot.lane.b32.xlu0 %v674, 12
  %v733 = vpop.permute.xlu0 %732
  %734 = vrot.lane.b32.xlu0 %v676, 12
  %v735 = vpop.permute.xlu0 %734
  %736 = vrot.lane.b32.xlu0 %v678, 12
  %v737 = vpop.permute.xlu0 %736
  %738 = vrot.lane.b32.xlu0 %v680, 12
  %v739 = vpop.permute.xlu0 %738
  %740 = vrot.lane.b32.xlu0 %v679, 12
  %v741 = vpop.permute.xlu0 %740
  %742 = vrot.lane.b32.xlu0 %v683, 12
  %v743 = vpop.permute.xlu0 %742
  %744 = vrot.lane.b32.xlu0 %v685, 12
  %v745 = vpop.permute.xlu0 %744
  %746 = vrot.lane.b32.xlu0 %v687, 12
  %v747 = vpop.permute.xlu0 %746
  %748 = vrot.lane.b32.xlu0 %v689, 12
  %v749 = vpop.permute.xlu0 %748
  %750 = vrot.lane.b32.xlu0 %v691, 12
  %v751 = vpop.permute.xlu0 %750
  %752 = vrot.lane.b32.xlu0 %v693, 12
  %v753 = vpop.permute.xlu0 %752
  %754 = vrot.lane.b32.xlu0 %v695, 12
  %v755 = vpop.permute.xlu0 %754
  %756 = vrot.lane.b32.xlu0 %v694, 12
  %v757 = vpop.permute.xlu0 %756
  %758 = vrot.lane.b32.xlu0 %v698, 12
  %v759 = vpop.permute.xlu0 %758
  %760 = vrot.lane.b32.xlu0 %v700, 12
  %v761 = vpop.permute.xlu0 %760
  %762 = vrot.lane.b32.xlu0 %v702, 12
  %v763 = vpop.permute.xlu0 %762
  %764 = vrot.lane.b32.xlu0 %v704, 12
  %v765 = vpop.permute.xlu0 %764
  %766 = vrot.lane.b32.xlu0 %v706, 12
  %v767 = vpop.permute.xlu0 %766
  %768 = vrot.lane.b32.xlu0 %v708, 12
  %v769 = vpop.permute.xlu0 %768
  %770 = vrot.lane.b32.xlu0 %v710, 12
  %v771 = vpop.permute.xlu0 %770
  %772 = vrot.lane.b32.xlu0 %v709, 12
  %v773 = vpop.permute.xlu0 %772
  %774 = vrot.lane.b32.xlu0 %v713, 12
  %v775 = vpop.permute.xlu0 %774
  %776 = vrot.lane.b32.xlu0 %v715, 12
  %v777 = vpop.permute.xlu0 %776
  %778 = vrot.lane.b32.xlu0 %v717, 12
  %v779 = vpop.permute.xlu0 %778
  %780 = vrot.lane.b32.xlu0 %v719, 12
  %v781 = vpop.permute.xlu0 %780
  %782 = vrot.lane.b32.xlu0 %v721, 12
  %v783 = vpop.permute.xlu0 %782
  %784 = vrot.lane.b32.xlu0 %v723, 12
  %v785 = vpop.permute.xlu0 %784
  %786 = vrot.lane.b32.xlu0 %v725, 12
  %v787 = vpop.permute.xlu0 %786
  %788 = vrot.lane.b32.xlu0 %v724, 12
  %v789 = vpop.permute.xlu0 %788
  %vm822 = vcmask 23552
  %v823 = vsel %vm822, %v130, %v256
  %v824 = vsel %vm822, %v131, %v258
  %v825 = vsel %vm822, %v132, %v260
  %v826 = vsel %vm822, %v133, %v262
  %v827 = vsel %vm822, %v134, %v264
  %v828 = vsel %vm822, %v135, %v266
  %v829 = vsel %vm822, %v136, %v268
  %v830 = vsel %vm822, %v137, %v270
  %v831 = vsel %vm822, %v138, %v272
  %v832 = vsel %vm822, %v139, %v274
  %v833 = vsel %vm822, %v140, %v276
  %v834 = vsel %vm822, %v141, %v278
  %v835 = vsel %vm822, %v142, %v280
  %v836 = vsel %vm822, %v143, %v282
  %v837 = vsel %vm822, %v144, %v284
  %v838 = vsel %vm822, %v145, %v286
  %v839 = vsel %vm822, %v146, %v288
  %v840 = vsel %vm822, %v147, %v290
  %v841 = vsel %vm822, %v148, %v292
  %v842 = vsel %vm822, %v149, %v294
  %v843 = vsel %vm822, %v150, %v296
  %v844 = vsel %vm822, %v151, %v298
  %v845 = vsel %vm822, %v152, %v300
  %v846 = vsel %vm822, %v153, %v302
  %v847 = vsel %vm822, %v154, %v304
  %v848 = vsel %vm822, %v155, %v306
  %v849 = vsel %vm822, %v156, %v308
  %v850 = vsel %vm822, %v157, %v310
  %v851 = vsel %vm822, %v158, %v312
  %v852 = vsel %vm822, %v159, %v314
  %v853 = vsel %vm822, %v160, %v316
  %v854 = vsel %vm822, %v161, %v318
  %vm855 = vcmask 48128
  %v856 = vsel %vm855, %v823, %v413
  %v857 = vsel %vm855, %v824, %v415
  %v858 = vsel %vm855, %v825, %v417
  %v859 = vsel %vm855, %v826, %v419
  %v860 = vsel %vm855, %v827, %v421
  %v861 = vsel %vm855, %v828, %v423
  %v862 = vsel %vm855, %v829, %v425
  %v863 = vsel %vm855, %v830, %v427
  %v864 = vsel %vm855, %v831, %v429
  %v865 = vsel %vm855, %v832, %v431
  %v866 = vsel %vm855, %v833, %v433
  %v867 = vsel %vm855, %v834, %v435
  %v868 = vsel %vm855, %v835, %v437
  %v869 = vsel %vm855, %v836, %v439
  %v870 = vsel %vm855, %v837, %v441
  %v871 = vsel %vm855, %v838, %v443
  %v872 = vsel %vm855, %v839, %v445
  %v873 = vsel %vm855, %v840, %v447
  %v874 = vsel %vm855, %v841, %v449
  %v875 = vsel %vm855, %v842, %v451
  %v876 = vsel %vm855, %v843, %v453
  %v877 = vsel %vm855, %v844, %v455
  %v878 = vsel %vm855, %v845, %v457
  %v879 = vsel %vm855, %v846, %v459
  %v880 = vsel %vm855, %v847, %v461
  %v881 = vsel %vm855, %v848, %v463
  %v882 = vsel %vm855, %v849, %v465
  %v883 = vsel %vm855, %v850, %v467
  %v884 = vsel %vm855, %v851, %v469
  %v885 = vsel %vm855, %v852, %v471
  %v886 = vsel %vm855, %v853, %v473
  %v887 = vsel %vm855, %v854, %v475
  %vm888 = vcmask 72704
  %v889 = vsel %vm888, %v856, %v570
  %v890 = vsel %vm888, %v857, %v572
  %v891 = vsel %vm888, %v858, %v574
  %v892 = vsel %vm888, %v859, %v576
  %v893 = vsel %vm888, %v860, %v578
  %v894 = vsel %vm888, %v861, %v580
  %v895 = vsel %vm888, %v862, %v582
  %v896 = vsel %vm888, %v863, %v584
  %v897 = vsel %vm888, %v864, %v586
  %v898 = vsel %vm888, %v865, %v588
  %v899 = vsel %vm888, %v866, %v590
  %v900 = vsel %vm888, %v867, %v592
  %v901 = vsel %vm888, %v868, %v594
  %v902 = vsel %vm888, %v869, %v596
  %v903 = vsel %vm888, %v870, %v598
  %v904 = vsel %vm888, %v871, %v600
  %v905 = vsel %vm888, %v872, %v602
  %v906 = vsel %vm888, %v873, %v604
  %v907 = vsel %vm888, %v874, %v606
  %v908 = vsel %vm888, %v875, %v608
  %v909 = vsel %vm888, %v876, %v610
  %v910 = vsel %vm888, %v877, %v612
  %v911 = vsel %vm888, %v878, %v614
  %v912 = vsel %vm888, %v879, %v616
  %v913 = vsel %vm888, %v880, %v618
  %v914 = vsel %vm888, %v881, %v620
  %v915 = vsel %vm888, %v882, %v622
  %v916 = vsel %vm888, %v883, %v624
  %v917 = vsel %vm888, %v884, %v626
  %v918 = vsel %vm888, %v885, %v628
  %v919 = vsel %vm888, %v886, %v630
  %v920 = vsel %vm888, %v887, %v632
  %vm921 = vcmask 97280
  %v922 = vsel %vm921, %v889, %v727
  %v923 = vsel %vm921, %v890, %v729
  %v924 = vsel %vm921, %v891, %v731
  %v925 = vsel %vm921, %v892, %v733
  %v926 = vsel %vm921, %v893, %v735
  %v927 = vsel %vm921, %v894, %v737
  %v928 = vsel %vm921, %v895, %v739
  %v929 = vsel %vm921, %v896, %v741
  %v930 = vsel %vm921, %v897, %v743
  %v931 = vsel %vm921, %v898, %v745
  %v932 = vsel %vm921, %v899, %v747
  %v933 = vsel %vm921, %v900, %v749
  %v934 = vsel %vm921, %v901, %v751
  %v935 = vsel %vm921, %v902, %v753
  %v936 = vsel %vm921, %v903, %v755
  %v937 = vsel %vm921, %v904, %v757
  %v938 = vsel %vm921, %v905, %v759
  %v939 = vsel %vm921, %v906, %v761
  %v940 = vsel %vm921, %v907, %v763
  %v941 = vsel %vm921, %v908, %v765
  %v942 = vsel %vm921, %v909, %v767
  %v943 = vsel %vm921, %v910, %v769
  %v944 = vsel %vm921, %v911, %v771
  %v945 = vsel %vm921, %v912, %v773
  %v946 = vsel %vm921, %v913, %v775
  %v947 = vsel %vm921, %v914, %v777
  %v948 = vsel %vm921, %v915, %v779
  %v949 = vsel %vm921, %v916, %v781
  %v950 = vsel %vm921, %v917, %v783
  %v951 = vsel %vm921, %v918, %v785
  %v952 = vsel %vm921, %v919, %v787
  %v953 = vsel %vm921, %v920, %v789
  %v986 = vrot.slane %v922, 4
  %v987 = vrot.slane %v923, 4
  %v988 = vrot.slane %v924, 4
  %v989 = vrot.slane %v925, 4
  %v990 = vrot.slane %v926, 4
  %v991 = vrot.slane %v927, 4
  %v992 = vrot.slane %v928, 4
  %v993 = vrot.slane %v930, 4
  %v994 = vrot.slane %v931, 4
  %v995 = vrot.slane %v932, 4
  %v996 = vrot.slane %v933, 4
  %v997 = vrot.slane %v934, 4
  %v998 = vrot.slane %v935, 4
  %v999 = vrot.slane %v936, 4
  %v1000 = vrot.slane %v938, 4
  %v1001 = vrot.slane %v939, 4
  %v1002 = vrot.slane %v940, 4
  %v1003 = vrot.slane %v941, 4
  %v1004 = vrot.slane %v942, 4
  %v1005 = vrot.slane %v943, 4
  %v1006 = vrot.slane %v944, 4
  %v1007 = vrot.slane %v946, 4
  %v1008 = vrot.slane %v947, 4
  %v1009 = vrot.slane %v948, 4
  %v1010 = vrot.slane %v949, 4
  %v1011 = vrot.slane %v950, 4
  %v1012 = vrot.slane %v951, 4
  %v1013 = vrot.slane %v952, 4
  %v1014 = vld [vmem:[%s3] sm:$0xff]
  %v1015 = vld [vmem:[%s3 + $0x8] sm:$0x7f]
  %v1016 = vld [vmem:[%s4] sm:$0x1]
  %v1018 = vperm.slane %v1016, 0
  %1020 = vst [vmem:[#allocation1] ss:$2 sm:$0xff] %v922
  %s1021 = scalar_lea.vmem [#allocation1], 1
  %1022 = vst [vmem:[%s1021] ss:$2 sm:$0xff] %v986
  %s1023 = scalar_lea.vmem [#allocation1], 16
  %1024 = vst [vmem:[%s1023] ss:$2 sm:$0xff] %v923
  %s1025 = scalar_lea.vmem [#allocation1], 17
  %1026 = vst [vmem:[%s1025] ss:$2 sm:$0xff] %v987
  %s1027 = scalar_lea.vmem [#allocation1], 32
  %1028 = vst [vmem:[%s1027] ss:$2 sm:$0xff] %v924
  %s1029 = scalar_lea.vmem [#allocation1], 33
  %1030 = vst [vmem:[%s1029] ss:$2 sm:$0xff] %v988
  %s1031 = scalar_lea.vmem [#allocation1], 48
  %1032 = vst [vmem:[%s1031] ss:$2 sm:$0xff] %v925
  %s1033 = scalar_lea.vmem [#allocation1], 49
  %1034 = vst [vmem:[%s1033] ss:$2 sm:$0xff] %v989
  %v1035 = vld.sshfl [vmem:[#allocation1] sm:$0xff pattern:$0x75316420]
  %v1036 = vld.sshfl [vmem:[#allocation1 + $0x10] sm:$0xff pattern:$0x75316420]
  %v1037 = vld.sshfl [vmem:[#allocation1 + $0x20] sm:$0xff pattern:$0x75316420]
  %v1038 = vld.sshfl [vmem:[#allocation1 + $0x30] sm:$0xff pattern:$0x75316420]
  %1039 = vst [vmem:[#allocation1] ss:$2 sm:$0xff] %v926
  %1040 = vst [vmem:[%s1021] ss:$2 sm:$0xff] %v990
  %1041 = vst [vmem:[%s1023] ss:$2 sm:$0xff] %v927
  %1042 = vst [vmem:[%s1025] ss:$2 sm:$0xff] %v991
  %1043 = vst [vmem:[%s1027] ss:$2 sm:$0xff] %v928
  %1044 = vst [vmem:[%s1029] ss:$2 sm:$0xff] %v992
  %1045 = vst [vmem:[%s1031] ss:$2 sm:$0xff] %v929
  %1046 = vst [vmem:[%s1033] ss:$2 sm:$0xff] %v930
  %v1047 = vld.sshfl [vmem:[#allocation1] sm:$0xff pattern:$0x75316420]
  %v1048 = vld.sshfl [vmem:[#allocation1 + $0x10] sm:$0xff pattern:$0x75316420]
  %v1049 = vld.sshfl [vmem:[#allocation1 + $0x20] sm:$0xff pattern:$0x75316420]
  %v1050 = vld.sshfl [vmem:[#allocation1 + $0x30] sm:$0xff pattern:$0x75316420]
  %1051 = vst [vmem:[#allocation1] ss:$2 sm:$0xff] %v993
  %1052 = vst [vmem:[%s1021] ss:$2 sm:$0xff] %v931
  %1053 = vst [vmem:[%s1023] ss:$2 sm:$0xff] %v994
  %1054 = vst [vmem:[%s1025] ss:$2 sm:$0xff] %v932
  %1055 = vst [vmem:[%s1027] ss:$2 sm:$0xff] %v995
  %1056 = vst [vmem:[%s1029] ss:$2 sm:$0xff] %v933
  %1057 = vst [vmem:[%s1031] ss:$2 sm:$0xff] %v996
  %1058 = vst [vmem:[%s1033] ss:$2 sm:$0xff] %v934
  %v1059 = vld.sshfl [vmem:[#allocation1] sm:$0xff pattern:$0x75316420]
  %v1060 = vld.sshfl [vmem:[#allocation1 + $0x10] sm:$0xff pattern:$0x75316420]
  %v1061 = vld.sshfl [vmem:[#allocation1 + $0x20] sm:$0xff pattern:$0x75316420]
  %v1062 = vld.sshfl [vmem:[#allocation1 + $0x30] sm:$0xff pattern:$0x75316420]
  %1063 = vst [vmem:[#allocation1] ss:$2 sm:$0xff] %v997
  %1064 = vst [vmem:[%s1021] ss:$2 sm:$0xff] %v935
  %1065 = vst [vmem:[%s1023] ss:$2 sm:$0xff] %v998
  %1066 = vst [vmem:[%s1025] ss:$2 sm:$0xff] %v936
  %1067 = vst [vmem:[%s1027] ss:$2 sm:$0xff] %v999
  %1068 = vst [vmem:[%s1029] ss:$2 sm:$0xff] %v937
  %1069 = vst [vmem:[%s1031] ss:$2 sm:$0xff] %v938
  %1070 = vst [vmem:[%s1033] ss:$2 sm:$0xff] %v1000
  %v1071 = vld.sshfl [vmem:[#allocation1] sm:$0xff pattern:$0x75316420]
  %v1072 = vld.sshfl [vmem:[#allocation1 + $0x10] sm:$0xff pattern:$0x75316420]
  %v1073 = vld.sshfl [vmem:[#allocation1 + $0x20] sm:$0xff pattern:$0x75316420]
  %v1074 = vld.sshfl [vmem:[#allocation1 + $0x30] sm:$0xff pattern:$0x75316420]
  %1075 = vst [vmem:[#allocation1] ss:$2 sm:$0xff] %v939
  %1076 = vst [vmem:[%s1021] ss:$2 sm:$0xff] %v1001
  %1077 = vst [vmem:[%s1023] ss:$2 sm:$0xff] %v940
  %1078 = vst [vmem:[%s1025] ss:$2 sm:$0xff] %v1002
  %1079 = vst [vmem:[%s1027] ss:$2 sm:$0xff] %v941
  %1080 = vst [vmem:[%s1029] ss:$2 sm:$0xff] %v1003
  %1081 = vst [vmem:[%s1031] ss:$2 sm:$0xff] %v942
  %1082 = vst [vmem:[%s1033] ss:$2 sm:$0xff] %v1004
  %v1083 = vld.sshfl [vmem:[#allocation1] sm:$0xff pattern:$0x75316420]
  %v1084 = vld.sshfl [vmem:[#allocation1 + $0x10] sm:$0xff pattern:$0x75316420]
  %v1085 = vld.sshfl [vmem:[#allocation1 + $0x20] sm:$0xff pattern:$0x75316420]
  %v1086 = vld.sshfl [vmem:[#allocation1 + $0x30] sm:$0xff pattern:$0x75316420]
  %1087 = vst [vmem:[#allocation1] ss:$2 sm:$0xff] %v943
  %1088 = vst [vmem:[%s1021] ss:$2 sm:$0xff] %v1005
  %1089 = vst [vmem:[%s1023] ss:$2 sm:$0xff] %v944
  %1090 = vst [vmem:[%s1025] ss:$2 sm:$0xff] %v1006
  %1091 = vst [vmem:[%s1027] ss:$2 sm:$0xff] %v945
  %1092 = vst [vmem:[%s1029] ss:$2 sm:$0xff] %v946
  %1093 = vst [vmem:[%s1031] ss:$2 sm:$0xff] %v1007
  %1094 = vst [vmem:[%s1033] ss:$2 sm:$0xff] %v947
  %v1095 = vld.sshfl [vmem:[#allocation1] sm:$0xff pattern:$0x75316420]
  %v1096 = vld.sshfl [vmem:[#allocation1 + $0x10] sm:$0xff pattern:$0x75316420]
  %v1097 = vld.sshfl [vmem:[#allocation1 + $0x20] sm:$0xff pattern:$0x75316420]
  %v1098 = vld.sshfl [vmem:[#allocation1 + $0x30] sm:$0xff pattern:$0x75316420]
  %1099 = vst [vmem:[#allocation1] ss:$2 sm:$0xff] %v1008
  %1100 = vst [vmem:[%s1021] ss:$2 sm:$0xff] %v948
  %1101 = vst [vmem:[%s1023] ss:$2 sm:$0xff] %v1009
  %1102 = vst [vmem:[%s1025] ss:$2 sm:$0xff] %v949
  %1103 = vst [vmem:[%s1027] ss:$2 sm:$0xff] %v1010
  %1104 = vst [vmem:[%s1029] ss:$2 sm:$0xff] %v950
  %1105 = vst [vmem:[%s1031] ss:$2 sm:$0xff] %v1011
  %1106 = vst [vmem:[%s1033] ss:$2 sm:$0xff] %v951
  %v1107 = vld.sshfl [vmem:[#allocation1] sm:$0xff pattern:$0x75316420]
  %v1108 = vld.sshfl [vmem:[#allocation1 + $0x10] sm:$0xff pattern:$0x75316420]
  %v1109 = vld.sshfl [vmem:[#allocation1 + $0x20] sm:$0xff pattern:$0x75316420]
  %v1110 = vld.sshfl [vmem:[#allocation1 + $0x30] sm:$0xff pattern:$0x75316420]
  %1111 = vst [vmem:[#allocation1] ss:$2 sm:$0xff] %v1012
  %1112 = vst [vmem:[%s1021] ss:$2 sm:$0xff] %v952
  %1113 = vst [vmem:[%s1023] ss:$2 sm:$0xff] %v1013
  %1114 = vst [vmem:[%s1025] ss:$2 sm:$0xff] %v953
  %v1115 = vld.sshfl [vmem:[#allocation1] sm:$0xff pattern:$0x75316420]
  %v1116 = vld.sshfl [vmem:[#allocation1 + $0x10] sm:$0xff pattern:$0x75316420]
  %vm1117 = vcmask 121856
  %v1118 = vsel %vm1117, %v1035, 0
  %v1120 = vsel %vm1117, %v1036, 0
  %v1122 = vsel %vm1117, %v1037, 0
  %v1124 = vsel %vm1117, %v1038, 0
  %v1126 = vsel %vm1117, %v1047, 0
  %v1128 = vsel %vm1117, %v1048, 0
  %v1130 = vsel %vm1117, %v1049, 0
  %v1132 = vsel %vm1117, %v1050, 0
  %v1134 = vsel %vm1117, %v1059, 0
  %v1136 = vsel %vm1117, %v1060, 0
  %v1138 = vsel %vm1117, %v1061, 0
  %v1140 = vsel %vm1117, %v1062, 0
  %v1142 = vsel %vm1117, %v1071, 0
  %v1144 = vsel %vm1117, %v1072, 0
  %v1146 = vsel %vm1117, %v1073, 0
  %v1148 = vsel %vm1117, %v1074, 0
  %v1150 = vsel %vm1117, %v1083, 0
  %v1152 = vsel %vm1117, %v1084, 0
  %v1154 = vsel %vm1117, %v1085, 0
  %v1156 = vsel %vm1117, %v1086, 0
  %v1158 = vsel %vm1117, %v1095, 0
  %v1160 = vsel %vm1117, %v1096, 0
  %v1162 = vsel %vm1117, %v1097, 0
  %v1164 = vsel %vm1117, %v1098, 0
  %v1166 = vsel %vm1117, %v1107, 0
  %v1168 = vsel %vm1117, %v1108, 0
  %v1170 = vsel %vm1117, %v1109, 0
  %v1172 = vsel %vm1117, %v1110, 0
  %v1174 = vsel %vm1117, %v1115, 0
  %v1176 = vsel %vm1117, %v1116, 0
  %v1179 = vsel %vm194, %v1015, 0
  %1181 = vmatpush.msra.mxu0 0.0
  %1182 = vmatpush.msra.mxu0 0.0
  %1183 = vmatpush.msra.mxu0 0.0
  %1184 = vmatpush.msra.mxu0 0.0
  %1185 = vmatpush.msra.mxu0 0.0
  %1186 = vmatpush.msra.mxu0 0.0
  %1187 = vmatpush.msra.mxu0 0.0
  %1188 = vmatpush.msra.mxu0 0.0
  %1189 = vmatpush.msra.mxu0 0.0
  %1190 = vmatpush.msra.mxu0 0.0
  %1191 = vmatpush.msra.mxu0 0.0
  %1192 = vmatpush.msra.mxu0 0.0
  %1193 = vmatpush.msra.mxu0 0.0
  %1194 = vmatpush.msra.mxu0 0.0
  %1195 = vmatpush.msra.mxu0 %v1179
  %1196 = vmatpush.msra.mxu0 %v1014
  %1197 = vmatmul.f32.gmra.mxu0 %v1118
  %v1198 = vpop.f32.mrf.mxu0
  %v1199 = vadd.f32 %v1018, %v1198
  %1200 = vmatmul.f32.gmra.mxu0 %v1120
  %v1201 = vpop.f32.mrf.mxu0
  %v1202 = vadd.f32 %v1018, %v1201
  %1203 = vmatmul.f32.gmra.mxu0 %v1122
  %v1204 = vpop.f32.mrf.mxu0
  %v1205 = vadd.f32 %v1018, %v1204
  %1206 = vmatmul.f32.gmra.mxu0 %v1124
  %v1207 = vpop.f32.mrf.mxu0
  %v1208 = vadd.f32 %v1018, %v1207
  %1209 = vmatmul.f32.gmra.mxu0 %v1126
  %v1210 = vpop.f32.mrf.mxu0
  %v1211 = vadd.f32 %v1018, %v1210
  %1212 = vmatmul.f32.gmra.mxu0 %v1128
  %v1213 = vpop.f32.mrf.mxu0
  %v1214 = vadd.f32 %v1018, %v1213
  %1215 = vmatmul.f32.gmra.mxu0 %v1130
  %v1216 = vpop.f32.mrf.mxu0
  %v1217 = vadd.f32 %v1018, %v1216
  %1218 = vmatmul.f32.gmra.mxu0 %v1132
  %v1219 = vpop.f32.mrf.mxu0
  %v1220 = vadd.f32 %v1018, %v1219
  %1221 = vmatmul.f32.gmra.mxu0 %v1134
  %v1222 = vpop.f32.mrf.mxu0
  %v1223 = vadd.f32 %v1018, %v1222
  %1224 = vmatmul.f32.gmra.mxu0 %v1136
  %v1225 = vpop.f32.mrf.mxu0
  %v1226 = vadd.f32 %v1018, %v1225
  %1227 = vmatmul.f32.gmra.mxu0 %v1138
  %v1228 = vpop.f32.mrf.mxu0
  %v1229 = vadd.f32 %v1018, %v1228
  %1230 = vmatmul.f32.gmra.mxu0 %v1140
  %v1231 = vpop.f32.mrf.mxu0
  %v1232 = vadd.f32 %v1018, %v1231
  %1233 = vmatmul.f32.gmra.mxu0 %v1142
  %v1234 = vpop.f32.mrf.mxu0
  %v1235 = vadd.f32 %v1018, %v1234
  %1236 = vmatmul.f32.gmra.mxu0 %v1144
  %v1237 = vpop.f32.mrf.mxu0
  %v1238 = vadd.f32 %v1018, %v1237
  %1239 = vmatmul.f32.gmra.mxu0 %v1146
  %v1240 = vpop.f32.mrf.mxu0
  %v1241 = vadd.f32 %v1018, %v1240
  %1242 = vmatmul.f32.gmra.mxu0 %v1148
  %v1243 = vpop.f32.mrf.mxu0
  %v1244 = vadd.f32 %v1018, %v1243
  %1245 = vmatmul.f32.gmra.mxu0 %v1150
  %v1246 = vpop.f32.mrf.mxu0
  %v1247 = vadd.f32 %v1018, %v1246
  %1248 = vmatmul.f32.gmra.mxu0 %v1152
  %v1249 = vpop.f32.mrf.mxu0
  %v1250 = vadd.f32 %v1018, %v1249
  %1251 = vmatmul.f32.gmra.mxu0 %v1154
  %v1252 = vpop.f32.mrf.mxu0
  %v1253 = vadd.f32 %v1018, %v1252
  %1254 = vmatmul.f32.gmra.mxu0 %v1156
  %v1255 = vpop.f32.mrf.mxu0
  %v1256 = vadd.f32 %v1018, %v1255
  %1257 = vmatmul.f32.gmra.mxu0 %v1158
  %v1258 = vpop.f32.mrf.mxu0
  %v1259 = vadd.f32 %v1018, %v1258
  %1260 = vmatmul.f32.gmra.mxu0 %v1160
  %v1261 = vpop.f32.mrf.mxu0
  %v1262 = vadd.f32 %v1018, %v1261
  %1263 = vmatmul.f32.gmra.mxu0 %v1162
  %v1264 = vpop.f32.mrf.mxu0
  %v1265 = vadd.f32 %v1018, %v1264
  %1266 = vmatmul.f32.gmra.mxu0 %v1164
  %v1267 = vpop.f32.mrf.mxu0
  %v1268 = vadd.f32 %v1018, %v1267
  %1269 = vmatmul.f32.gmra.mxu0 %v1166
  %v1270 = vpop.f32.mrf.mxu0
  %v1271 = vadd.f32 %v1018, %v1270
  %1272 = vmatmul.f32.gmra.mxu0 %v1168
  %v1273 = vpop.f32.mrf.mxu0
  %v1274 = vadd.f32 %v1018, %v1273
  %1275 = vmatmul.f32.gmra.mxu0 %v1170
  %v1276 = vpop.f32.mrf.mxu0
  %v1277 = vadd.f32 %v1018, %v1276
  %1278 = vmatmul.f32.gmra.mxu0 %v1172
  %v1279 = vpop.f32.mrf.mxu0
  %v1280 = vadd.f32 %v1018, %v1279
  %1281 = vmatmul.f32.gmra.mxu0 %v1174
  %v1282 = vpop.f32.mrf.mxu0
  %v1283 = vadd.f32 %v1018, %v1282
  %1284 = vmatmul.f32.gmra.mxu0 %v1176
  %v1285 = vpop.f32.mrf.mxu0
  %v1286 = vadd.f32 %v1018, %v1285
  %1287 = vdwg.mxu0
  %v1288 = vmax.f32 %v1199, 0.0
  %v1289 = vmax.f32 %v1202, 0.0
  %v1290 = vmax.f32 %v1205, 0.0
  %v1291 = vmax.f32 %v1208, 0.0
  %v1292 = vmax.f32 %v1211, 0.0
  %v1293 = vmax.f32 %v1214, 0.0
  %v1294 = vmax.f32 %v1217, 0.0
  %v1295 = vmax.f32 %v1220, 0.0
  %v1296 = vmax.f32 %v1223, 0.0
  %v1297 = vmax.f32 %v1226, 0.0
  %v1298 = vmax.f32 %v1229, 0.0
  %v1299 = vmax.f32 %v1232, 0.0
  %v1300 = vmax.f32 %v1235, 0.0
  %v1301 = vmax.f32 %v1238, 0.0
  %v1302 = vmax.f32 %v1241, 0.0
  %v1303 = vmax.f32 %v1244, 0.0
  %v1304 = vmax.f32 %v1247, 0.0
  %v1305 = vmax.f32 %v1250, 0.0
  %v1306 = vmax.f32 %v1253, 0.0
  %v1307 = vmax.f32 %v1256, 0.0
  %v1308 = vmax.f32 %v1259, 0.0
  %v1309 = vmax.f32 %v1262, 0.0
  %v1310 = vmax.f32 %v1265, 0.0
  %v1311 = vmax.f32 %v1268, 0.0
  %v1312 = vmax.f32 %v1271, 0.0
  %v1313 = vmax.f32 %v1274, 0.0
  %v1314 = vmax.f32 %v1277, 0.0
  %v1315 = vmax.f32 %v1280, 0.0
  %v1316 = vmax.f32 %v1283, 0.0
  %v1317 = vmax.f32 %v1286, 0.0
  %v1348 = vrot.slane %v1288, 2
  %v1349 = vrot.slane %v1288, 4
  %v1350 = vrot.slane %v1288, 6
  %v1351 = vrot.slane %v1289, 2
  %v1352 = vrot.slane %v1289, 4
  %v1353 = vrot.slane %v1289, 6
  %v1354 = vrot.slane %v1290, 2
  %v1355 = vrot.slane %v1290, 4
  %v1356 = vrot.slane %v1290, 6
  %v1357 = vrot.slane %v1291, 2
  %v1358 = vrot.slane %v1291, 4
  %v1359 = vrot.slane %v1291, 6
  %v1360 = vrot.slane %v1292, 2
  %v1361 = vrot.slane %v1292, 4
  %v1362 = vrot.slane %v1292, 6
  %v1363 = vrot.slane %v1293, 2
  %v1364 = vrot.slane %v1293, 4
  %v1365 = vrot.slane %v1293, 6
  %v1366 = vrot.slane %v1294, 2
  %v1367 = vrot.slane %v1294, 4
  %v1368 = vrot.slane %v1294, 6
  %v1369 = vrot.slane %v1295, 2
  %v1370 = vrot.slane %v1295, 4
  %v1371 = vrot.slane %v1295, 6
  %v1372 = vrot.slane %v1296, 2
  %v1373 = vrot.slane %v1296, 4
  %v1374 = vrot.slane %v1296, 6
  %v1375 = vrot.slane %v1297, 2
  %v1376 = vrot.slane %v1297, 4
  %v1377 = vrot.slane %v1297, 6
  %v1378 = vrot.slane %v1298, 2
  %v1379 = vrot.slane %v1298, 4
  %v1380 = vrot.slane %v1298, 6
  %v1381 = vrot.slane %v1299, 2
  %v1382 = vrot.slane %v1299, 4
  %v1383 = vrot.slane %v1299, 6
  %v1384 = vrot.slane %v1300, 2
  %v1385 = vrot.slane %v1300, 4
  %v1386 = vrot.slane %v1300, 6
  %v1387 = vrot.slane %v1301, 2
  %v1388 = vrot.slane %v1301, 4
  %v1389 = vrot.slane %v1301, 6
  %v1390 = vrot.slane %v1302, 2
  %v1391 = vrot.slane %v1302, 4
  %v1392 = vrot.slane %v1302, 6
  %v1393 = vrot.slane %v1303, 2
  %v1394 = vrot.slane %v1303, 4
  %v1395 = vrot.slane %v1303, 6
  %v1396 = vrot.slane %v1304, 2
  %v1397 = vrot.slane %v1304, 4
  %v1398 = vrot.slane %v1304, 6
  %v1399 = vrot.slane %v1305, 2
  %v1400 = vrot.slane %v1305, 4
  %v1401 = vrot.slane %v1305, 6
  %v1402 = vrot.slane %v1306, 2
  %v1403 = vrot.slane %v1306, 4
  %v1404 = vrot.slane %v1306, 6
  %v1405 = vrot.slane %v1307, 2
  %v1406 = vrot.slane %v1307, 4
  %v1407 = vrot.slane %v1307, 6
  %v1408 = vrot.slane %v1308, 2
  %v1409 = vrot.slane %v1308, 4
  %v1410 = vrot.slane %v1308, 6
  %v1411 = vrot.slane %v1309, 2
  %v1412 = vrot.slane %v1309, 4
  %v1413 = vrot.slane %v1309, 6
  %v1414 = vrot.slane %v1310, 2
  %v1415 = vrot.slane %v1310, 4
  %v1416 = vrot.slane %v1310, 6
  %v1417 = vrot.slane %v1311, 2
  %v1418 = vrot.slane %v1311, 4
  %v1419 = vrot.slane %v1311, 6
  %v1420 = vrot.slane %v1312, 2
  %v1421 = vrot.slane %v1312, 4
  %v1422 = vrot.slane %v1312, 6
  %v1423 = vrot.slane %v1313, 2
  %v1424 = vrot.slane %v1313, 4
  %v1425 = vrot.slane %v1313, 6
  %v1426 = vrot.slane %v1314, 2
  %v1427 = vrot.slane %v1314, 4
  %v1428 = vrot.slane %v1314, 6
  %v1429 = vrot.slane %v1315, 2
  %v1430 = vrot.slane %v1315, 4
  %v1431 = vrot.slane %v1315, 6
  %v1432 = vrot.slane %v1316, 2
  %v1433 = vrot.slane %v1316, 4
  %v1434 = vrot.slane %v1316, 6
  %v1435 = vrot.slane %v1317, 2
  %v1436 = vrot.slane %v1317, 4
  %v1437 = vrot.slane %v1317, 6
  %vm1528 = vcmask 58368
  %v1529 = vsel %vm1528, %v1288, -inf
  %v1530 = vrot.slane %v1529, 4
  %v1531 = vmax.f32 %v1529, %v1530
  %v1532 = vrot.slane %v1531, 2
  %v1533 = vmax.f32 %v1531, %v1532
  %v1534 = vrot.slane %v1533, 1
  %v1535 = vmax.f32 %v1533, %v1534
  %v1536 = vsel %vm1528, %v1348, -inf
  %v1537 = vrot.slane %v1536, 4
  %v1538 = vmax.f32 %v1536, %v1537
  %v1539 = vrot.slane %v1538, 2
  %v1540 = vmax.f32 %v1538, %v1539
  %v1541 = vrot.slane %v1540, 1
  %v1542 = vmax.f32 %v1540, %v1541
  %v1543 = vsel %vm1528, %v1349, -inf
  %v1544 = vrot.slane %v1543, 4
  %v1545 = vmax.f32 %v1543, %v1544
  %v1546 = vrot.slane %v1545, 2
  %v1547 = vmax.f32 %v1545, %v1546
  %v1548 = vrot.slane %v1547, 1
  %v1549 = vmax.f32 %v1547, %v1548
  %v1550 = vsel %vm1528, %v1350, -inf
  %v1551 = vrot.slane %v1550, 4
  %v1552 = vmax.f32 %v1550, %v1551
  %v1553 = vrot.slane %v1552, 2
  %v1554 = vmax.f32 %v1552, %v1553
  %v1555 = vrot.slane %v1554, 1
  %v1556 = vmax.f32 %v1554, %v1555
  %v1557 = vsel %vm1528, %v1289, -inf
  %v1558 = vrot.slane %v1557, 4
  %v1559 = vmax.f32 %v1557, %v1558
  %v1560 = vrot.slane %v1559, 2
  %v1561 = vmax.f32 %v1559, %v1560
  %v1562 = vrot.slane %v1561, 1
  %v1563 = vmax.f32 %v1561, %v1562
  %v1564 = vsel %vm1528, %v1351, -inf
  %v1565 = vrot.slane %v1564, 4
  %v1566 = vmax.f32 %v1564, %v1565
  %v1567 = vrot.slane %v1566, 2
  %v1568 = vmax.f32 %v1566, %v1567
  %v1569 = vrot.slane %v1568, 1
  %v1570 = vmax.f32 %v1568, %v1569
  %v1571 = vsel %vm1528, %v1352, -inf
  %v1572 = vrot.slane %v1571, 4
  %v1573 = vmax.f32 %v1571, %v1572
  %v1574 = vrot.slane %v1573, 2
  %v1575 = vmax.f32 %v1573, %v1574
  %v1576 = vrot.slane %v1575, 1
  %v1577 = vmax.f32 %v1575, %v1576
  %v1578 = vsel %vm1528, %v1353, -inf
  %v1579 = vrot.slane %v1578, 4
  %v1580 = vmax.f32 %v1578, %v1579
  %v1581 = vrot.slane %v1580, 2
  %v1582 = vmax.f32 %v1580, %v1581
  %v1583 = vrot.slane %v1582, 1
  %v1584 = vmax.f32 %v1582, %v1583
  %v1585 = vsel %vm1528, %v1290, -inf
  %v1586 = vrot.slane %v1585, 4
  %v1587 = vmax.f32 %v1585, %v1586
  %v1588 = vrot.slane %v1587, 2
  %v1589 = vmax.f32 %v1587, %v1588
  %v1590 = vrot.slane %v1589, 1
  %v1591 = vmax.f32 %v1589, %v1590
  %v1592 = vsel %vm1528, %v1354, -inf
  %v1593 = vrot.slane %v1592, 4
  %v1594 = vmax.f32 %v1592, %v1593
  %v1595 = vrot.slane %v1594, 2
  %v1596 = vmax.f32 %v1594, %v1595
  %v1597 = vrot.slane %v1596, 1
  %v1598 = vmax.f32 %v1596, %v1597
  %v1599 = vsel %vm1528, %v1355, -inf
  %v1600 = vrot.slane %v1599, 4
  %v1601 = vmax.f32 %v1599, %v1600
  %v1602 = vrot.slane %v1601, 2
  %v1603 = vmax.f32 %v1601, %v1602
  %v1604 = vrot.slane %v1603, 1
  %v1605 = vmax.f32 %v1603, %v1604
  %v1606 = vsel %vm1528, %v1356, -inf
  %v1607 = vrot.slane %v1606, 4
  %v1608 = vmax.f32 %v1606, %v1607
  %v1609 = vrot.slane %v1608, 2
  %v1610 = vmax.f32 %v1608, %v1609
  %v1611 = vrot.slane %v1610, 1
  %v1612 = vmax.f32 %v1610, %v1611
  %v1613 = vsel %vm1528, %v1291, -inf
  %v1614 = vrot.slane %v1613, 4
  %v1615 = vmax.f32 %v1613, %v1614
  %v1616 = vrot.slane %v1615, 2
  %v1617 = vmax.f32 %v1615, %v1616
  %v1618 = vrot.slane %v1617, 1
  %v1619 = vmax.f32 %v1617, %v1618
  %v1620 = vsel %vm1528, %v1357, -inf
  %v1621 = vrot.slane %v1620, 4
  %v1622 = vmax.f32 %v1620, %v1621
  %v1623 = vrot.slane %v1622, 2
  %v1624 = vmax.f32 %v1622, %v1623
  %v1625 = vrot.slane %v1624, 1
  %v1626 = vmax.f32 %v1624, %v1625
  %v1627 = vsel %vm1528, %v1358, -inf
  %v1628 = vrot.slane %v1627, 4
  %v1629 = vmax.f32 %v1627, %v1628
  %v1630 = vrot.slane %v1629, 2
  %v1631 = vmax.f32 %v1629, %v1630
  %v1632 = vrot.slane %v1631, 1
  %v1633 = vmax.f32 %v1631, %v1632
  %v1634 = vsel %vm1528, %v1359, -inf
  %v1635 = vrot.slane %v1634, 4
  %v1636 = vmax.f32 %v1634, %v1635
  %v1637 = vrot.slane %v1636, 2
  %v1638 = vmax.f32 %v1636, %v1637
  %v1639 = vrot.slane %v1638, 1
  %v1640 = vmax.f32 %v1638, %v1639
  %v1641 = vsel %vm1528, %v1292, -inf
  %v1642 = vrot.slane %v1641, 4
  %v1643 = vmax.f32 %v1641, %v1642
  %v1644 = vrot.slane %v1643, 2
  %v1645 = vmax.f32 %v1643, %v1644
  %v1646 = vrot.slane %v1645, 1
  %v1647 = vmax.f32 %v1645, %v1646
  %v1648 = vsel %vm1528, %v1360, -inf
  %v1649 = vrot.slane %v1648, 4
  %v1650 = vmax.f32 %v1648, %v1649
  %v1651 = vrot.slane %v1650, 2
  %v1652 = vmax.f32 %v1650, %v1651
  %v1653 = vrot.slane %v1652, 1
  %v1654 = vmax.f32 %v1652, %v1653
  %v1655 = vsel %vm1528, %v1361, -inf
  %v1656 = vrot.slane %v1655, 4
  %v1657 = vmax.f32 %v1655, %v1656
  %v1658 = vrot.slane %v1657, 2
  %v1659 = vmax.f32 %v1657, %v1658
  %v1660 = vrot.slane %v1659, 1
  %v1661 = vmax.f32 %v1659, %v1660
  %v1662 = vsel %vm1528, %v1362, -inf
  %v1663 = vrot.slane %v1662, 4
  %v1664 = vmax.f32 %v1662, %v1663
  %v1665 = vrot.slane %v1664, 2
  %v1666 = vmax.f32 %v1664, %v1665
  %v1667 = vrot.slane %v1666, 1
  %v1668 = vmax.f32 %v1666, %v1667
  %v1669 = vsel %vm1528, %v1293, -inf
  %v1670 = vrot.slane %v1669, 4
  %v1671 = vmax.f32 %v1669, %v1670
  %v1672 = vrot.slane %v1671, 2
  %v1673 = vmax.f32 %v1671, %v1672
  %v1674 = vrot.slane %v1673, 1
  %v1675 = vmax.f32 %v1673, %v1674
  %v1676 = vsel %vm1528, %v1363, -inf
  %v1677 = vrot.slane %v1676, 4
  %v1678 = vmax.f32 %v1676, %v1677
  %v1679 = vrot.slane %v1678, 2
  %v1680 = vmax.f32 %v1678, %v1679
  %v1681 = vrot.slane %v1680, 1
  %v1682 = vmax.f32 %v1680, %v1681
  %v1683 = vsel %vm1528, %v1364, -inf
  %v1684 = vrot.slane %v1683, 4
  %v1685 = vmax.f32 %v1683, %v1684
  %v1686 = vrot.slane %v1685, 2
  %v1687 = vmax.f32 %v1685, %v1686
  %v1688 = vrot.slane %v1687, 1
  %v1689 = vmax.f32 %v1687, %v1688
  %v1690 = vsel %vm1528, %v1365, -inf
  %v1691 = vrot.slane %v1690, 4
  %v1692 = vmax.f32 %v1690, %v1691
  %v1693 = vrot.slane %v1692, 2
  %v1694 = vmax.f32 %v1692, %v1693
  %v1695 = vrot.slane %v1694, 1
  %v1696 = vmax.f32 %v1694, %v1695
  %v1697 = vsel %vm1528, %v1294, -inf
  %v1698 = vrot.slane %v1697, 4
  %v1699 = vmax.f32 %v1697, %v1698
  %v1700 = vrot.slane %v1699, 2
  %v1701 = vmax.f32 %v1699, %v1700
  %v1702 = vrot.slane %v1701, 1
  %v1703 = vmax.f32 %v1701, %v1702
  %v1704 = vsel %vm1528, %v1366, -inf
  %v1705 = vrot.slane %v1704, 4
  %v1706 = vmax.f32 %v1704, %v1705
  %v1707 = vrot.slane %v1706, 2
  %v1708 = vmax.f32 %v1706, %v1707
  %v1709 = vrot.slane %v1708, 1
  %v1710 = vmax.f32 %v1708, %v1709
  %v1711 = vsel %vm1528, %v1367, -inf
  %v1712 = vrot.slane %v1711, 4
  %v1713 = vmax.f32 %v1711, %v1712
  %v1714 = vrot.slane %v1713, 2
  %v1715 = vmax.f32 %v1713, %v1714
  %v1716 = vrot.slane %v1715, 1
  %v1717 = vmax.f32 %v1715, %v1716
  %v1718 = vsel %vm1528, %v1368, -inf
  %v1719 = vrot.slane %v1718, 4
  %v1720 = vmax.f32 %v1718, %v1719
  %v1721 = vrot.slane %v1720, 2
  %v1722 = vmax.f32 %v1720, %v1721
  %v1723 = vrot.slane %v1722, 1
  %v1724 = vmax.f32 %v1722, %v1723
  %v1725 = vsel %vm1528, %v1295, -inf
  %v1726 = vrot.slane %v1725, 4
  %v1727 = vmax.f32 %v1725, %v1726
  %v1728 = vrot.slane %v1727, 2
  %v1729 = vmax.f32 %v1727, %v1728
  %v1730 = vrot.slane %v1729, 1
  %v1731 = vmax.f32 %v1729, %v1730
  %v1732 = vsel %vm1528, %v1369, -inf
  %v1733 = vrot.slane %v1732, 4
  %v1734 = vmax.f32 %v1732, %v1733
  %v1735 = vrot.slane %v1734, 2
  %v1736 = vmax.f32 %v1734, %v1735
  %v1737 = vrot.slane %v1736, 1
  %v1738 = vmax.f32 %v1736, %v1737
  %v1739 = vsel %vm1528, %v1370, -inf
  %v1740 = vrot.slane %v1739, 4
  %v1741 = vmax.f32 %v1739, %v1740
  %v1742 = vrot.slane %v1741, 2
  %v1743 = vmax.f32 %v1741, %v1742
  %v1744 = vrot.slane %v1743, 1
  %v1745 = vmax.f32 %v1743, %v1744
  %v1746 = vsel %vm1528, %v1371, -inf
  %v1747 = vrot.slane %v1746, 4
  %v1748 = vmax.f32 %v1746, %v1747
  %v1749 = vrot.slane %v1748, 2
  %v1750 = vmax.f32 %v1748, %v1749
  %v1751 = vrot.slane %v1750, 1
  %v1752 = vmax.f32 %v1750, %v1751
  %v1753 = vsel %vm1528, %v1296, -inf
  %v1754 = vrot.slane %v1753, 4
  %v1755 = vmax.f32 %v1753, %v1754
  %v1756 = vrot.slane %v1755, 2
  %v1757 = vmax.f32 %v1755, %v1756
  %v1758 = vrot.slane %v1757, 1
  %v1759 = vmax.f32 %v1757, %v1758
  %v1760 = vsel %vm1528, %v1372, -inf
  %v1761 = vrot.slane %v1760, 4
  %v1762 = vmax.f32 %v1760, %v1761
  %v1763 = vrot.slane %v1762, 2
  %v1764 = vmax.f32 %v1762, %v1763
  %v1765 = vrot.slane %v1764, 1
  %v1766 = vmax.f32 %v1764, %v1765
  %v1767 = vsel %vm1528, %v1373, -inf
  %v1768 = vrot.slane %v1767, 4
  %v1769 = vmax.f32 %v1767, %v1768
  %v1770 = vrot.slane %v1769, 2
  %v1771 = vmax.f32 %v1769, %v1770
  %v1772 = vrot.slane %v1771, 1
  %v1773 = vmax.f32 %v1771, %v1772
  %v1774 = vsel %vm1528, %v1374, -inf
  %v1775 = vrot.slane %v1774, 4
  %v1776 = vmax.f32 %v1774, %v1775
  %v1777 = vrot.slane %v1776, 2
  %v1778 = vmax.f32 %v1776, %v1777
  %v1779 = vrot.slane %v1778, 1
  %v1780 = vmax.f32 %v1778, %v1779
  %v1781 = vsel %vm1528, %v1297, -inf
  %v1782 = vrot.slane %v1781, 4
  %v1783 = vmax.f32 %v1781, %v1782
  %v1784 = vrot.slane %v1783, 2
  %v1785 = vmax.f32 %v1783, %v1784
  %v1786 = vrot.slane %v1785, 1
  %v1787 = vmax.f32 %v1785, %v1786
  %v1788 = vsel %vm1528, %v1375, -inf
  %v1789 = vrot.slane %v1788, 4
  %v1790 = vmax.f32 %v1788, %v1789
  %v1791 = vrot.slane %v1790, 2
  %v1792 = vmax.f32 %v1790, %v1791
  %v1793 = vrot.slane %v1792, 1
  %v1794 = vmax.f32 %v1792, %v1793
  %v1795 = vsel %vm1528, %v1376, -inf
  %v1796 = vrot.slane %v1795, 4
  %v1797 = vmax.f32 %v1795, %v1796
  %v1798 = vrot.slane %v1797, 2
  %v1799 = vmax.f32 %v1797, %v1798
  %v1800 = vrot.slane %v1799, 1
  %v1801 = vmax.f32 %v1799, %v1800
  %v1802 = vsel %vm1528, %v1377, -inf
  %v1803 = vrot.slane %v1802, 4
  %v1804 = vmax.f32 %v1802, %v1803
  %v1805 = vrot.slane %v1804, 2
  %v1806 = vmax.f32 %v1804, %v1805
  %v1807 = vrot.slane %v1806, 1
  %v1808 = vmax.f32 %v1806, %v1807
  %v1809 = vsel %vm1528, %v1298, -inf
  %v1810 = vrot.slane %v1809, 4
  %v1811 = vmax.f32 %v1809, %v1810
  %v1812 = vrot.slane %v1811, 2
  %v1813 = vmax.f32 %v1811, %v1812
  %v1814 = vrot.slane %v1813, 1
  %v1815 = vmax.f32 %v1813, %v1814
  %v1816 = vsel %vm1528, %v1378, -inf
  %v1817 = vrot.slane %v1816, 4
  %v1818 = vmax.f32 %v1816, %v1817
  %v1819 = vrot.slane %v1818, 2
  %v1820 = vmax.f32 %v1818, %v1819
  %v1821 = vrot.slane %v1820, 1
  %v1822 = vmax.f32 %v1820, %v1821
  %v1823 = vsel %vm1528, %v1379, -inf
  %v1824 = vrot.slane %v1823, 4
  %v1825 = vmax.f32 %v1823, %v1824
  %v1826 = vrot.slane %v1825, 2
  %v1827 = vmax.f32 %v1825, %v1826
  %v1828 = vrot.slane %v1827, 1
  %v1829 = vmax.f32 %v1827, %v1828
  %v1830 = vsel %vm1528, %v1380, -inf
  %v1831 = vrot.slane %v1830, 4
  %v1832 = vmax.f32 %v1830, %v1831
  %v1833 = vrot.slane %v1832, 2
  %v1834 = vmax.f32 %v1832, %v1833
  %v1835 = vrot.slane %v1834, 1
  %v1836 = vmax.f32 %v1834, %v1835
  %v1837 = vsel %vm1528, %v1299, -inf
  %v1838 = vrot.slane %v1837, 4
  %v1839 = vmax.f32 %v1837, %v1838
  %v1840 = vrot.slane %v1839, 2
  %v1841 = vmax.f32 %v1839, %v1840
  %v1842 = vrot.slane %v1841, 1
  %v1843 = vmax.f32 %v1841, %v1842
  %v1844 = vsel %vm1528, %v1381, -inf
  %v1845 = vrot.slane %v1844, 4
  %v1846 = vmax.f32 %v1844, %v1845
  %v1847 = vrot.slane %v1846, 2
  %v1848 = vmax.f32 %v1846, %v1847
  %v1849 = vrot.slane %v1848, 1
  %v1850 = vmax.f32 %v1848, %v1849
  %v1851 = vsel %vm1528, %v1382, -inf
  %v1852 = vrot.slane %v1851, 4
  %v1853 = vmax.f32 %v1851, %v1852
  %v1854 = vrot.slane %v1853, 2
  %v1855 = vmax.f32 %v1853, %v1854
  %v1856 = vrot.slane %v1855, 1
  %v1857 = vmax.f32 %v1855, %v1856
  %v1858 = vsel %vm1528, %v1383, -inf
  %v1859 = vrot.slane %v1858, 4
  %v1860 = vmax.f32 %v1858, %v1859
  %v1861 = vrot.slane %v1860, 2
  %v1862 = vmax.f32 %v1860, %v1861
  %v1863 = vrot.slane %v1862, 1
  %v1864 = vmax.f32 %v1862, %v1863
  %v1865 = vsel %vm1528, %v1300, -inf
  %v1866 = vrot.slane %v1865, 4
  %v1867 = vmax.f32 %v1865, %v1866
  %v1868 = vrot.slane %v1867, 2
  %v1869 = vmax.f32 %v1867, %v1868
  %v1870 = vrot.slane %v1869, 1
  %v1871 = vmax.f32 %v1869, %v1870
  %v1872 = vsel %vm1528, %v1384, -inf
  %v1873 = vrot.slane %v1872, 4
  %v1874 = vmax.f32 %v1872, %v1873
  %v1875 = vrot.slane %v1874, 2
  %v1876 = vmax.f32 %v1874, %v1875
  %v1877 = vrot.slane %v1876, 1
  %v1878 = vmax.f32 %v1876, %v1877
  %v1879 = vsel %vm1528, %v1385, -inf
  %v1880 = vrot.slane %v1879, 4
  %v1881 = vmax.f32 %v1879, %v1880
  %v1882 = vrot.slane %v1881, 2
  %v1883 = vmax.f32 %v1881, %v1882
  %v1884 = vrot.slane %v1883, 1
  %v1885 = vmax.f32 %v1883, %v1884
  %v1886 = vsel %vm1528, %v1386, -inf
  %v1887 = vrot.slane %v1886, 4
  %v1888 = vmax.f32 %v1886, %v1887
  %v1889 = vrot.slane %v1888, 2
  %v1890 = vmax.f32 %v1888, %v1889
  %v1891 = vrot.slane %v1890, 1
  %v1892 = vmax.f32 %v1890, %v1891
  %v1893 = vsel %vm1528, %v1301, -inf
  %v1894 = vrot.slane %v1893, 4
  %v1895 = vmax.f32 %v1893, %v1894
  %v1896 = vrot.slane %v1895, 2
  %v1897 = vmax.f32 %v1895, %v1896
  %v1898 = vrot.slane %v1897, 1
  %v1899 = vmax.f32 %v1897, %v1898
  %v1900 = vsel %vm1528, %v1387, -inf
  %v1901 = vrot.slane %v1900, 4
  %v1902 = vmax.f32 %v1900, %v1901
  %v1903 = vrot.slane %v1902, 2
  %v1904 = vmax.f32 %v1902, %v1903
  %v1905 = vrot.slane %v1904, 1
  %v1906 = vmax.f32 %v1904, %v1905
  %v1907 = vsel %vm1528, %v1388, -inf
  %v1908 = vrot.slane %v1907, 4
  %v1909 = vmax.f32 %v1907, %v1908
  %v1910 = vrot.slane %v1909, 2
  %v1911 = vmax.f32 %v1909, %v1910
  %v1912 = vrot.slane %v1911, 1
  %v1913 = vmax.f32 %v1911, %v1912
  %v1914 = vsel %vm1528, %v1389, -inf
  %v1915 = vrot.slane %v1914, 4
  %v1916 = vmax.f32 %v1914, %v1915
  %v1917 = vrot.slane %v1916, 2
  %v1918 = vmax.f32 %v1916, %v1917
  %v1919 = vrot.slane %v1918, 1
  %v1920 = vmax.f32 %v1918, %v1919
  %v1921 = vsel %vm1528, %v1302, -inf
  %v1922 = vrot.slane %v1921, 4
  %v1923 = vmax.f32 %v1921, %v1922
  %v1924 = vrot.slane %v1923, 2
  %v1925 = vmax.f32 %v1923, %v1924
  %v1926 = vrot.slane %v1925, 1
  %v1927 = vmax.f32 %v1925, %v1926
  %v1928 = vsel %vm1528, %v1390, -inf
  %v1929 = vrot.slane %v1928, 4
  %v1930 = vmax.f32 %v1928, %v1929
  %v1931 = vrot.slane %v1930, 2
  %v1932 = vmax.f32 %v1930, %v1931
  %v1933 = vrot.slane %v1932, 1
  %v1934 = vmax.f32 %v1932, %v1933
  %v1935 = vsel %vm1528, %v1391, -inf
  %v1936 = vrot.slane %v1935, 4
  %v1937 = vmax.f32 %v1935, %v1936
  %v1938 = vrot.slane %v1937, 2
  %v1939 = vmax.f32 %v1937, %v1938
  %v1940 = vrot.slane %v1939, 1
  %v1941 = vmax.f32 %v1939, %v1940
  %v1942 = vsel %vm1528, %v1392, -inf
  %v1943 = vrot.slane %v1942, 4
  %v1944 = vmax.f32 %v1942, %v1943
  %v1945 = vrot.slane %v1944, 2
  %v1946 = vmax.f32 %v1944, %v1945
  %v1947 = vrot.slane %v1946, 1
  %v1948 = vmax.f32 %v1946, %v1947
  %v1949 = vsel %vm1528, %v1303, -inf
  %v1950 = vrot.slane %v1949, 4
  %v1951 = vmax.f32 %v1949, %v1950
  %v1952 = vrot.slane %v1951, 2
  %v1953 = vmax.f32 %v1951, %v1952
  %v1954 = vrot.slane %v1953, 1
  %v1955 = vmax.f32 %v1953, %v1954
  %v1956 = vsel %vm1528, %v1393, -inf
  %v1957 = vrot.slane %v1956, 4
  %v1958 = vmax.f32 %v1956, %v1957
  %v1959 = vrot.slane %v1958, 2
  %v1960 = vmax.f32 %v1958, %v1959
  %v1961 = vrot.slane %v1960, 1
  %v1962 = vmax.f32 %v1960, %v1961
  %v1963 = vsel %vm1528, %v1394, -inf
  %v1964 = vrot.slane %v1963, 4
  %v1965 = vmax.f32 %v1963, %v1964
  %v1966 = vrot.slane %v1965, 2
  %v1967 = vmax.f32 %v1965, %v1966
  %v1968 = vrot.slane %v1967, 1
  %v1969 = vmax.f32 %v1967, %v1968
  %v1970 = vsel %vm1528, %v1395, -inf
  %v1971 = vrot.slane %v1970, 4
  %v1972 = vmax.f32 %v1970, %v1971
  %v1973 = vrot.slane %v1972, 2
  %v1974 = vmax.f32 %v1972, %v1973
  %v1975 = vrot.slane %v1974, 1
  %v1976 = vmax.f32 %v1974, %v1975
  %v1977 = vsel %vm1528, %v1304, -inf
  %v1978 = vrot.slane %v1977, 4
  %v1979 = vmax.f32 %v1977, %v1978
  %v1980 = vrot.slane %v1979, 2
  %v1981 = vmax.f32 %v1979, %v1980
  %v1982 = vrot.slane %v1981, 1
  %v1983 = vmax.f32 %v1981, %v1982
  %v1984 = vsel %vm1528, %v1396, -inf
  %v1985 = vrot.slane %v1984, 4
  %v1986 = vmax.f32 %v1984, %v1985
  %v1987 = vrot.slane %v1986, 2
  %v1988 = vmax.f32 %v1986, %v1987
  %v1989 = vrot.slane %v1988, 1
  %v1990 = vmax.f32 %v1988, %v1989
  %v1991 = vsel %vm1528, %v1397, -inf
  %v1992 = vrot.slane %v1991, 4
  %v1993 = vmax.f32 %v1991, %v1992
  %v1994 = vrot.slane %v1993, 2
  %v1995 = vmax.f32 %v1993, %v1994
  %v1996 = vrot.slane %v1995, 1
  %v1997 = vmax.f32 %v1995, %v1996
  %v1998 = vsel %vm1528, %v1398, -inf
  %v1999 = vrot.slane %v1998, 4
  %v2000 = vmax.f32 %v1998, %v1999
  %v2001 = vrot.slane %v2000, 2
  %v2002 = vmax.f32 %v2000, %v2001
  %v2003 = vrot.slane %v2002, 1
  %v2004 = vmax.f32 %v2002, %v2003
  %v2005 = vsel %vm1528, %v1305, -inf
  %v2006 = vrot.slane %v2005, 4
  %v2007 = vmax.f32 %v2005, %v2006
  %v2008 = vrot.slane %v2007, 2
  %v2009 = vmax.f32 %v2007, %v2008
  %v2010 = vrot.slane %v2009, 1
  %v2011 = vmax.f32 %v2009, %v2010
  %v2012 = vsel %vm1528, %v1399, -inf
  %v2013 = vrot.slane %v2012, 4
  %v2014 = vmax.f32 %v2012, %v2013
  %v2015 = vrot.slane %v2014, 2
  %v2016 = vmax.f32 %v2014, %v2015
  %v2017 = vrot.slane %v2016, 1
  %v2018 = vmax.f32 %v2016, %v2017
  %v2019 = vsel %vm1528, %v1400, -inf
  %v2020 = vrot.slane %v2019, 4
  %v2021 = vmax.f32 %v2019, %v2020
  %v2022 = vrot.slane %v2021, 2
  %v2023 = vmax.f32 %v2021, %v2022
  %v2024 = vrot.slane %v2023, 1
  %v2025 = vmax.f32 %v2023, %v2024
  %v2026 = vsel %vm1528, %v1401, -inf
  %v2027 = vrot.slane %v2026, 4
  %v2028 = vmax.f32 %v2026, %v2027
  %v2029 = vrot.slane %v2028, 2
  %v2030 = vmax.f32 %v2028, %v2029
  %v2031 = vrot.slane %v2030, 1
  %v2032 = vmax.f32 %v2030, %v2031
  %v2033 = vsel %vm1528, %v1306, -inf
  %v2034 = vrot.slane %v2033, 4
  %v2035 = vmax.f32 %v2033, %v2034
  %v2036 = vrot.slane %v2035, 2
  %v2037 = vmax.f32 %v2035, %v2036
  %v2038 = vrot.slane %v2037, 1
  %v2039 = vmax.f32 %v2037, %v2038
  %v2040 = vsel %vm1528, %v1402, -inf
  %v2041 = vrot.slane %v2040, 4
  %v2042 = vmax.f32 %v2040, %v2041
  %v2043 = vrot.slane %v2042, 2
  %v2044 = vmax.f32 %v2042, %v2043
  %v2045 = vrot.slane %v2044, 1
  %v2046 = vmax.f32 %v2044, %v2045
  %v2047 = vsel %vm1528, %v1403, -inf
  %v2048 = vrot.slane %v2047, 4
  %v2049 = vmax.f32 %v2047, %v2048
  %v2050 = vrot.slane %v2049, 2
  %v2051 = vmax.f32 %v2049, %v2050
  %v2052 = vrot.slane %v2051, 1
  %v2053 = vmax.f32 %v2051, %v2052
  %v2054 = vsel %vm1528, %v1404, -inf
  %v2055 = vrot.slane %v2054, 4
  %v2056 = vmax.f32 %v2054, %v2055
  %v2057 = vrot.slane %v2056, 2
  %v2058 = vmax.f32 %v2056, %v2057
  %v2059 = vrot.slane %v2058, 1
  %v2060 = vmax.f32 %v2058, %v2059
  %v2061 = vsel %vm1528, %v1307, -inf
  %v2062 = vrot.slane %v2061, 4
  %v2063 = vmax.f32 %v2061, %v2062
  %v2064 = vrot.slane %v2063, 2
  %v2065 = vmax.f32 %v2063, %v2064
  %v2066 = vrot.slane %v2065, 1
  %v2067 = vmax.f32 %v2065, %v2066
  %v2068 = vsel %vm1528, %v1405, -inf
  %v2069 = vrot.slane %v2068, 4
  %v2070 = vmax.f32 %v2068, %v2069
  %v2071 = vrot.slane %v2070, 2
  %v2072 = vmax.f32 %v2070, %v2071
  %v2073 = vrot.slane %v2072, 1
  %v2074 = vmax.f32 %v2072, %v2073
  %v2075 = vsel %vm1528, %v1406, -inf
  %v2076 = vrot.slane %v2075, 4
  %v2077 = vmax.f32 %v2075, %v2076
  %v2078 = vrot.slane %v2077, 2
  %v2079 = vmax.f32 %v2077, %v2078
  %v2080 = vrot.slane %v2079, 1
  %v2081 = vmax.f32 %v2079, %v2080
  %v2082 = vsel %vm1528, %v1407, -inf
  %v2083 = vrot.slane %v2082, 4
  %v2084 = vmax.f32 %v2082, %v2083
  %v2085 = vrot.slane %v2084, 2
  %v2086 = vmax.f32 %v2084, %v2085
  %v2087 = vrot.slane %v2086, 1
  %v2088 = vmax.f32 %v2086, %v2087
  %v2089 = vsel %vm1528, %v1308, -inf
  %v2090 = vrot.slane %v2089, 4
  %v2091 = vmax.f32 %v2089, %v2090
  %v2092 = vrot.slane %v2091, 2
  %v2093 = vmax.f32 %v2091, %v2092
  %v2094 = vrot.slane %v2093, 1
  %v2095 = vmax.f32 %v2093, %v2094
  %v2096 = vsel %vm1528, %v1408, -inf
  %v2097 = vrot.slane %v2096, 4
  %v2098 = vmax.f32 %v2096, %v2097
  %v2099 = vrot.slane %v2098, 2
  %v2100 = vmax.f32 %v2098, %v2099
  %v2101 = vrot.slane %v2100, 1
  %v2102 = vmax.f32 %v2100, %v2101
  %v2103 = vsel %vm1528, %v1409, -inf
  %v2104 = vrot.slane %v2103, 4
  %v2105 = vmax.f32 %v2103, %v2104
  %v2106 = vrot.slane %v2105, 2
  %v2107 = vmax.f32 %v2105, %v2106
  %v2108 = vrot.slane %v2107, 1
  %v2109 = vmax.f32 %v2107, %v2108
  %v2110 = vsel %vm1528, %v1410, -inf
  %v2111 = vrot.slane %v2110, 4
  %v2112 = vmax.f32 %v2110, %v2111
  %v2113 = vrot.slane %v2112, 2
  %v2114 = vmax.f32 %v2112, %v2113
  %v2115 = vrot.slane %v2114, 1
  %v2116 = vmax.f32 %v2114, %v2115
  %v2117 = vsel %vm1528, %v1309, -inf
  %v2118 = vrot.slane %v2117, 4
  %v2119 = vmax.f32 %v2117, %v2118
  %v2120 = vrot.slane %v2119, 2
  %v2121 = vmax.f32 %v2119, %v2120
  %v2122 = vrot.slane %v2121, 1
  %v2123 = vmax.f32 %v2121, %v2122
  %v2124 = vsel %vm1528, %v1411, -inf
  %v2125 = vrot.slane %v2124, 4
  %v2126 = vmax.f32 %v2124, %v2125
  %v2127 = vrot.slane %v2126, 2
  %v2128 = vmax.f32 %v2126, %v2127
  %v2129 = vrot.slane %v2128, 1
  %v2130 = vmax.f32 %v2128, %v2129
  %v2131 = vsel %vm1528, %v1412, -inf
  %v2132 = vrot.slane %v2131, 4
  %v2133 = vmax.f32 %v2131, %v2132
  %v2134 = vrot.slane %v2133, 2
  %v2135 = vmax.f32 %v2133, %v2134
  %v2136 = vrot.slane %v2135, 1
  %v2137 = vmax.f32 %v2135, %v2136
  %v2138 = vsel %vm1528, %v1413, -inf
  %v2139 = vrot.slane %v2138, 4
  %v2140 = vmax.f32 %v2138, %v2139
  %v2141 = vrot.slane %v2140, 2
  %v2142 = vmax.f32 %v2140, %v2141
  %v2143 = vrot.slane %v2142, 1
  %v2144 = vmax.f32 %v2142, %v2143
  %v2145 = vsel %vm1528, %v1310, -inf
  %v2146 = vrot.slane %v2145, 4
  %v2147 = vmax.f32 %v2145, %v2146
  %v2148 = vrot.slane %v2147, 2
  %v2149 = vmax.f32 %v2147, %v2148
  %v2150 = vrot.slane %v2149, 1
  %v2151 = vmax.f32 %v2149, %v2150
  %v2152 = vsel %vm1528, %v1414, -inf
  %v2153 = vrot.slane %v2152, 4
  %v2154 = vmax.f32 %v2152, %v2153
  %v2155 = vrot.slane %v2154, 2
  %v2156 = vmax.f32 %v2154, %v2155
  %v2157 = vrot.slane %v2156, 1
  %v2158 = vmax.f32 %v2156, %v2157
  %v2159 = vsel %vm1528, %v1415, -inf
  %v2160 = vrot.slane %v2159, 4
  %v2161 = vmax.f32 %v2159, %v2160
  %v2162 = vrot.slane %v2161, 2
  %v2163 = vmax.f32 %v2161, %v2162
  %v2164 = vrot.slane %v2163, 1
  %v2165 = vmax.f32 %v2163, %v2164
  %v2166 = vsel %vm1528, %v1416, -inf
  %v2167 = vrot.slane %v2166, 4
  %v2168 = vmax.f32 %v2166, %v2167
  %v2169 = vrot.slane %v2168, 2
  %v2170 = vmax.f32 %v2168, %v2169
  %v2171 = vrot.slane %v2170, 1
  %v2172 = vmax.f32 %v2170, %v2171
  %v2173 = vsel %vm1528, %v1311, -inf
  %v2174 = vrot.slane %v2173, 4
  %v2175 = vmax.f32 %v2173, %v2174
  %v2176 = vrot.slane %v2175, 2
  %v2177 = vmax.f32 %v2175, %v2176
  %v2178 = vrot.slane %v2177, 1
  %v2179 = vmax.f32 %v2177, %v2178
  %v2180 = vsel %vm1528, %v1417, -inf
  %v2181 = vrot.slane %v2180, 4
  %v2182 = vmax.f32 %v2180, %v2181
  %v2183 = vrot.slane %v2182, 2
  %v2184 = vmax.f32 %v2182, %v2183
  %v2185 = vrot.slane %v2184, 1
  %v2186 = vmax.f32 %v2184, %v2185
  %v2187 = vsel %vm1528, %v1418, -inf
  %v2188 = vrot.slane %v2187, 4
  %v2189 = vmax.f32 %v2187, %v2188
  %v2190 = vrot.slane %v2189, 2
  %v2191 = vmax.f32 %v2189, %v2190
  %v2192 = vrot.slane %v2191, 1
  %v2193 = vmax.f32 %v2191, %v2192
  %v2194 = vsel %vm1528, %v1419, -inf
  %v2195 = vrot.slane %v2194, 4
  %v2196 = vmax.f32 %v2194, %v2195
  %v2197 = vrot.slane %v2196, 2
  %v2198 = vmax.f32 %v2196, %v2197
  %v2199 = vrot.slane %v2198, 1
  %v2200 = vmax.f32 %v2198, %v2199
  %v2201 = vsel %vm1528, %v1312, -inf
  %v2202 = vrot.slane %v2201, 4
  %v2203 = vmax.f32 %v2201, %v2202
  %v2204 = vrot.slane %v2203, 2
  %v2205 = vmax.f32 %v2203, %v2204
  %v2206 = vrot.slane %v2205, 1
  %v2207 = vmax.f32 %v2205, %v2206
  %v2208 = vsel %vm1528, %v1420, -inf
  %v2209 = vrot.slane %v2208, 4
  %v2210 = vmax.f32 %v2208, %v2209
  %v2211 = vrot.slane %v2210, 2
  %v2212 = vmax.f32 %v2210, %v2211
  %v2213 = vrot.slane %v2212, 1
  %v2214 = vmax.f32 %v2212, %v2213
  %v2215 = vsel %vm1528, %v1421, -inf
  %v2216 = vrot.slane %v2215, 4
  %v2217 = vmax.f32 %v2215, %v2216
  %v2218 = vrot.slane %v2217, 2
  %v2219 = vmax.f32 %v2217, %v2218
  %v2220 = vrot.slane %v2219, 1
  %v2221 = vmax.f32 %v2219, %v2220
  %v2222 = vsel %vm1528, %v1422, -inf
  %v2223 = vrot.slane %v2222, 4
  %v2224 = vmax.f32 %v2222, %v2223
  %v2225 = vrot.slane %v2224, 2
  %v2226 = vmax.f32 %v2224, %v2225
  %v2227 = vrot.slane %v2226, 1
  %v2228 = vmax.f32 %v2226, %v2227
  %v2229 = vsel %vm1528, %v1313, -inf
  %v2230 = vrot.slane %v2229, 4
  %v2231 = vmax.f32 %v2229, %v2230
  %v2232 = vrot.slane %v2231, 2
  %v2233 = vmax.f32 %v2231, %v2232
  %v2234 = vrot.slane %v2233, 1
  %v2235 = vmax.f32 %v2233, %v2234
  %v2236 = vsel %vm1528, %v1423, -inf
  %v2237 = vrot.slane %v2236, 4
  %v2238 = vmax.f32 %v2236, %v2237
  %v2239 = vrot.slane %v2238, 2
  %v2240 = vmax.f32 %v2238, %v2239
  %v2241 = vrot.slane %v2240, 1
  %v2242 = vmax.f32 %v2240, %v2241
  %v2243 = vsel %vm1528, %v1424, -inf
  %v2244 = vrot.slane %v2243, 4
  %v2245 = vmax.f32 %v2243, %v2244
  %v2246 = vrot.slane %v2245, 2
  %v2247 = vmax.f32 %v2245, %v2246
  %v2248 = vrot.slane %v2247, 1
  %v2249 = vmax.f32 %v2247, %v2248
  %v2250 = vsel %vm1528, %v1425, -inf
  %v2251 = vrot.slane %v2250, 4
  %v2252 = vmax.f32 %v2250, %v2251
  %v2253 = vrot.slane %v2252, 2
  %v2254 = vmax.f32 %v2252, %v2253
  %v2255 = vrot.slane %v2254, 1
  %v2256 = vmax.f32 %v2254, %v2255
  %v2257 = vsel %vm1528, %v1314, -inf
  %v2258 = vrot.slane %v2257, 4
  %v2259 = vmax.f32 %v2257, %v2258
  %v2260 = vrot.slane %v2259, 2
  %v2261 = vmax.f32 %v2259, %v2260
  %v2262 = vrot.slane %v2261, 1
  %v2263 = vmax.f32 %v2261, %v2262
  %v2264 = vsel %vm1528, %v1426, -inf
  %v2265 = vrot.slane %v2264, 4
  %v2266 = vmax.f32 %v2264, %v2265
  %v2267 = vrot.slane %v2266, 2
  %v2268 = vmax.f32 %v2266, %v2267
  %v2269 = vrot.slane %v2268, 1
  %v2270 = vmax.f32 %v2268, %v2269
  %v2271 = vsel %vm1528, %v1427, -inf
  %v2272 = vrot.slane %v2271, 4
  %v2273 = vmax.f32 %v2271, %v2272
  %v2274 = vrot.slane %v2273, 2
  %v2275 = vmax.f32 %v2273, %v2274
  %v2276 = vrot.slane %v2275, 1
  %v2277 = vmax.f32 %v2275, %v2276
  %v2278 = vsel %vm1528, %v1428, -inf
  %v2279 = vrot.slane %v2278, 4
  %v2280 = vmax.f32 %v2278, %v2279
  %v2281 = vrot.slane %v2280, 2
  %v2282 = vmax.f32 %v2280, %v2281
  %v2283 = vrot.slane %v2282, 1
  %v2284 = vmax.f32 %v2282, %v2283
  %v2285 = vsel %vm1528, %v1315, -inf
  %v2286 = vrot.slane %v2285, 4
  %v2287 = vmax.f32 %v2285, %v2286
  %v2288 = vrot.slane %v2287, 2
  %v2289 = vmax.f32 %v2287, %v2288
  %v2290 = vrot.slane %v2289, 1
  %v2291 = vmax.f32 %v2289, %v2290
  %v2292 = vsel %vm1528, %v1429, -inf
  %v2293 = vrot.slane %v2292, 4
  %v2294 = vmax.f32 %v2292, %v2293
  %v2295 = vrot.slane %v2294, 2
  %v2296 = vmax.f32 %v2294, %v2295
  %v2297 = vrot.slane %v2296, 1
  %v2298 = vmax.f32 %v2296, %v2297
  %v2299 = vsel %vm1528, %v1430, -inf
  %v2300 = vrot.slane %v2299, 4
  %v2301 = vmax.f32 %v2299, %v2300
  %v2302 = vrot.slane %v2301, 2
  %v2303 = vmax.f32 %v2301, %v2302
  %v2304 = vrot.slane %v2303, 1
  %v2305 = vmax.f32 %v2303, %v2304
  %v2306 = vsel %vm1528, %v1431, -inf
  %v2307 = vrot.slane %v2306, 4
  %v2308 = vmax.f32 %v2306, %v2307
  %v2309 = vrot.slane %v2308, 2
  %v2310 = vmax.f32 %v2308, %v2309
  %v2311 = vrot.slane %v2310, 1
  %v2312 = vmax.f32 %v2310, %v2311
  %v2313 = vsel %vm1528, %v1316, -inf
  %v2314 = vrot.slane %v2313, 4
  %v2315 = vmax.f32 %v2313, %v2314
  %v2316 = vrot.slane %v2315, 2
  %v2317 = vmax.f32 %v2315, %v2316
  %v2318 = vrot.slane %v2317, 1
  %v2319 = vmax.f32 %v2317, %v2318
  %v2320 = vsel %vm1528, %v1432, -inf
  %v2321 = vrot.slane %v2320, 4
  %v2322 = vmax.f32 %v2320, %v2321
  %v2323 = vrot.slane %v2322, 2
  %v2324 = vmax.f32 %v2322, %v2323
  %v2325 = vrot.slane %v2324, 1
  %v2326 = vmax.f32 %v2324, %v2325
  %v2327 = vsel %vm1528, %v1433, -inf
  %v2328 = vrot.slane %v2327, 4
  %v2329 = vmax.f32 %v2327, %v2328
  %v2330 = vrot.slane %v2329, 2
  %v2331 = vmax.f32 %v2329, %v2330
  %v2332 = vrot.slane %v2331, 1
  %v2333 = vmax.f32 %v2331, %v2332
  %v2334 = vsel %vm1528, %v1434, -inf
  %v2335 = vrot.slane %v2334, 4
  %v2336 = vmax.f32 %v2334, %v2335
  %v2337 = vrot.slane %v2336, 2
  %v2338 = vmax.f32 %v2336, %v2337
  %v2339 = vrot.slane %v2338, 1
  %v2340 = vmax.f32 %v2338, %v2339
  %v2341 = vsel %vm1528, %v1317, -inf
  %v2342 = vrot.slane %v2341, 4
  %v2343 = vmax.f32 %v2341, %v2342
  %v2344 = vrot.slane %v2343, 2
  %v2345 = vmax.f32 %v2343, %v2344
  %v2346 = vrot.slane %v2345, 1
  %v2347 = vmax.f32 %v2345, %v2346
  %v2348 = vsel %vm1528, %v1435, -inf
  %v2349 = vrot.slane %v2348, 4
  %v2350 = vmax.f32 %v2348, %v2349
  %v2351 = vrot.slane %v2350, 2
  %v2352 = vmax.f32 %v2350, %v2351
  %v2353 = vrot.slane %v2352, 1
  %v2354 = vmax.f32 %v2352, %v2353
  %v2355 = vsel %vm1528, %v1436, -inf
  %v2356 = vrot.slane %v2355, 4
  %v2357 = vmax.f32 %v2355, %v2356
  %v2358 = vrot.slane %v2357, 2
  %v2359 = vmax.f32 %v2357, %v2358
  %v2360 = vrot.slane %v2359, 1
  %v2361 = vmax.f32 %v2359, %v2360
  %v2362 = vsel %vm1528, %v1437, -inf
  %v2363 = vrot.slane %v2362, 4
  %v2364 = vmax.f32 %v2362, %v2363
  %v2365 = vrot.slane %v2364, 2
  %v2366 = vmax.f32 %v2364, %v2365
  %v2367 = vrot.slane %v2366, 1
  %v2368 = vmax.f32 %v2366, %v2367
  %vm2473 = vcmask 1041409
  %v2474 = vsel %vm2473, %v1542, %v1535
  %vm2475 = vcmask 1042434
  %v2476 = vsel %vm2475, %v1549, %v2474
  %vm2477 = vcmask 1043459
  %v2478 = vsel %vm2477, %v1556, %v2476
  %vm2479 = vcmask 1044484
  %v2480 = vsel %vm2479, %v1563, %v2478
  %vm2481 = vcmask 1045509
  %v2482 = vsel %vm2481, %v1570, %v2480
  %vm2483 = vcmask 1046534
  %v2484 = vsel %vm2483, %v1577, %v2482
  %vm2485 = vcmask 1047559
  %v2486 = vsel %vm2485, %v1584, %v2484
  %v2487 = vsel %vm2473, %v1598, %v1591
  %v2488 = vsel %vm2475, %v1605, %v2487
  %v2489 = vsel %vm2477, %v1612, %v2488
  %v2490 = vsel %vm2479, %v1619, %v2489
  %v2491 = vsel %vm2481, %v1626, %v2490
  %v2492 = vsel %vm2483, %v1633, %v2491
  %v2493 = vsel %vm2485, %v1640, %v2492
  %v2494 = vsel %vm2473, %v1654, %v1647
  %v2495 = vsel %vm2475, %v1661, %v2494
  %v2496 = vsel %vm2477, %v1668, %v2495
  %v2497 = vsel %vm2479, %v1675, %v2496
  %v2498 = vsel %vm2481, %v1682, %v2497
  %v2499 = vsel %vm2483, %v1689, %v2498
  %v2500 = vsel %vm2485, %v1696, %v2499
  %v2501 = vsel %vm2473, %v1710, %v1703
  %v2502 = vsel %vm2473, %v1752, %v1745
  %v2503 = vsel %vm2475, %v1759, %v2502
  %v2504 = vsel %vm2477, %v1766, %v2503
  %v2505 = vsel %vm2479, %v1773, %v2504
  %v2506 = vsel %vm2481, %v1780, %v2505
  %v2507 = vsel %vm2483, %v1787, %v2506
  %v2508 = vsel %vm2485, %v1794, %v2507
  %v2509 = vsel %vm2473, %v1808, %v1801
  %v2510 = vsel %vm2475, %v1815, %v2509
  %v2511 = vsel %vm2477, %v1822, %v2510
  %v2512 = vsel %vm2479, %v1829, %v2511
  %v2513 = vsel %vm2481, %v1836, %v2512
  %v2514 = vsel %vm2483, %v1843, %v2513
  %v2515 = vsel %vm2485, %v1850, %v2514
  %v2516 = vsel %vm2473, %v1864, %v1857
  %v2517 = vsel %vm2475, %v1871, %v2516
  %v2518 = vsel %vm2477, %v1878, %v2517
  %v2519 = vsel %vm2479, %v1885, %v2518
  %v2520 = vsel %vm2481, %v1892, %v2519
  %v2521 = vsel %vm2483, %v1899, %v2520
  %v2522 = vsel %vm2485, %v1906, %v2521
  %v2523 = vsel %vm2473, %v1920, %v1913
  %v2524 = vsel %vm2473, %v1962, %v1955
  %v2525 = vsel %vm2475, %v1969, %v2524
  %v2526 = vsel %vm2477, %v1976, %v2525
  %v2527 = vsel %vm2479, %v1983, %v2526
  %v2528 = vsel %vm2481, %v1990, %v2527
  %v2529 = vsel %vm2483, %v1997, %v2528
  %v2530 = vsel %vm2485, %v2004, %v2529
  %v2531 = vsel %vm2473, %v2018, %v2011
  %v2532 = vsel %vm2475, %v2025, %v2531
  %v2533 = vsel %vm2477, %v2032, %v2532
  %v2534 = vsel %vm2479, %v2039, %v2533
  %v2535 = vsel %vm2481, %v2046, %v2534
  %v2536 = vsel %vm2483, %v2053, %v2535
  %v2537 = vsel %vm2485, %v2060, %v2536
  %v2538 = vsel %vm2473, %v2074, %v2067
  %v2539 = vsel %vm2475, %v2081, %v2538
  %v2540 = vsel %vm2477, %v2088, %v2539
  %v2541 = vsel %vm2479, %v2095, %v2540
  %v2542 = vsel %vm2481, %v2102, %v2541
  %v2543 = vsel %vm2483, %v2109, %v2542
  %v2544 = vsel %vm2485, %v2116, %v2543
  %v2545 = vsel %vm2473, %v2130, %v2123
  %v2546 = vsel %vm2473, %v2172, %v2165
  %v2547 = vsel %vm2475, %v2179, %v2546
  %v2548 = vsel %vm2477, %v2186, %v2547
  %v2549 = vsel %vm2479, %v2193, %v2548
  %v2550 = vsel %vm2481, %v2200, %v2549
  %v2551 = vsel %vm2483, %v2207, %v2550
  %v2552 = vsel %vm2485, %v2214, %v2551
  %v2553 = vsel %vm2473, %v2228, %v2221
  %v2554 = vsel %vm2475, %v2235, %v2553
  %v2555 = vsel %vm2477, %v2242, %v2554
  %v2556 = vsel %vm2479, %v2249, %v2555
  %v2557 = vsel %vm2481, %v2256, %v2556
  %v2558 = vsel %vm2483, %v2263, %v2557
  %v2559 = vsel %vm2485, %v2270, %v2558
  %v2560 = vsel %vm2473, %v2284, %v2277
  %v2561 = vsel %vm2475, %v2291, %v2560
  %v2562 = vsel %vm2477, %v2298, %v2561
  %v2563 = vsel %vm2479, %v2305, %v2562
  %v2564 = vsel %vm2481, %v2312, %v2563
  %v2565 = vsel %vm2483, %v2319, %v2564
  %v2566 = vsel %vm2485, %v2326, %v2565
  %v2567 = vsel %vm2473, %v2340, %v2333
  %v2588 = vsel %vm2473, %v1549, %v1542
  %v2589 = vsel %vm2475, %v1556, %v2588
  %v2590 = vsel %vm2477, %v1563, %v2589
  %v2591 = vsel %vm2479, %v1570, %v2590
  %v2592 = vsel %vm2481, %v1577, %v2591
  %v2593 = vsel %vm2483, %v1584, %v2592
  %v2594 = vsel %vm2485, %v1591, %v2593
  %v2595 = vsel %vm2473, %v1605, %v1598
  %v2596 = vsel %vm2475, %v1612, %v2595
  %v2597 = vsel %vm2477, %v1619, %v2596
  %v2598 = vsel %vm2479, %v1626, %v2597
  %v2599 = vsel %vm2481, %v1633, %v2598
  %v2600 = vsel %vm2483, %v1640, %v2599
  %v2601 = vsel %vm2485, %v1647, %v2600
  %v2602 = vsel %vm2473, %v1661, %v1654
  %v2603 = vsel %vm2475, %v1668, %v2602
  %v2604 = vsel %vm2477, %v1675, %v2603
  %v2605 = vsel %vm2479, %v1682, %v2604
  %v2606 = vsel %vm2481, %v1689, %v2605
  %v2607 = vsel %vm2483, %v1696, %v2606
  %v2608 = vsel %vm2485, %v1703, %v2607
  %v2609 = vsel %vm2473, %v1717, %v1710
  %v2610 = vsel %vm2473, %v1759, %v1752
  %v2611 = vsel %vm2475, %v1766, %v2610
  %v2612 = vsel %vm2477, %v1773, %v2611
  %v2613 = vsel %vm2479, %v1780, %v2612
  %v2614 = vsel %vm2481, %v1787, %v2613
  %v2615 = vsel %vm2483, %v1794, %v2614
  %v2616 = vsel %vm2485, %v1801, %v2615
  %v2617 = vsel %vm2473, %v1815, %v1808
  %v2618 = vsel %vm2475, %v1822, %v2617
  %v2619 = vsel %vm2477, %v1829, %v2618
  %v2620 = vsel %vm2479, %v1836, %v2619
  %v2621 = vsel %vm2481, %v1843, %v2620
  %v2622 = vsel %vm2483, %v1850, %v2621
  %v2623 = vsel %vm2485, %v1857, %v2622
  %v2624 = vsel %vm2473, %v1871, %v1864
  %v2625 = vsel %vm2475, %v1878, %v2624
  %v2626 = vsel %vm2477, %v1885, %v2625
  %v2627 = vsel %vm2479, %v1892, %v2626
  %v2628 = vsel %vm2481, %v1899, %v2627
  %v2629 = vsel %vm2483, %v1906, %v2628
  %v2630 = vsel %vm2485, %v1913, %v2629
  %v2631 = vsel %vm2473, %v1927, %v1920
  %v2632 = vsel %vm2473, %v1969, %v1962
  %v2633 = vsel %vm2475, %v1976, %v2632
  %v2634 = vsel %vm2477, %v1983, %v2633
  %v2635 = vsel %vm2479, %v1990, %v2634
  %v2636 = vsel %vm2481, %v1997, %v2635
  %v2637 = vsel %vm2483, %v2004, %v2636
  %v2638 = vsel %vm2485, %v2011, %v2637
  %v2639 = vsel %vm2473, %v2025, %v2018
  %v2640 = vsel %vm2475, %v2032, %v2639
  %v2641 = vsel %vm2477, %v2039, %v2640
  %v2642 = vsel %vm2479, %v2046, %v2641
  %v2643 = vsel %vm2481, %v2053, %v2642
  %v2644 = vsel %vm2483, %v2060, %v2643
  %v2645 = vsel %vm2485, %v2067, %v2644
  %v2646 = vsel %vm2473, %v2081, %v2074
  %v2647 = vsel %vm2475, %v2088, %v2646
  %v2648 = vsel %vm2477, %v2095, %v2647
  %v2649 = vsel %vm2479, %v2102, %v2648
  %v2650 = vsel %vm2481, %v2109, %v2649
  %v2651 = vsel %vm2483, %v2116, %v2650
  %v2652 = vsel %vm2485, %v2123, %v2651
  %v2653 = vsel %vm2473, %v2137, %v2130
  %v2654 = vsel %vm2473, %v2179, %v2172
  %v2655 = vsel %vm2475, %v2186, %v2654
  %v2656 = vsel %vm2477, %v2193, %v2655
  %v2657 = vsel %vm2479, %v2200, %v2656
  %v2658 = vsel %vm2481, %v2207, %v2657
  %v2659 = vsel %vm2483, %v2214, %v2658
  %v2660 = vsel %vm2485, %v2221, %v2659
  %v2661 = vsel %vm2473, %v2235, %v2228
  %v2662 = vsel %vm2475, %v2242, %v2661
  %v2663 = vsel %vm2477, %v2249, %v2662
  %v2664 = vsel %vm2479, %v2256, %v2663
  %v2665 = vsel %vm2481, %v2263, %v2664
  %v2666 = vsel %vm2483, %v2270, %v2665
  %v2667 = vsel %vm2485, %v2277, %v2666
  %v2668 = vsel %vm2473, %v2291, %v2284
  %v2669 = vsel %vm2475, %v2298, %v2668
  %v2670 = vsel %vm2477, %v2305, %v2669
  %v2671 = vsel %vm2479, %v2312, %v2670
  %v2672 = vsel %vm2481, %v2319, %v2671
  %v2673 = vsel %vm2483, %v2326, %v2672
  %v2674 = vsel %vm2485, %v2333, %v2673
  %v2675 = vsel %vm2473, %v2347, %v2340
  %2676 = vrot.lane.b32.xlu0 %v2594, 8
  %v2677 = vpop.permute.xlu0 %2676
  %2678 = vrot.lane.b32.xlu0 %v2601, 8
  %v2679 = vpop.permute.xlu0 %2678
  %2680 = vrot.lane.b32.xlu0 %v2608, 8
  %v2681 = vpop.permute.xlu0 %2680
  %2682 = vrot.lane.b32.xlu0 %v2609, 8
  %v2683 = vpop.permute.xlu0 %2682
  %2684 = vrot.lane.b32.xlu0 %v2616, 8
  %v2685 = vpop.permute.xlu0 %2684
  %2686 = vrot.lane.b32.xlu0 %v2623, 8
  %v2687 = vpop.permute.xlu0 %2686
  %2688 = vrot.lane.b32.xlu0 %v2630, 8
  %v2689 = vpop.permute.xlu0 %2688
  %2690 = vrot.lane.b32.xlu0 %v2631, 8
  %v2691 = vpop.permute.xlu0 %2690
  %2692 = vrot.lane.b32.xlu0 %v2638, 8
  %v2693 = vpop.permute.xlu0 %2692
  %2694 = vrot.lane.b32.xlu0 %v2645, 8
  %v2695 = vpop.permute.xlu0 %2694
  %2696 = vrot.lane.b32.xlu0 %v2652, 8
  %v2697 = vpop.permute.xlu0 %2696
  %2698 = vrot.lane.b32.xlu0 %v2653, 8
  %v2699 = vpop.permute.xlu0 %2698
  %2700 = vrot.lane.b32.xlu0 %v2660, 8
  %v2701 = vpop.permute.xlu0 %2700
  %2702 = vrot.lane.b32.xlu0 %v2667, 8
  %v2703 = vpop.permute.xlu0 %2702
  %2704 = vrot.lane.b32.xlu0 %v2674, 8
  %v2705 = vpop.permute.xlu0 %2704
  %2706 = vrot.lane.b32.xlu0 %v2675, 8
  %v2707 = vpop.permute.xlu0 %2706
  %v2728 = vsel %vm2473, %v1556, %v1549
  %v2729 = vsel %vm2475, %v1563, %v2728
  %v2730 = vsel %vm2477, %v1570, %v2729
  %v2731 = vsel %vm2479, %v1577, %v2730
  %v2732 = vsel %vm2481, %v1584, %v2731
  %v2733 = vsel %vm2483, %v1591, %v2732
  %v2734 = vsel %vm2485, %v1598, %v2733
  %v2735 = vsel %vm2473, %v1612, %v1605
  %v2736 = vsel %vm2475, %v1619, %v2735
  %v2737 = vsel %vm2477, %v1626, %v2736
  %v2738 = vsel %vm2479, %v1633, %v2737
  %v2739 = vsel %vm2481, %v1640, %v2738
  %v2740 = vsel %vm2483, %v1647, %v2739
  %v2741 = vsel %vm2485, %v1654, %v2740
  %v2742 = vsel %vm2473, %v1668, %v1661
  %v2743 = vsel %vm2475, %v1675, %v2742
  %v2744 = vsel %vm2477, %v1682, %v2743
  %v2745 = vsel %vm2479, %v1689, %v2744
  %v2746 = vsel %vm2481, %v1696, %v2745
  %v2747 = vsel %vm2483, %v1703, %v2746
  %v2748 = vsel %vm2485, %v1710, %v2747
  %v2749 = vsel %vm2473, %v1724, %v1717
  %v2750 = vsel %vm2473, %v1766, %v1759
  %v2751 = vsel %vm2475, %v1773, %v2750
  %v2752 = vsel %vm2477, %v1780, %v2751
  %v2753 = vsel %vm2479, %v1787, %v2752
  %v2754 = vsel %vm2481, %v1794, %v2753
  %v2755 = vsel %vm2483, %v1801, %v2754
  %v2756 = vsel %vm2485, %v1808, %v2755
  %v2757 = vsel %vm2473, %v1822, %v1815
  %v2758 = vsel %vm2475, %v1829, %v2757
  %v2759 = vsel %vm2477, %v1836, %v2758
  %v2760 = vsel %vm2479, %v1843, %v2759
  %v2761 = vsel %vm2481, %v1850, %v2760
  %v2762 = vsel %vm2483, %v1857, %v2761
  %v2763 = vsel %vm2485, %v1864, %v2762
  %v2764 = vsel %vm2473, %v1878, %v1871
  %v2765 = vsel %vm2475, %v1885, %v2764
  %v2766 = vsel %vm2477, %v1892, %v2765
  %v2767 = vsel %vm2479, %v1899, %v2766
  %v2768 = vsel %vm2481, %v1906, %v2767
  %v2769 = vsel %vm2483, %v1913, %v2768
  %v2770 = vsel %vm2485, %v1920, %v2769
  %v2771 = vsel %vm2473, %v1934, %v1927
  %v2772 = vsel %vm2473, %v1976, %v1969
  %v2773 = vsel %vm2475, %v1983, %v2772
  %v2774 = vsel %vm2477, %v1990, %v2773
  %v2775 = vsel %vm2479, %v1997, %v2774
  %v2776 = vsel %vm2481, %v2004, %v2775
  %v2777 = vsel %vm2483, %v2011, %v2776
  %v2778 = vsel %vm2485, %v2018, %v2777
  %v2779 = vsel %vm2473, %v2032, %v2025
  %v2780 = vsel %vm2475, %v2039, %v2779
  %v2781 = vsel %vm2477, %v2046, %v2780
  %v2782 = vsel %vm2479, %v2053, %v2781
  %v2783 = vsel %vm2481, %v2060, %v2782
  %v2784 = vsel %vm2483, %v2067, %v2783
  %v2785 = vsel %vm2485, %v2074, %v2784
  %v2786 = vsel %vm2473, %v2088, %v2081
  %v2787 = vsel %vm2475, %v2095, %v2786
  %v2788 = vsel %vm2477, %v2102, %v2787
  %v2789 = vsel %vm2479, %v2109, %v2788
  %v2790 = vsel %vm2481, %v2116, %v2789
  %v2791 = vsel %vm2483, %v2123, %v2790
  %v2792 = vsel %vm2485, %v2130, %v2791
  %v2793 = vsel %vm2473, %v2144, %v2137
  %v2794 = vsel %vm2473, %v2186, %v2179
  %v2795 = vsel %vm2475, %v2193, %v2794
  %v2796 = vsel %vm2477, %v2200, %v2795
  %v2797 = vsel %vm2479, %v2207, %v2796
  %v2798 = vsel %vm2481, %v2214, %v2797
  %v2799 = vsel %vm2483, %v2221, %v2798
  %v2800 = vsel %vm2485, %v2228, %v2799
  %v2801 = vsel %vm2473, %v2242, %v2235
  %v2802 = vsel %vm2475, %v2249, %v2801
  %v2803 = vsel %vm2477, %v2256, %v2802
  %v2804 = vsel %vm2479, %v2263, %v2803
  %v2805 = vsel %vm2481, %v2270, %v2804
  %v2806 = vsel %vm2483, %v2277, %v2805
  %v2807 = vsel %vm2485, %v2284, %v2806
  %v2808 = vsel %vm2473, %v2298, %v2291
  %v2809 = vsel %vm2475, %v2305, %v2808
  %v2810 = vsel %vm2477, %v2312, %v2809
  %v2811 = vsel %vm2479, %v2319, %v2810
  %v2812 = vsel %vm2481, %v2326, %v2811
  %v2813 = vsel %vm2483, %v2333, %v2812
  %v2814 = vsel %vm2485, %v2340, %v2813
  %v2815 = vsel %vm2473, %v2354, %v2347
  %2816 = vrot.lane.b32.xlu0 %v2734, 16
  %v2817 = vpop.permute.xlu0 %2816
  %2818 = vrot.lane.b32.xlu0 %v2741, 16
  %v2819 = vpop.permute.xlu0 %2818
  %2820 = vrot.lane.b32.xlu0 %v2748, 16
  %v2821 = vpop.permute.xlu0 %2820
  %2822 = vrot.lane.b32.xlu0 %v2749, 16
  %v2823 = vpop.permute.xlu0 %2822
  %2824 = vrot.lane.b32.xlu0 %v2756, 16
  %v2825 = vpop.permute.xlu0 %2824
  %2826 = vrot.lane.b32.xlu0 %v2763, 16
  %v2827 = vpop.permute.xlu0 %2826
  %2828 = vrot.lane.b32.xlu0 %v2770, 16
  %v2829 = vpop.permute.xlu0 %2828
  %2830 = vrot.lane.b32.xlu0 %v2771, 16
  %v2831 = vpop.permute.xlu0 %2830
  %2832 = vrot.lane.b32.xlu0 %v2778, 16
  %v2833 = vpop.permute.xlu0 %2832
  %2834 = vrot.lane.b32.xlu0 %v2785, 16
  %v2835 = vpop.permute.xlu0 %2834
  %2836 = vrot.lane.b32.xlu0 %v2792, 16
  %v2837 = vpop.permute.xlu0 %2836
  %2838 = vrot.lane.b32.xlu0 %v2793, 16
  %v2839 = vpop.permute.xlu0 %2838
  %2840 = vrot.lane.b32.xlu0 %v2800, 16
  %v2841 = vpop.permute.xlu0 %2840
  %2842 = vrot.lane.b32.xlu0 %v2807, 16
  %v2843 = vpop.permute.xlu0 %2842
  %2844 = vrot.lane.b32.xlu0 %v2814, 16
  %v2845 = vpop.permute.xlu0 %2844
  %2846 = vrot.lane.b32.xlu0 %v2815, 16
  %v2847 = vpop.permute.xlu0 %2846
  %v2868 = vsel %vm2473, %v1563, %v1556
  %v2869 = vsel %vm2475, %v1570, %v2868
  %v2870 = vsel %vm2477, %v1577, %v2869
  %v2871 = vsel %vm2479, %v1584, %v2870
  %v2872 = vsel %vm2481, %v1591, %v2871
  %v2873 = vsel %vm2483, %v1598, %v2872
  %v2874 = vsel %vm2485, %v1605, %v2873
  %v2875 = vsel %vm2473, %v1619, %v1612
  %v2876 = vsel %vm2475, %v1626, %v2875
  %v2877 = vsel %vm2477, %v1633, %v2876
  %v2878 = vsel %vm2479, %v1640, %v2877
  %v2879 = vsel %vm2481, %v1647, %v2878
  %v2880 = vsel %vm2483, %v1654, %v2879
  %v2881 = vsel %vm2485, %v1661, %v2880
  %v2882 = vsel %vm2473, %v1675, %v1668
  %v2883 = vsel %vm2475, %v1682, %v2882
  %v2884 = vsel %vm2477, %v1689, %v2883
  %v2885 = vsel %vm2479, %v1696, %v2884
  %v2886 = vsel %vm2481, %v1703, %v2885
  %v2887 = vsel %vm2483, %v1710, %v2886
  %v2888 = vsel %vm2485, %v1717, %v2887
  %v2889 = vsel %vm2473, %v1731, %v1724
  %v2890 = vsel %vm2473, %v1773, %v1766
  %v2891 = vsel %vm2475, %v1780, %v2890
  %v2892 = vsel %vm2477, %v1787, %v2891
  %v2893 = vsel %vm2479, %v1794, %v2892
  %v2894 = vsel %vm2481, %v1801, %v2893
  %v2895 = vsel %vm2483, %v1808, %v2894
  %v2896 = vsel %vm2485, %v1815, %v2895
  %v2897 = vsel %vm2473, %v1829, %v1822
  %v2898 = vsel %vm2475, %v1836, %v2897
  %v2899 = vsel %vm2477, %v1843, %v2898
  %v2900 = vsel %vm2479, %v1850, %v2899
  %v2901 = vsel %vm2481, %v1857, %v2900
  %v2902 = vsel %vm2483, %v1864, %v2901
  %v2903 = vsel %vm2485, %v1871, %v2902
  %v2904 = vsel %vm2473, %v1885, %v1878
  %v2905 = vsel %vm2475, %v1892, %v2904
  %v2906 = vsel %vm2477, %v1899, %v2905
  %v2907 = vsel %vm2479, %v1906, %v2906
  %v2908 = vsel %vm2481, %v1913, %v2907
  %v2909 = vsel %vm2483, %v1920, %v2908
  %v2910 = vsel %vm2485, %v1927, %v2909
  %v2911 = vsel %vm2473, %v1941, %v1934
  %v2912 = vsel %vm2473, %v1983, %v1976
  %v2913 = vsel %vm2475, %v1990, %v2912
  %v2914 = vsel %vm2477, %v1997, %v2913
  %v2915 = vsel %vm2479, %v2004, %v2914
  %v2916 = vsel %vm2481, %v2011, %v2915
  %v2917 = vsel %vm2483, %v2018, %v2916
  %v2918 = vsel %vm2485, %v2025, %v2917
  %v2919 = vsel %vm2473, %v2039, %v2032
  %v2920 = vsel %vm2475, %v2046, %v2919
  %v2921 = vsel %vm2477, %v2053, %v2920
  %v2922 = vsel %vm2479, %v2060, %v2921
  %v2923 = vsel %vm2481, %v2067, %v2922
  %v2924 = vsel %vm2483, %v2074, %v2923
  %v2925 = vsel %vm2485, %v2081, %v2924
  %v2926 = vsel %vm2473, %v2095, %v2088
  %v2927 = vsel %vm2475, %v2102, %v2926
  %v2928 = vsel %vm2477, %v2109, %v2927
  %v2929 = vsel %vm2479, %v2116, %v2928
  %v2930 = vsel %vm2481, %v2123, %v2929
  %v2931 = vsel %vm2483, %v2130, %v2930
  %v2932 = vsel %vm2485, %v2137, %v2931
  %v2933 = vsel %vm2473, %v2151, %v2144
  %v2934 = vsel %vm2473, %v2193, %v2186
  %v2935 = vsel %vm2475, %v2200, %v2934
  %v2936 = vsel %vm2477, %v2207, %v2935
  %v2937 = vsel %vm2479, %v2214, %v2936
  %v2938 = vsel %vm2481, %v2221, %v2937
  %v2939 = vsel %vm2483, %v2228, %v2938
  %v2940 = vsel %vm2485, %v2235, %v2939
  %v2941 = vsel %vm2473, %v2249, %v2242
  %v2942 = vsel %vm2475, %v2256, %v2941
  %v2943 = vsel %vm2477, %v2263, %v2942
  %v2944 = vsel %vm2479, %v2270, %v2943
  %v2945 = vsel %vm2481, %v2277, %v2944
  %v2946 = vsel %vm2483, %v2284, %v2945
  %v2947 = vsel %vm2485, %v2291, %v2946
  %v2948 = vsel %vm2473, %v2305, %v2298
  %v2949 = vsel %vm2475, %v2312, %v2948
  %v2950 = vsel %vm2477, %v2319, %v2949
  %v2951 = vsel %vm2479, %v2326, %v2950
  %v2952 = vsel %vm2481, %v2333, %v2951
  %v2953 = vsel %vm2483, %v2340, %v2952
  %v2954 = vsel %vm2485, %v2347, %v2953
  %v2955 = vsel %vm2473, %v2361, %v2354
  %2956 = vrot.lane.b32.xlu0 %v2874, 24
  %v2957 = vpop.permute.xlu0 %2956
  %2958 = vrot.lane.b32.xlu0 %v2881, 24
  %v2959 = vpop.permute.xlu0 %2958
  %2960 = vrot.lane.b32.xlu0 %v2888, 24
  %v2961 = vpop.permute.xlu0 %2960
  %2962 = vrot.lane.b32.xlu0 %v2889, 24
  %v2963 = vpop.permute.xlu0 %2962
  %2964 = vrot.lane.b32.xlu0 %v2896, 24
  %v2965 = vpop.permute.xlu0 %2964
  %2966 = vrot.lane.b32.xlu0 %v2903, 24
  %v2967 = vpop.permute.xlu0 %2966
  %2968 = vrot.lane.b32.xlu0 %v2910, 24
  %v2969 = vpop.permute.xlu0 %2968
  %2970 = vrot.lane.b32.xlu0 %v2911, 24
  %v2971 = vpop.permute.xlu0 %2970
  %2972 = vrot.lane.b32.xlu0 %v2918, 24
  %v2973 = vpop.permute.xlu0 %2972
  %2974 = vrot.lane.b32.xlu0 %v2925, 24
  %v2975 = vpop.permute.xlu0 %2974
  %2976 = vrot.lane.b32.xlu0 %v2932, 24
  %v2977 = vpop.permute.xlu0 %2976
  %2978 = vrot.lane.b32.xlu0 %v2933, 24
  %v2979 = vpop.permute.xlu0 %2978
  %2980 = vrot.lane.b32.xlu0 %v2940, 24
  %v2981 = vpop.permute.xlu0 %2980
  %2982 = vrot.lane.b32.xlu0 %v2947, 24
  %v2983 = vpop.permute.xlu0 %2982
  %2984 = vrot.lane.b32.xlu0 %v2954, 24
  %v2985 = vpop.permute.xlu0 %2984
  %2986 = vrot.lane.b32.xlu0 %v2955, 24
  %v2987 = vpop.permute.xlu0 %2986
  %v3008 = vsel %vm2473, %v1570, %v1563
  %v3009 = vsel %vm2475, %v1577, %v3008
  %v3010 = vsel %vm2477, %v1584, %v3009
  %v3011 = vsel %vm2479, %v1591, %v3010
  %v3012 = vsel %vm2481, %v1598, %v3011
  %v3013 = vsel %vm2483, %v1605, %v3012
  %v3014 = vsel %vm2485, %v1612, %v3013
  %v3015 = vsel %vm2473, %v1626, %v1619
  %v3016 = vsel %vm2475, %v1633, %v3015
  %v3017 = vsel %vm2477, %v1640, %v3016
  %v3018 = vsel %vm2479, %v1647, %v3017
  %v3019 = vsel %vm2481, %v1654, %v3018
  %v3020 = vsel %vm2483, %v1661, %v3019
  %v3021 = vsel %vm2485, %v1668, %v3020
  %v3022 = vsel %vm2473, %v1682, %v1675
  %v3023 = vsel %vm2475, %v1689, %v3022
  %v3024 = vsel %vm2477, %v1696, %v3023
  %v3025 = vsel %vm2479, %v1703, %v3024
  %v3026 = vsel %vm2481, %v1710, %v3025
  %v3027 = vsel %vm2483, %v1717, %v3026
  %v3028 = vsel %vm2485, %v1724, %v3027
  %v3029 = vsel %vm2473, %v1738, %v1731
  %v3030 = vsel %vm2473, %v1780, %v1773
  %v3031 = vsel %vm2475, %v1787, %v3030
  %v3032 = vsel %vm2477, %v1794, %v3031
  %v3033 = vsel %vm2479, %v1801, %v3032
  %v3034 = vsel %vm2481, %v1808, %v3033
  %v3035 = vsel %vm2483, %v1815, %v3034
  %v3036 = vsel %vm2485, %v1822, %v3035
  %v3037 = vsel %vm2473, %v1836, %v1829
  %v3038 = vsel %vm2475, %v1843, %v3037
  %v3039 = vsel %vm2477, %v1850, %v3038
  %v3040 = vsel %vm2479, %v1857, %v3039
  %v3041 = vsel %vm2481, %v1864, %v3040
  %v3042 = vsel %vm2483, %v1871, %v3041
  %v3043 = vsel %vm2485, %v1878, %v3042
  %v3044 = vsel %vm2473, %v1892, %v1885
  %v3045 = vsel %vm2475, %v1899, %v3044
  %v3046 = vsel %vm2477, %v1906, %v3045
  %v3047 = vsel %vm2479, %v1913, %v3046
  %v3048 = vsel %vm2481, %v1920, %v3047
  %v3049 = vsel %vm2483, %v1927, %v3048
  %v3050 = vsel %vm2485, %v1934, %v3049
  %v3051 = vsel %vm2473, %v1948, %v1941
  %v3052 = vsel %vm2473, %v1990, %v1983
  %v3053 = vsel %vm2475, %v1997, %v3052
  %v3054 = vsel %vm2477, %v2004, %v3053
  %v3055 = vsel %vm2479, %v2011, %v3054
  %v3056 = vsel %vm2481, %v2018, %v3055
  %v3057 = vsel %vm2483, %v2025, %v3056
  %v3058 = vsel %vm2485, %v2032, %v3057
  %v3059 = vsel %vm2473, %v2046, %v2039
  %v3060 = vsel %vm2475, %v2053, %v3059
  %v3061 = vsel %vm2477, %v2060, %v3060
  %v3062 = vsel %vm2479, %v2067, %v3061
  %v3063 = vsel %vm2481, %v2074, %v3062
  %v3064 = vsel %vm2483, %v2081, %v3063
  %v3065 = vsel %vm2485, %v2088, %v3064
  %v3066 = vsel %vm2473, %v2102, %v2095
  %v3067 = vsel %vm2475, %v2109, %v3066
  %v3068 = vsel %vm2477, %v2116, %v3067
  %v3069 = vsel %vm2479, %v2123, %v3068
  %v3070 = vsel %vm2481, %v2130, %v3069
  %v3071 = vsel %vm2483, %v2137, %v3070
  %v3072 = vsel %vm2485, %v2144, %v3071
  %v3073 = vsel %vm2473, %v2158, %v2151
  %v3074 = vsel %vm2473, %v2200, %v2193
  %v3075 = vsel %vm2475, %v2207, %v3074
  %v3076 = vsel %vm2477, %v2214, %v3075
  %v3077 = vsel %vm2479, %v2221, %v3076
  %v3078 = vsel %vm2481, %v2228, %v3077
  %v3079 = vsel %vm2483, %v2235, %v3078
  %v3080 = vsel %vm2485, %v2242, %v3079
  %v3081 = vsel %vm2473, %v2256, %v2249
  %v3082 = vsel %vm2475, %v2263, %v3081
  %v3083 = vsel %vm2477, %v2270, %v3082
  %v3084 = vsel %vm2479, %v2277, %v3083
  %v3085 = vsel %vm2481, %v2284, %v3084
  %v3086 = vsel %vm2483, %v2291, %v3085
  %v3087 = vsel %vm2485, %v2298, %v3086
  %v3088 = vsel %vm2473, %v2312, %v2305
  %v3089 = vsel %vm2475, %v2319, %v3088
  %v3090 = vsel %vm2477, %v2326, %v3089
  %v3091 = vsel %vm2479, %v2333, %v3090
  %v3092 = vsel %vm2481, %v2340, %v3091
  %v3093 = vsel %vm2483, %v2347, %v3092
  %v3094 = vsel %vm2485, %v2354, %v3093
  %v3095 = vsel %vm2473, %v2368, %v2361
  %3096 = vrot.lane.b32.xlu0 %v3014, 32
  %v3097 = vpop.permute.xlu0 %3096
  %3098 = vrot.lane.b32.xlu0 %v3021, 32
  %v3099 = vpop.permute.xlu0 %3098
  %3100 = vrot.lane.b32.xlu0 %v3028, 32
  %v3101 = vpop.permute.xlu0 %3100
  %3102 = vrot.lane.b32.xlu0 %v3029, 32
  %v3103 = vpop.permute.xlu0 %3102
  %3104 = vrot.lane.b32.xlu0 %v3036, 32
  %v3105 = vpop.permute.xlu0 %3104
  %3106 = vrot.lane.b32.xlu0 %v3043, 32
  %v3107 = vpop.permute.xlu0 %3106
  %3108 = vrot.lane.b32.xlu0 %v3050, 32
  %v3109 = vpop.permute.xlu0 %3108
  %3110 = vrot.lane.b32.xlu0 %v3051, 32
  %v3111 = vpop.permute.xlu0 %3110
  %3112 = vrot.lane.b32.xlu0 %v3058, 32
  %v3113 = vpop.permute.xlu0 %3112
  %3114 = vrot.lane.b32.xlu0 %v3065, 32
  %v3115 = vpop.permute.xlu0 %3114
  %3116 = vrot.lane.b32.xlu0 %v3072, 32
  %v3117 = vpop.permute.xlu0 %3116
  %3118 = vrot.lane.b32.xlu0 %v3073, 32
  %v3119 = vpop.permute.xlu0 %3118
  %3120 = vrot.lane.b32.xlu0 %v3080, 32
  %v3121 = vpop.permute.xlu0 %3120
  %3122 = vrot.lane.b32.xlu0 %v3087, 32
  %v3123 = vpop.permute.xlu0 %3122
  %3124 = vrot.lane.b32.xlu0 %v3094, 32
  %v3125 = vpop.permute.xlu0 %3124
  %3126 = vrot.lane.b32.xlu0 %v3095, 32
  %v3127 = vpop.permute.xlu0 %3126
  %vm3144 = vcmask 64512
  %v3145 = vsel %vm3144, %v2486, %v2677
  %v3146 = vsel %vm3144, %v2493, %v2679
  %v3147 = vsel %vm3144, %v2500, %v2681
  %v3148 = vsel %vm3144, %v2501, %v2683
  %v3149 = vsel %vm3144, %v2508, %v2685
  %v3150 = vsel %vm3144, %v2515, %v2687
  %v3151 = vsel %vm3144, %v2522, %v2689
  %v3152 = vsel %vm3144, %v2523, %v2691
  %v3153 = vsel %vm3144, %v2530, %v2693
  %v3154 = vsel %vm3144, %v2537, %v2695
  %v3155 = vsel %vm3144, %v2544, %v2697
  %v3156 = vsel %vm3144, %v2545, %v2699
  %v3157 = vsel %vm3144, %v2552, %v2701
  %v3158 = vsel %vm3144, %v2559, %v2703
  %v3159 = vsel %vm3144, %v2566, %v2705
  %v3160 = vsel %vm3144, %v2567, %v2707
  %vm3161 = vcmask 130048
  %v3162 = vsel %vm3161, %v3145, %v2817
  %v3163 = vsel %vm3161, %v3146, %v2819
  %v3164 = vsel %vm3161, %v3147, %v2821
  %v3165 = vsel %vm3161, %v3148, %v2823
  %v3166 = vsel %vm3161, %v3149, %v2825
  %v3167 = vsel %vm3161, %v3150, %v2827
  %v3168 = vsel %vm3161, %v3151, %v2829
  %v3169 = vsel %vm3161, %v3152, %v2831
  %v3170 = vsel %vm3161, %v3153, %v2833
  %v3171 = vsel %vm3161, %v3154, %v2835
  %v3172 = vsel %vm3161, %v3155, %v2837
  %v3173 = vsel %vm3161, %v3156, %v2839
  %v3174 = vsel %vm3161, %v3157, %v2841
  %v3175 = vsel %vm3161, %v3158, %v2843
  %v3176 = vsel %vm3161, %v3159, %v2845
  %v3177 = vsel %vm3161, %v3160, %v2847
  %vm3178 = vcmask 195584
  %v3179 = vsel %vm3178, %v3162, %v2957
  %v3180 = vsel %vm3178, %v3163, %v2959
  %v3181 = vsel %vm3178, %v3164, %v2961
  %v3182 = vsel %vm3178, %v3165, %v2963
  %v3183 = vsel %vm3178, %v3166, %v2965
  %v3184 = vsel %vm3178, %v3167, %v2967
  %v3185 = vsel %vm3178, %v3168, %v2969
  %v3186 = vsel %vm3178, %v3169, %v2971
  %v3187 = vsel %vm3178, %v3170, %v2973
  %v3188 = vsel %vm3178, %v3171, %v2975
  %v3189 = vsel %vm3178, %v3172, %v2977
  %v3190 = vsel %vm3178, %v3173, %v2979
  %v3191 = vsel %vm3178, %v3174, %v2981
  %v3192 = vsel %vm3178, %v3175, %v2983
  %v3193 = vsel %vm3178, %v3176, %v2985
  %v3194 = vsel %vm3178, %v3177, %v2987
  %vm3195 = vcmask 261120
  %v3196 = vsel %vm3195, %v3179, %v3097
  %v3197 = vsel %vm3195, %v3180, %v3099
  %v3198 = vsel %vm3195, %v3181, %v3101
  %v3199 = vsel %vm3195, %v3182, %v3103
  %v3200 = vsel %vm3195, %v3183, %v3105
  %v3201 = vsel %vm3195, %v3184, %v3107
  %v3202 = vsel %vm3195, %v3185, %v3109
  %v3203 = vsel %vm3195, %v3186, %v3111
  %v3204 = vsel %vm3195, %v3187, %v3113
  %v3205 = vsel %vm3195, %v3188, %v3115
  %v3206 = vsel %vm3195, %v3189, %v3117
  %v3207 = vsel %vm3195, %v3190, %v3119
  %v3208 = vsel %vm3195, %v3191, %v3121
  %v3209 = vsel %vm3195, %v3192, %v3123
  %v3210 = vsel %vm3195, %v3193, %v3125
  %v3211 = vsel %vm3195, %v3194, %v3127
  %v3228 = vrot.slane %v3196, 2
  %v3229 = vrot.slane %v3196, 4
  %v3230 = vrot.slane %v3196, 6
  %v3231 = vrot.slane %v3197, 2
  %v3232 = vrot.slane %v3197, 4
  %v3233 = vrot.slane %v3197, 6
  %v3234 = vrot.slane %v3198, 2
  %v3235 = vrot.slane %v3198, 4
  %v3236 = vrot.slane %v3198, 6
  %v3237 = vrot.slane %v3200, 2
  %v3238 = vrot.slane %v3200, 4
  %v3239 = vrot.slane %v3200, 6
  %v3240 = vrot.slane %v3201, 2
  %v3241 = vrot.slane %v3201, 4
  %v3242 = vrot.slane %v3201, 6
  %v3243 = vrot.slane %v3202, 2
  %v3244 = vrot.slane %v3202, 4
  %v3245 = vrot.slane %v3202, 6
  %v3246 = vrot.slane %v3204, 2
  %v3247 = vrot.slane %v3204, 4
  %v3248 = vrot.slane %v3204, 6
  %v3249 = vrot.slane %v3205, 2
  %v3250 = vrot.slane %v3205, 4
  %v3251 = vrot.slane %v3205, 6
  %v3252 = vrot.slane %v3206, 2
  %v3253 = vrot.slane %v3206, 4
  %v3254 = vrot.slane %v3206, 6
  %v3255 = vrot.slane %v3208, 2
  %v3256 = vrot.slane %v3208, 4
  %v3257 = vrot.slane %v3208, 6
  %v3258 = vrot.slane %v3209, 2
  %v3259 = vrot.slane %v3209, 4
  %v3260 = vrot.slane %v3209, 6
  %v3261 = vrot.slane %v3210, 2
  %v3262 = vrot.slane %v3210, 4
  %v3263 = vrot.slane %v3210, 6
  %v3264 = vld [vmem:[%s5] sm:$0xff]
  %v3265 = vld [vmem:[%s5 + $0x8] sm:$0xff]
  %v3266 = vld [vmem:[%s5 + $0x10] sm:$0xff]
  %v3267 = vld [vmem:[%s5 + $0x18] sm:$0xff]
  %v3268 = vld [vmem:[%s5 + $0x20] sm:$0xff]
  %v3269 = vld [vmem:[%s6] sm:$0x1]
  %v3271 = vperm.slane %v3269, 0
  %3273 = vst [vmem:[#allocation1] ss:$4 sm:$0xff] %v3196
  %s3274 = scalar_lea.vmem [#allocation1], 1
  %3275 = vst [vmem:[%s3274] ss:$4 sm:$0xff] %v3228
  %s3276 = scalar_lea.vmem [#allocation1], 2
  %3277 = vst [vmem:[%s3276] ss:$4 sm:$0xff] %v3229
  %s3278 = scalar_lea.vmem [#allocation1], 3
  %3279 = vst [vmem:[%s3278] ss:$4 sm:$0xff] %v3230
  %s3280 = scalar_lea.vmem [#allocation1], 32
  %3281 = vst [vmem:[%s3280] ss:$4 sm:$0xff] %v3197
  %s3282 = scalar_lea.vmem [#allocation1], 33
  %3283 = vst [vmem:[%s3282] ss:$4 sm:$0xff] %v3231
  %s3284 = scalar_lea.vmem [#allocation1], 34
  %3285 = vst [vmem:[%s3284] ss:$4 sm:$0xff] %v3232
  %s3286 = scalar_lea.vmem [#allocation1], 35
  %3287 = vst [vmem:[%s3286] ss:$4 sm:$0xff] %v3233
  %v3288 = vld.sshfl [vmem:[#allocation1] sm:$0xff pattern:$0x73625140]
  %v3289 = vld.sshfl [vmem:[#allocation1 + $0x20] sm:$0xff pattern:$0x73625140]
  %3290 = vst [vmem:[#allocation1] ss:$4 sm:$0xff] %v3198
  %3291 = vst [vmem:[%s3274] ss:$4 sm:$0xff] %v3234
  %3292 = vst [vmem:[%s3276] ss:$4 sm:$0xff] %v3235
  %3293 = vst [vmem:[%s3278] ss:$4 sm:$0xff] %v3236
  %3294 = vst [vmem:[%s3280] ss:$4 sm:$0xff] %v3199
  %3295 = vst [vmem:[%s3282] ss:$4 sm:$0xff] %v3200
  %3296 = vst [vmem:[%s3284] ss:$4 sm:$0xff] %v3237
  %3297 = vst [vmem:[%s3286] ss:$4 sm:$0xff] %v3238
  %v3298 = vld.sshfl [vmem:[#allocation1] sm:$0xff pattern:$0x73625140]
  %v3299 = vld.sshfl [vmem:[#allocation1 + $0x20] sm:$0xff pattern:$0x73625140]
  %3300 = vst [vmem:[#allocation1] ss:$4 sm:$0xff] %v3239
  %3301 = vst [vmem:[%s3274] ss:$4 sm:$0xff] %v3201
  %3302 = vst [vmem:[%s3276] ss:$4 sm:$0xff] %v3240
  %3303 = vst [vmem:[%s3278] ss:$4 sm:$0xff] %v3241
  %3304 = vst [vmem:[%s3280] ss:$4 sm:$0xff] %v3242
  %3305 = vst [vmem:[%s3282] ss:$4 sm:$0xff] %v3202
  %3306 = vst [vmem:[%s3284] ss:$4 sm:$0xff] %v3243
  %3307 = vst [vmem:[%s3286] ss:$4 sm:$0xff] %v3244
  %v3308 = vld.sshfl [vmem:[#allocation1] sm:$0xff pattern:$0x73625140]
  %v3309 = vld.sshfl [vmem:[#allocation1 + $0x20] sm:$0xff pattern:$0x73625140]
  %3310 = vst [vmem:[#allocation1] ss:$4 sm:$0xff] %v3245
  %3311 = vst [vmem:[%s3274] ss:$4 sm:$0xff] %v3203
  %3312 = vst [vmem:[%s3276] ss:$4 sm:$0xff] %v3204
  %3313 = vst [vmem:[%s3278] ss:$4 sm:$0xff] %v3246
  %3314 = vst [vmem:[%s3280] ss:$4 sm:$0xff] %v3247
  %3315 = vst [vmem:[%s3282] ss:$4 sm:$0xff] %v3248
  %3316 = vst [vmem:[%s3284] ss:$4 sm:$0xff] %v3205
  %3317 = vst [vmem:[%s3286] ss:$4 sm:$0xff] %v3249
  %v3318 = vld.sshfl [vmem:[#allocation1] sm:$0xff pattern:$0x73625140]
  %v3319 = vld.sshfl [vmem:[#allocation1 + $0x20] sm:$0xff pattern:$0x73625140]
  %3320 = vst [vmem:[#allocation1] ss:$4 sm:$0xff] %v3250
  %3321 = vst [vmem:[%s3274] ss:$4 sm:$0xff] %v3251
  %3322 = vst [vmem:[%s3276] ss:$4 sm:$0xff] %v3206
  %3323 = vst [vmem:[%s3278] ss:$4 sm:$0xff] %v3252
  %3324 = vst [vmem:[%s3280] ss:$4 sm:$0xff] %v3253
  %3325 = vst [vmem:[%s3282] ss:$4 sm:$0xff] %v3254
  %3326 = vst [vmem:[%s3284] ss:$4 sm:$0xff] %v3207
  %3327 = vst [vmem:[%s3286] ss:$4 sm:$0xff] %v3208
  %v3328 = vld.sshfl [vmem:[#allocation1] sm:$0xff pattern:$0x73625140]
  %v3329 = vld.sshfl [vmem:[#allocation1 + $0x20] sm:$0xff pattern:$0x73625140]
  %3330 = vst [vmem:[#allocation1] ss:$4 sm:$0xff] %v3255
  %3331 = vst [vmem:[%s3274] ss:$4 sm:$0xff] %v3256
  %3332 = vst [vmem:[%s3276] ss:$4 sm:$0xff] %v3257
  %3333 = vst [vmem:[%s3278] ss:$4 sm:$0xff] %v3209
  %3334 = vst [vmem:[%s3280] ss:$4 sm:$0xff] %v3258
  %3335 = vst [vmem:[%s3282] ss:$4 sm:$0xff] %v3259
  %3336 = vst [vmem:[%s3284] ss:$4 sm:$0xff] %v3260
  %3337 = vst [vmem:[%s3286] ss:$4 sm:$0xff] %v3210
  %v3338 = vld.sshfl [vmem:[#allocation1] sm:$0xff pattern:$0x73625140]
  %v3339 = vld.sshfl [vmem:[#allocation1 + $0x20] sm:$0xff pattern:$0x73625140]
  %3340 = vst [vmem:[#allocation1] ss:$4 sm:$0xff] %v3261
  %3341 = vst [vmem:[%s3274] ss:$4 sm:$0xff] %v3262
  %3342 = vst [vmem:[%s3276] ss:$4 sm:$0xff] %v3263
  %3343 = vst [vmem:[%s3278] ss:$4 sm:$0xff] %v3211
  %v3344 = vld.sshfl [vmem:[#allocation1] sm:$0xff pattern:$0x73625140]
  %vm3345 = vcmask 326656
  %v3346 = vsel %vm3345, %v3288, 0
  %v3348 = vsel %vm3345, %v3289, 0
  %v3350 = vsel %vm3345, %v3298, 0
  %v3352 = vsel %vm3345, %v3299, 0
  %v3354 = vsel %vm3345, %v3308, 0
  %v3356 = vsel %vm3345, %v3309, 0
  %v3358 = vsel %vm3345, %v3318, 0
  %v3360 = vsel %vm3345, %v3319, 0
  %v3362 = vsel %vm3345, %v3328, 0
  %v3364 = vsel %vm3345, %v3329, 0
  %v3366 = vsel %vm3345, %v3338, 0
  %v3368 = vsel %vm3345, %v3339, 0
  %v3370 = vsel %vm3345, %v3344, 0
  %3372 = vmatpush.msra.mxu0 0.0
  %3373 = vmatpush.msra.mxu0 0.0
  %3374 = vmatpush.msra.mxu0 0.0
  %3375 = vmatpush.msra.mxu0 0.0
  %3376 = vmatpush.msra.mxu0 0.0
  %3377 = vmatpush.msra.mxu0 0.0
  %3378 = vmatpush.msra.mxu0 0.0
  %3379 = vmatpush.msra.mxu0 0.0
  %3380 = vmatpush.msra.mxu0 0.0
  %3381 = vmatpush.msra.mxu0 0.0
  %3382 = vmatpush.msra.mxu0 0.0
  %3383 = vmatpush.msra.mxu0 %v3268
  %3384 = vmatpush.msra.mxu0 %v3267
  %3385 = vmatpush.msra.mxu0 %v3266
  %3386 = vmatpush.msra.mxu0 %v3265
  %3387 = vmatpush.msra.mxu0 %v3264
  %3388 = vmatmul.f32.gmra.mxu0 %v3346
  %v3389 = vpop.f32.mrf.mxu0
  %v3390 = vadd.f32 %v3271, %v3389
  %3391 = vmatmul.f32.gmra.mxu0 %v3348
  %v3392 = vpop.f32.mrf.mxu0
  %v3393 = vadd.f32 %v3271, %v3392
  %3394 = vmatmul.f32.gmra.mxu0 %v3350
  %v3395 = vpop.f32.mrf.mxu0
  %v3396 = vadd.f32 %v3271, %v3395
  %3397 = vmatmul.f32.gmra.mxu0 %v3352
  %v3398 = vpop.f32.mrf.mxu0
  %v3399 = vadd.f32 %v3271, %v3398
  %3400 = vmatmul.f32.gmra.mxu0 %v3354
  %v3401 = vpop.f32.mrf.mxu0
  %v3402 = vadd.f32 %v3271, %v3401
  %3403 = vmatmul.f32.gmra.mxu0 %v3356
  %v3404 = vpop.f32.mrf.mxu0
  %v3405 = vadd.f32 %v3271, %v3404
  %3406 = vmatmul.f32.gmra.mxu0 %v3358
  %v3407 = vpop.f32.mrf.mxu0
  %v3408 = vadd.f32 %v3271, %v3407
  %3409 = vmatmul.f32.gmra.mxu0 %v3360
  %v3410 = vpop.f32.mrf.mxu0
  %v3411 = vadd.f32 %v3271, %v3410
  %3412 = vmatmul.f32.gmra.mxu0 %v3362
  %v3413 = vpop.f32.mrf.mxu0
  %v3414 = vadd.f32 %v3271, %v3413
  %3415 = vmatmul.f32.gmra.mxu0 %v3364
  %v3416 = vpop.f32.mrf.mxu0
  %v3417 = vadd.f32 %v3271, %v3416
  %3418 = vmatmul.f32.gmra.mxu0 %v3366
  %v3419 = vpop.f32.mrf.mxu0
  %v3420 = vadd.f32 %v3271, %v3419
  %3421 = vmatmul.f32.gmra.mxu0 %v3368
  %v3422 = vpop.f32.mrf.mxu0
  %v3423 = vadd.f32 %v3271, %v3422
  %3424 = vmatmul.f32.gmra.mxu0 %v3370
  %v3425 = vpop.f32.mrf.mxu0
  %v3426 = vadd.f32 %v3271, %v3425
  %3427 = vdwg.mxu0
  %v3428 = vmax.f32 %v3390, 0.0
  %v3429 = vmax.f32 %v3393, 0.0
  %v3430 = vmax.f32 %v3396, 0.0
  %v3431 = vmax.f32 %v3399, 0.0
  %v3432 = vmax.f32 %v3402, 0.0
  %v3433 = vmax.f32 %v3405, 0.0
  %v3434 = vmax.f32 %v3408, 0.0
  %v3435 = vmax.f32 %v3411, 0.0
  %v3436 = vmax.f32 %v3414, 0.0
  %v3437 = vmax.f32 %v3417, 0.0
  %v3438 = vmax.f32 %v3420, 0.0
  %v3439 = vmax.f32 %v3423, 0.0
  %v3440 = vmax.f32 %v3426, 0.0
  %v3454 = vrot.slane %v3428, 2
  %v3455 = vrot.slane %v3428, 4
  %v3456 = vrot.slane %v3428, 6
  %v3457 = vrot.slane %v3429, 2
  %v3458 = vrot.slane %v3429, 4
  %v3459 = vrot.slane %v3429, 6
  %v3460 = vrot.slane %v3430, 2
  %v3461 = vrot.slane %v3430, 4
  %v3462 = vrot.slane %v3430, 6
  %v3463 = vrot.slane %v3431, 2
  %v3464 = vrot.slane %v3431, 4
  %v3465 = vrot.slane %v3431, 6
  %v3466 = vrot.slane %v3432, 2
  %v3467 = vrot.slane %v3432, 4
  %v3468 = vrot.slane %v3432, 6
  %v3469 = vrot.slane %v3433, 2
  %v3470 = vrot.slane %v3433, 4
  %v3471 = vrot.slane %v3433, 6
  %v3472 = vrot.slane %v3434, 2
  %v3473 = vrot.slane %v3434, 4
  %v3474 = vrot.slane %v3434, 6
  %v3475 = vrot.slane %v3435, 2
  %v3476 = vrot.slane %v3435, 4
  %v3477 = vrot.slane %v3435, 6
  %v3478 = vrot.slane %v3436, 2
  %v3479 = vrot.slane %v3436, 4
  %v3480 = vrot.slane %v3436, 6
  %v3481 = vrot.slane %v3437, 2
  %v3482 = vrot.slane %v3437, 4
  %v3483 = vrot.slane %v3437, 6
  %v3484 = vrot.slane %v3438, 2
  %v3485 = vrot.slane %v3438, 4
  %v3486 = vrot.slane %v3438, 6
  %v3487 = vrot.slane %v3439, 2
  %v3488 = vrot.slane %v3439, 4
  %v3489 = vrot.slane %v3439, 6
  %v3490 = vrot.slane %v3440, 2
  %v3491 = vrot.slane %v3440, 4
  %v3492 = vrot.slane %v3440, 6
  %vm3532 = vcmask 123904
  %v3533 = vsel %vm3532, %v3428, -inf
  %v3534 = vrot.slane %v3533, 4
  %v3535 = vmax.f32 %v3533, %v3534
  %v3536 = vrot.slane %v3535, 2
  %v3537 = vmax.f32 %v3535, %v3536
  %v3538 = vrot.slane %v3537, 1
  %v3539 = vmax.f32 %v3537, %v3538
  %v3540 = vsel %vm3532, %v3454, -inf
  %v3541 = vrot.slane %v3540, 4
  %v3542 = vmax.f32 %v3540, %v3541
  %v3543 = vrot.slane %v3542, 2
  %v3544 = vmax.f32 %v3542, %v3543
  %v3545 = vrot.slane %v3544, 1
  %v3546 = vmax.f32 %v3544, %v3545
  %v3547 = vsel %vm3532, %v3455, -inf
  %v3548 = vrot.slane %v3547, 4
  %v3549 = vmax.f32 %v3547, %v3548
  %v3550 = vrot.slane %v3549, 2
  %v3551 = vmax.f32 %v3549, %v3550
  %v3552 = vrot.slane %v3551, 1
  %v3553 = vmax.f32 %v3551, %v3552
  %v3554 = vsel %vm3532, %v3456, -inf
  %v3555 = vrot.slane %v3554, 4
  %v3556 = vmax.f32 %v3554, %v3555
  %v3557 = vrot.slane %v3556, 2
  %v3558 = vmax.f32 %v3556, %v3557
  %v3559 = vrot.slane %v3558, 1
  %v3560 = vmax.f32 %v3558, %v3559
  %v3561 = vsel %vm3532, %v3429, -inf
  %v3562 = vrot.slane %v3561, 4
  %v3563 = vmax.f32 %v3561, %v3562
  %v3564 = vrot.slane %v3563, 2
  %v3565 = vmax.f32 %v3563, %v3564
  %v3566 = vrot.slane %v3565, 1
  %v3567 = vmax.f32 %v3565, %v3566
  %v3568 = vsel %vm3532, %v3457, -inf
  %v3569 = vrot.slane %v3568, 4
  %v3570 = vmax.f32 %v3568, %v3569
  %v3571 = vrot.slane %v3570, 2
  %v3572 = vmax.f32 %v3570, %v3571
  %v3573 = vrot.slane %v3572, 1
  %v3574 = vmax.f32 %v3572, %v3573
  %v3575 = vsel %vm3532, %v3458, -inf
  %v3576 = vrot.slane %v3575, 4
  %v3577 = vmax.f32 %v3575, %v3576
  %v3578 = vrot.slane %v3577, 2
  %v3579 = vmax.f32 %v3577, %v3578
  %v3580 = vrot.slane %v3579, 1
  %v3581 = vmax.f32 %v3579, %v3580
  %v3582 = vsel %vm3532, %v3459, -inf
  %v3583 = vrot.slane %v3582, 4
  %v3584 = vmax.f32 %v3582, %v3583
  %v3585 = vrot.slane %v3584, 2
  %v3586 = vmax.f32 %v3584, %v3585
  %v3587 = vrot.slane %v3586, 1
  %v3588 = vmax.f32 %v3586, %v3587
  %v3589 = vsel %vm3532, %v3430, -inf
  %v3590 = vrot.slane %v3589, 4
  %v3591 = vmax.f32 %v3589, %v3590
  %v3592 = vrot.slane %v3591, 2
  %v3593 = vmax.f32 %v3591, %v3592
  %v3594 = vrot.slane %v3593, 1
  %v3595 = vmax.f32 %v3593, %v3594
  %v3596 = vsel %vm3532, %v3460, -inf
  %v3597 = vrot.slane %v3596, 4
  %v3598 = vmax.f32 %v3596, %v3597
  %v3599 = vrot.slane %v3598, 2
  %v3600 = vmax.f32 %v3598, %v3599
  %v3601 = vrot.slane %v3600, 1
  %v3602 = vmax.f32 %v3600, %v3601
  %v3603 = vsel %vm3532, %v3461, -inf
  %v3604 = vrot.slane %v3603, 4
  %v3605 = vmax.f32 %v3603, %v3604
  %v3606 = vrot.slane %v3605, 2
  %v3607 = vmax.f32 %v3605, %v3606
  %v3608 = vrot.slane %v3607, 1
  %v3609 = vmax.f32 %v3607, %v3608
  %v3610 = vsel %vm3532, %v3462, -inf
  %v3611 = vrot.slane %v3610, 4
  %v3612 = vmax.f32 %v3610, %v3611
  %v3613 = vrot.slane %v3612, 2
  %v3614 = vmax.f32 %v3612, %v3613
  %v3615 = vrot.slane %v3614, 1
  %v3616 = vmax.f32 %v3614, %v3615
  %v3617 = vsel %vm3532, %v3431, -inf
  %v3618 = vrot.slane %v3617, 4
  %v3619 = vmax.f32 %v3617, %v3618
  %v3620 = vrot.slane %v3619, 2
  %v3621 = vmax.f32 %v3619, %v3620
  %v3622 = vrot.slane %v3621, 1
  %v3623 = vmax.f32 %v3621, %v3622
  %v3624 = vsel %vm3532, %v3463, -inf
  %v3625 = vrot.slane %v3624, 4
  %v3626 = vmax.f32 %v3624, %v3625
  %v3627 = vrot.slane %v3626, 2
  %v3628 = vmax.f32 %v3626, %v3627
  %v3629 = vrot.slane %v3628, 1
  %v3630 = vmax.f32 %v3628, %v3629
  %v3631 = vsel %vm3532, %v3464, -inf
  %v3632 = vrot.slane %v3631, 4
  %v3633 = vmax.f32 %v3631, %v3632
  %v3634 = vrot.slane %v3633, 2
  %v3635 = vmax.f32 %v3633, %v3634
  %v3636 = vrot.slane %v3635, 1
  %v3637 = vmax.f32 %v3635, %v3636
  %v3638 = vsel %vm3532, %v3465, -inf
  %v3639 = vrot.slane %v3638, 4
  %v3640 = vmax.f32 %v3638, %v3639
  %v3641 = vrot.slane %v3640, 2
  %v3642 = vmax.f32 %v3640, %v3641
  %v3643 = vrot.slane %v3642, 1
  %v3644 = vmax.f32 %v3642, %v3643
  %v3645 = vsel %vm3532, %v3432, -inf
  %v3646 = vrot.slane %v3645, 4
  %v3647 = vmax.f32 %v3645, %v3646
  %v3648 = vrot.slane %v3647, 2
  %v3649 = vmax.f32 %v3647, %v3648
  %v3650 = vrot.slane %v3649, 1
  %v3651 = vmax.f32 %v3649, %v3650
  %v3652 = vsel %vm3532, %v3466, -inf
  %v3653 = vrot.slane %v3652, 4
  %v3654 = vmax.f32 %v3652, %v3653
  %v3655 = vrot.slane %v3654, 2
  %v3656 = vmax.f32 %v3654, %v3655
  %v3657 = vrot.slane %v3656, 1
  %v3658 = vmax.f32 %v3656, %v3657
  %v3659 = vsel %vm3532, %v3467, -inf
  %v3660 = vrot.slane %v3659, 4
  %v3661 = vmax.f32 %v3659, %v3660
  %v3662 = vrot.slane %v3661, 2
  %v3663 = vmax.f32 %v3661, %v3662
  %v3664 = vrot.slane %v3663, 1
  %v3665 = vmax.f32 %v3663, %v3664
  %v3666 = vsel %vm3532, %v3468, -inf
  %v3667 = vrot.slane %v3666, 4
  %v3668 = vmax.f32 %v3666, %v3667
  %v3669 = vrot.slane %v3668, 2
  %v3670 = vmax.f32 %v3668, %v3669
  %v3671 = vrot.slane %v3670, 1
  %v3672 = vmax.f32 %v3670, %v3671
  %v3673 = vsel %vm3532, %v3433, -inf
  %v3674 = vrot.slane %v3673, 4
  %v3675 = vmax.f32 %v3673, %v3674
  %v3676 = vrot.slane %v3675, 2
  %v3677 = vmax.f32 %v3675, %v3676
  %v3678 = vrot.slane %v3677, 1
  %v3679 = vmax.f32 %v3677, %v3678
  %v3680 = vsel %vm3532, %v3469, -inf
  %v3681 = vrot.slane %v3680, 4
  %v3682 = vmax.f32 %v3680, %v3681
  %v3683 = vrot.slane %v3682, 2
  %v3684 = vmax.f32 %v3682, %v3683
  %v3685 = vrot.slane %v3684, 1
  %v3686 = vmax.f32 %v3684, %v3685
  %v3687 = vsel %vm3532, %v3470, -inf
  %v3688 = vrot.slane %v3687, 4
  %v3689 = vmax.f32 %v3687, %v3688
  %v3690 = vrot.slane %v3689, 2
  %v3691 = vmax.f32 %v3689, %v3690
  %v3692 = vrot.slane %v3691, 1
  %v3693 = vmax.f32 %v3691, %v3692
  %v3694 = vsel %vm3532, %v3471, -inf
  %v3695 = vrot.slane %v3694, 4
  %v3696 = vmax.f32 %v3694, %v3695
  %v3697 = vrot.slane %v3696, 2
  %v3698 = vmax.f32 %v3696, %v3697
  %v3699 = vrot.slane %v3698, 1
  %v3700 = vmax.f32 %v3698, %v3699
  %v3701 = vsel %vm3532, %v3434, -inf
  %v3702 = vrot.slane %v3701, 4
  %v3703 = vmax.f32 %v3701, %v3702
  %v3704 = vrot.slane %v3703, 2
  %v3705 = vmax.f32 %v3703, %v3704
  %v3706 = vrot.slane %v3705, 1
  %v3707 = vmax.f32 %v3705, %v3706
  %v3708 = vsel %vm3532, %v3472, -inf
  %v3709 = vrot.slane %v3708, 4
  %v3710 = vmax.f32 %v3708, %v3709
  %v3711 = vrot.slane %v3710, 2
  %v3712 = vmax.f32 %v3710, %v3711
  %v3713 = vrot.slane %v3712, 1
  %v3714 = vmax.f32 %v3712, %v3713
  %v3715 = vsel %vm3532, %v3473, -inf
  %v3716 = vrot.slane %v3715, 4
  %v3717 = vmax.f32 %v3715, %v3716
  %v3718 = vrot.slane %v3717, 2
  %v3719 = vmax.f32 %v3717, %v3718
  %v3720 = vrot.slane %v3719, 1
  %v3721 = vmax.f32 %v3719, %v3720
  %v3722 = vsel %vm3532, %v3474, -inf
  %v3723 = vrot.slane %v3722, 4
  %v3724 = vmax.f32 %v3722, %v3723
  %v3725 = vrot.slane %v3724, 2
  %v3726 = vmax.f32 %v3724, %v3725
  %v3727 = vrot.slane %v3726, 1
  %v3728 = vmax.f32 %v3726, %v3727
  %v3729 = vsel %vm3532, %v3435, -inf
  %v3730 = vrot.slane %v3729, 4
  %v3731 = vmax.f32 %v3729, %v3730
  %v3732 = vrot.slane %v3731, 2
  %v3733 = vmax.f32 %v3731, %v3732
  %v3734 = vrot.slane %v3733, 1
  %v3735 = vmax.f32 %v3733, %v3734
  %v3736 = vsel %vm3532, %v3475, -inf
  %v3737 = vrot.slane %v3736, 4
  %v3738 = vmax.f32 %v3736, %v3737
  %v3739 = vrot.slane %v3738, 2
  %v3740 = vmax.f32 %v3738, %v3739
  %v3741 = vrot.slane %v3740, 1
  %v3742 = vmax.f32 %v3740, %v3741
  %v3743 = vsel %vm3532, %v3476, -inf
  %v3744 = vrot.slane %v3743, 4
  %v3745 = vmax.f32 %v3743, %v3744
  %v3746 = vrot.slane %v3745, 2
  %v3747 = vmax.f32 %v3745, %v3746
  %v3748 = vrot.slane %v3747, 1
  %v3749 = vmax.f32 %v3747, %v3748
  %v3750 = vsel %vm3532, %v3477, -inf
  %v3751 = vrot.slane %v3750, 4
  %v3752 = vmax.f32 %v3750, %v3751
  %v3753 = vrot.slane %v3752, 2
  %v3754 = vmax.f32 %v3752, %v3753
  %v3755 = vrot.slane %v3754, 1
  %v3756 = vmax.f32 %v3754, %v3755
  %v3757 = vsel %vm3532, %v3436, -inf
  %v3758 = vrot.slane %v3757, 4
  %v3759 = vmax.f32 %v3757, %v3758
  %v3760 = vrot.slane %v3759, 2
  %v3761 = vmax.f32 %v3759, %v3760
  %v3762 = vrot.slane %v3761, 1
  %v3763 = vmax.f32 %v3761, %v3762
  %v3764 = vsel %vm3532, %v3478, -inf
  %v3765 = vrot.slane %v3764, 4
  %v3766 = vmax.f32 %v3764, %v3765
  %v3767 = vrot.slane %v3766, 2
  %v3768 = vmax.f32 %v3766, %v3767
  %v3769 = vrot.slane %v3768, 1
  %v3770 = vmax.f32 %v3768, %v3769
  %v3771 = vsel %vm3532, %v3479, -inf
  %v3772 = vrot.slane %v3771, 4
  %v3773 = vmax.f32 %v3771, %v3772
  %v3774 = vrot.slane %v3773, 2
  %v3775 = vmax.f32 %v3773, %v3774
  %v3776 = vrot.slane %v3775, 1
  %v3777 = vmax.f32 %v3775, %v3776
  %v3778 = vsel %vm3532, %v3480, -inf
  %v3779 = vrot.slane %v3778, 4
  %v3780 = vmax.f32 %v3778, %v3779
  %v3781 = vrot.slane %v3780, 2
  %v3782 = vmax.f32 %v3780, %v3781
  %v3783 = vrot.slane %v3782, 1
  %v3784 = vmax.f32 %v3782, %v3783
  %v3785 = vsel %vm3532, %v3437, -inf
  %v3786 = vrot.slane %v3785, 4
  %v3787 = vmax.f32 %v3785, %v3786
  %v3788 = vrot.slane %v3787, 2
  %v3789 = vmax.f32 %v3787, %v3788
  %v3790 = vrot.slane %v3789, 1
  %v3791 = vmax.f32 %v3789, %v3790
  %v3792 = vsel %vm3532, %v3481, -inf
  %v3793 = vrot.slane %v3792, 4
  %v3794 = vmax.f32 %v3792, %v3793
  %v3795 = vrot.slane %v3794, 2
  %v3796 = vmax.f32 %v3794, %v3795
  %v3797 = vrot.slane %v3796, 1
  %v3798 = vmax.f32 %v3796, %v3797
  %v3799 = vsel %vm3532, %v3482, -inf
  %v3800 = vrot.slane %v3799, 4
  %v3801 = vmax.f32 %v3799, %v3800
  %v3802 = vrot.slane %v3801, 2
  %v3803 = vmax.f32 %v3801, %v3802
  %v3804 = vrot.slane %v3803, 1
  %v3805 = vmax.f32 %v3803, %v3804
  %v3806 = vsel %vm3532, %v3483, -inf
  %v3807 = vrot.slane %v3806, 4
  %v3808 = vmax.f32 %v3806, %v3807
  %v3809 = vrot.slane %v3808, 2
  %v3810 = vmax.f32 %v3808, %v3809
  %v3811 = vrot.slane %v3810, 1
  %v3812 = vmax.f32 %v3810, %v3811
  %v3813 = vsel %vm3532, %v3438, -inf
  %v3814 = vrot.slane %v3813, 4
  %v3815 = vmax.f32 %v3813, %v3814
  %v3816 = vrot.slane %v3815, 2
  %v3817 = vmax.f32 %v3815, %v3816
  %v3818 = vrot.slane %v3817, 1
  %v3819 = vmax.f32 %v3817, %v3818
  %v3820 = vsel %vm3532, %v3484, -inf
  %v3821 = vrot.slane %v3820, 4
  %v3822 = vmax.f32 %v3820, %v3821
  %v3823 = vrot.slane %v3822, 2
  %v3824 = vmax.f32 %v3822, %v3823
  %v3825 = vrot.slane %v3824, 1
  %v3826 = vmax.f32 %v3824, %v3825
  %v3827 = vsel %vm3532, %v3485, -inf
  %v3828 = vrot.slane %v3827, 4
  %v3829 = vmax.f32 %v3827, %v3828
  %v3830 = vrot.slane %v3829, 2
  %v3831 = vmax.f32 %v3829, %v3830
  %v3832 = vrot.slane %v3831, 1
  %v3833 = vmax.f32 %v3831, %v3832
  %v3834 = vsel %vm3532, %v3486, -inf
  %v3835 = vrot.slane %v3834, 4
  %v3836 = vmax.f32 %v3834, %v3835
  %v3837 = vrot.slane %v3836, 2
  %v3838 = vmax.f32 %v3836, %v3837
  %v3839 = vrot.slane %v3838, 1
  %v3840 = vmax.f32 %v3838, %v3839
  %v3841 = vsel %vm3532, %v3439, -inf
  %v3842 = vrot.slane %v3841, 4
  %v3843 = vmax.f32 %v3841, %v3842
  %v3844 = vrot.slane %v3843, 2
  %v3845 = vmax.f32 %v3843, %v3844
  %v3846 = vrot.slane %v3845, 1
  %v3847 = vmax.f32 %v3845, %v3846
  %v3848 = vsel %vm3532, %v3487, -inf
  %v3849 = vrot.slane %v3848, 4
  %v3850 = vmax.f32 %v3848, %v3849
  %v3851 = vrot.slane %v3850, 2
  %v3852 = vmax.f32 %v3850, %v3851
  %v3853 = vrot.slane %v3852, 1
  %v3854 = vmax.f32 %v3852, %v3853
  %v3855 = vsel %vm3532, %v3488, -inf
  %v3856 = vrot.slane %v3855, 4
  %v3857 = vmax.f32 %v3855, %v3856
  %v3858 = vrot.slane %v3857, 2
  %v3859 = vmax.f32 %v3857, %v3858
  %v3860 = vrot.slane %v3859, 1
  %v3861 = vmax.f32 %v3859, %v3860
  %v3862 = vsel %vm3532, %v3489, -inf
  %v3863 = vrot.slane %v3862, 4
  %v3864 = vmax.f32 %v3862, %v3863
  %v3865 = vrot.slane %v3864, 2
  %v3866 = vmax.f32 %v3864, %v3865
  %v3867 = vrot.slane %v3866, 1
  %v3868 = vmax.f32 %v3866, %v3867
  %v3869 = vsel %vm3532, %v3440, -inf
  %v3870 = vrot.slane %v3869, 4
  %v3871 = vmax.f32 %v3869, %v3870
  %v3872 = vrot.slane %v3871, 2
  %v3873 = vmax.f32 %v3871, %v3872
  %v3874 = vrot.slane %v3873, 1
  %v3875 = vmax.f32 %v3873, %v3874
  %v3876 = vsel %vm3532, %v3490, -inf
  %v3877 = vrot.slane %v3876, 4
  %v3878 = vmax.f32 %v3876, %v3877
  %v3879 = vrot.slane %v3878, 2
  %v3880 = vmax.f32 %v3878, %v3879
  %v3881 = vrot.slane %v3880, 1
  %v3882 = vmax.f32 %v3880, %v3881
  %v3883 = vsel %vm3532, %v3491, -inf
  %v3884 = vrot.slane %v3883, 4
  %v3885 = vmax.f32 %v3883, %v3884
  %v3886 = vrot.slane %v3885, 2
  %v3887 = vmax.f32 %v3885, %v3886
  %v3888 = vrot.slane %v3887, 1
  %v3889 = vmax.f32 %v3887, %v3888
  %v3890 = vsel %vm3532, %v3492, -inf
  %v3891 = vrot.slane %v3890, 4
  %v3892 = vmax.f32 %v3890, %v3891
  %v3893 = vrot.slane %v3892, 2
  %v3894 = vmax.f32 %v3892, %v3893
  %v3895 = vrot.slane %v3894, 1
  %v3896 = vmax.f32 %v3894, %v3895
  %v3901 = vsel %vm2473, %v3630, %v3539
  %v3902 = vsel %vm2475, %v3721, %v3901
  %v3903 = vsel %vm2477, %v3812, %v3902
  %v3909 = vsel %vm2473, %v3637, %v3546
  %v3910 = vsel %vm2475, %v3728, %v3909
  %v3911 = vsel %vm2477, %v3819, %v3910
  %3912 = vrot.lane.b32.xlu0 %v3911, 16
  %v3913 = vpop.permute.xlu0 %3912
  %v3919 = vsel %vm2473, %v3644, %v3553
  %v3920 = vsel %vm2475, %v3735, %v3919
  %v3921 = vsel %vm2477, %v3826, %v3920
  %3922 = vrot.lane.b32.xlu0 %v3921, 32
  %v3923 = vpop.permute.xlu0 %3922
  %v3929 = vsel %vm2473, %v3651, %v3560
  %v3930 = vsel %vm2475, %v3742, %v3929
  %v3931 = vsel %vm2477, %v3833, %v3930
  %3932 = vrot.lane.b32.xlu0 %v3931, 48
  %v3933 = vpop.permute.xlu0 %3932
  %v3939 = vsel %vm2473, %v3658, %v3567
  %v3940 = vsel %vm2475, %v3749, %v3939
  %v3941 = vsel %vm2477, %v3840, %v3940
  %3942 = vrot.lane.b32.xlu0 %v3941, 64
  %v3943 = vpop.permute.xlu0 %3942
  %v3949 = vsel %vm2473, %v3665, %v3574
  %v3950 = vsel %vm2475, %v3756, %v3949
  %v3951 = vsel %vm2477, %v3847, %v3950
  %3952 = vrot.lane.b32.xlu0 %v3951, 80
  %v3953 = vpop.permute.xlu0 %3952
  %v3959 = vsel %vm2473, %v3672, %v3581
  %v3960 = vsel %vm2475, %v3763, %v3959
  %v3961 = vsel %vm2477, %v3854, %v3960
  %3962 = vrot.lane.b32.xlu0 %v3961, 96
  %v3963 = vpop.permute.xlu0 %3962
  %v3969 = vsel %vm2473, %v3679, %v3588
  %v3970 = vsel %vm2475, %v3770, %v3969
  %v3971 = vsel %vm2477, %v3861, %v3970
  %3972 = vrot.lane.b32.xlu0 %v3971, 112
  %v3973 = vpop.permute.xlu0 %3972
  %v3979 = vsel %vm2473, %v3686, %v3595
  %v3980 = vsel %vm2475, %v3777, %v3979
  %v3981 = vsel %vm2477, %v3868, %v3980
  %v3987 = vsel %vm2473, %v3693, %v3602
  %v3988 = vsel %vm2475, %v3784, %v3987
  %v3989 = vsel %vm2477, %v3875, %v3988
  %3990 = vrot.lane.b32.xlu0 %v3989, 16
  %v3991 = vpop.permute.xlu0 %3990
  %v3997 = vsel %vm2473, %v3700, %v3609
  %v3998 = vsel %vm2475, %v3791, %v3997
  %v3999 = vsel %vm2477, %v3882, %v3998
  %4000 = vrot.lane.b32.xlu0 %v3999, 32
  %v4001 = vpop.permute.xlu0 %4000
  %v4007 = vsel %vm2473, %v3707, %v3616
  %v4008 = vsel %vm2475, %v3798, %v4007
  %v4009 = vsel %vm2477, %v3889, %v4008
  %4010 = vrot.lane.b32.xlu0 %v4009, 48
  %v4011 = vpop.permute.xlu0 %4010
  %v4017 = vsel %vm2473, %v3714, %v3623
  %v4018 = vsel %vm2475, %v3805, %v4017
  %v4019 = vsel %vm2477, %v3896, %v4018
  %4020 = vrot.lane.b32.xlu0 %v4019, 64
  %v4021 = vpop.permute.xlu0 %4020
  %v4023 = vsel %vm3161, %v3903, %v3913
  %v4024 = vsel %vm3195, %v4023, %v3923
  %vm4025 = vcmask 392192
  %v4026 = vsel %vm4025, %v4024, %v3933
  %vm4027 = vcmask 523264
  %v4028 = vsel %vm4027, %v4026, %v3943
  %vm4029 = vcmask 654336
  %v4030 = vsel %vm4029, %v4028, %v3953
  %vm4031 = vcmask 785408
  %v4032 = vsel %vm4031, %v4030, %v3963
  %vm4033 = vcmask 916480
  %v4034 = vsel %vm4033, %v4032, %v3973
  %v4035 = vsel %vm3161, %v3981, %v3991
  %v4036 = vsel %vm3195, %v4035, %v4001
  %v4037 = vsel %vm4025, %v4036, %v4011
  %v4038 = vsel %vm4027, %v4037, %v4021
  %v4039 = vld [vmem:[%s8] sm:$0xff]
  %v4040 = vld [vmem:[%s8 + $0x8] sm:$0xff]
  %v4041 = vld [vmem:[%s8 + $0x10] sm:$0xff]
  %v4042 = vld [vmem:[%s8 + $0x18] sm:$0xff]
  %v4043 = vld [vmem:[%s8 + $0x20] sm:$0xff]
  %v4044 = vld [vmem:[%s8 + $0x28] sm:$0xff]
  %v4045 = vld [vmem:[%s8 + $0x30] sm:$0xff]
  %v4046 = vld [vmem:[%s8 + $0x38] sm:$0xff]
  %v4047 = vld [vmem:[%s8 + $0x40] sm:$0xff]
  %v4048 = vld [vmem:[%s8 + $0x48] sm:$0xff]
  %v4049 = vld [vmem:[%s8 + $0x50] sm:$0xff]
  %v4050 = vld [vmem:[%s8 + $0x58] sm:$0xff]
  %v4051 = vld [vmem:[%s8 + $0x60] sm:$0xff]
  %v4052 = vld [vmem:[%s8 + $0x68] sm:$0xff]
  %v4053 = vld [vmem:[%s8 + $0x70] sm:$0xff]
  %v4054 = vld [vmem:[%s8 + $0x78] sm:$0xff]
  %v4055 = vld [vmem:[%s8 + $0x80] sm:$0xff]
  %v4056 = vld [vmem:[%s8 + $0x88] sm:$0xff]
  %v4057 = vld [vmem:[%s8 + $0x90] sm:$0xff]
  %v4058 = vld [vmem:[%s8 + $0x98] sm:$0xff]
  %v4059 = vld [vmem:[%s8 + $0xa0] sm:$0xff]
  %v4060 = vld [vmem:[%s8 + $0xa8] sm:$0xff]
  %v4061 = vld [vmem:[%s8 + $0xb0] sm:$0xff]
  %v4062 = vld [vmem:[%s8 + $0xb8] sm:$0xff]
  %v4063 = vld [vmem:[%s8 + $0xc0] sm:$0xff]
  %v4064 = vld [vmem:[%s8 + $0xc8] sm:$0xff]
  %v4065 = vld [vmem:[%s7] sm:$0xf]
  %v4066 = vld [vmem:[%s9] sm:$0xff]
  %v4067 = vld [vmem:[%s9 + $0x8] sm:$0xff]
  %v4068 = vld [vmem:[%s9 + $0x10] sm:$0xff]
  %v4069 = vld [vmem:[%s9 + $0x18] sm:$0xff]
  %v4070 = vld [vmem:[%s9 + $0x20] sm:$0xff]
  %v4071 = vld [vmem:[%s9 + $0x28] sm:$0xff]
  %v4073 = vsel %vm4025, %v4065, 0
  %4075 = vmatpush.msra.mxu0 0.0
  %4076 = vmatpush.msra.mxu0 0.0
  %4077 = vmatpush.msra.mxu0 0.0
  %4078 = vmatpush.msra.mxu0 0.0
  %4079 = vmatpush.msra.mxu0 0.0
  %4080 = vmatpush.msra.mxu0 0.0
  %4081 = vmatpush.msra.mxu0 0.0
  %4082 = vmatpush.msra.mxu0 0.0
  %4083 = vmatpush.msra.mxu0 0.0
  %4084 = vmatpush.msra.mxu0 0.0
  %4085 = vmatpush.msra.mxu0 %v4071
  %4086 = vmatpush.msra.mxu0 %v4070
  %4087 = vmatpush.msra.mxu0 %v4069
  %4088 = vmatpush.msra.mxu0 %v4068
  %4089 = vmatpush.msra.mxu0 %v4067
  %4090 = vmatpush.msra.mxu0 %v4066
  %4091 = vmatmul.f32.gmra.mxu0 %v4073
  %v4092 = vpop.f32.mrf.mxu0
  %v4093 = vadd.f32 0.0, %v4092
  %4094 = vdwg.mxu0
  %v4096 = vsel %vm4029, %v4038, 0
  %4098 = vmatpush.msra.mxu0 %v4054
  %4099 = vmatpush.msra.mxu0 %v4053
  %4100 = vmatpush.msra.mxu0 %v4052
  %4101 = vmatpush.msra.mxu0 %v4051
  %4102 = vmatpush.msra.mxu0 %v4050
  %4103 = vmatpush.msra.mxu0 %v4049
  %4104 = vmatpush.msra.mxu0 %v4048
  %4105 = vmatpush.msra.mxu0 %v4047
  %4106 = vmatpush.msra.mxu0 %v4046
  %4107 = vmatpush.msra.mxu0 %v4045
  %4108 = vmatpush.msra.mxu0 %v4044
  %4109 = vmatpush.msra.mxu0 %v4043
  %4110 = vmatpush.msra.mxu0 %v4042
  %4111 = vmatpush.msra.mxu0 %v4041
  %4112 = vmatpush.msra.mxu0 %v4040
  %4113 = vmatpush.msra.mxu0 %v4039
  %4114 = vmatmul.f32.gmra.mxu0 %v4034
  %v4115 = vpop.f32.mrf.mxu0
  %v4116 = vadd.f32 %v4093, %v4115
  %4117 = vdwg.mxu0
  %4118 = vmatpush.msra.mxu0 0.0
  %4119 = vmatpush.msra.mxu0 0.0
  %4120 = vmatpush.msra.mxu0 0.0
  %4121 = vmatpush.msra.mxu0 0.0
  %4122 = vmatpush.msra.mxu0 0.0
  %4123 = vmatpush.msra.mxu0 0.0
  %4124 = vmatpush.msra.mxu0 %v4064
  %4125 = vmatpush.msra.mxu0 %v4063
  %4126 = vmatpush.msra.mxu0 %v4062
  %4127 = vmatpush.msra.mxu0 %v4061
  %4128 = vmatpush.msra.mxu0 %v4060
  %4129 = vmatpush.msra.mxu0 %v4059
  %4130 = vmatpush.msra.mxu0 %v4058
  %4131 = vmatpush.msra.mxu0 %v4057
  %4132 = vmatpush.msra.mxu0 %v4056
  %4133 = vmatpush.msra.mxu0 %v4055
  %4134 = vmatmul.f32.gmra.mxu0 %v4096
  %v4135 = vpop.f32.mrf.mxu0
  %v4136 = vadd.f32 %v4116, %v4135
  %4137 = vdwg.mxu0
  %v4138 = vld [vmem:[%s10] sm:$0x1]
  %v4140 = vperm.slane %v4138, 0
  %v4142 = vadd.f32 %v4136, %v4140
  %v4143 = vmax.f32 %v4142, 0.0
  %v4144 = vld [vmem:[%s11] sm:$0xff]
  %v4145 = vld [vmem:[%s11 + $0x8] sm:$0xff]
  %v4146 = vld [vmem:[%s11 + $0x10] sm:$0xff]
  %v4147 = vld [vmem:[%s11 + $0x18] sm:$0xff]
  %v4148 = vld [vmem:[%s12] sm:$0x1]
  %v4150 = vperm.slane %v4148, 0
  %v4153 = vsel %vm3195, %v4143, 0
  %4155 = vmatpush.msra.mxu0 0.0
  %4156 = vmatpush.msra.mxu0 0.0
  %4157 = vmatpush.msra.mxu0 0.0
  %4158 = vmatpush.msra.mxu0 0.0
  %4159 = vmatpush.msra.mxu0 0.0
  %4160 = vmatpush.msra.mxu0 0.0
  %4161 = vmatpush.msra.mxu0 0.0
  %4162 = vmatpush.msra.mxu0 0.0
  %4163 = vmatpush.msra.mxu0 0.0
  %4164 = vmatpush.msra.mxu0 0.0
  %4165 = vmatpush.msra.mxu0 0.0
  %4166 = vmatpush.msra.mxu0 0.0
  %4167 = vmatpush.msra.mxu0 %v4147
  %4168 = vmatpush.msra.mxu0 %v4146
  %4169 = vmatpush.msra.mxu0 %v4145
  %4170 = vmatpush.msra.mxu0 %v4144
  %4171 = vmatmul.f32.gmra.mxu0 %v4153
  %v4172 = vpop.f32.mrf.mxu0
  %v4173 = vadd.f32 %v4150, %v4172
  %4174 = vdwg.mxu0
  %v4175 = vmax.f32 %v4173, 0.0
  %v4176 = vld [vmem:[%s13] sm:$0xff]
  %v4177 = vld [vmem:[%s13 + $0x8] sm:$0xff]
  %v4178 = vld [vmem:[%s13 + $0x10] sm:$0xff]
  %v4179 = vld [vmem:[%s13 + $0x18] sm:$0xff]
  %v4180 = vld [vmem:[%s14] sm:$0x1]
  %v4182 = vperm.slane %v4180, 0
  %v4185 = vsel %vm3195, %v4175, 0
  %4187 = vmatpush.msra.mxu0 0.0
  %4188 = vmatpush.msra.mxu0 0.0
  %4189 = vmatpush.msra.mxu0 0.0
  %4190 = vmatpush.msra.mxu0 0.0
  %4191 = vmatpush.msra.mxu0 0.0
  %4192 = vmatpush.msra.mxu0 0.0
  %4193 = vmatpush.msra.mxu0 0.0
  %4194 = vmatpush.msra.mxu0 0.0
  %4195 = vmatpush.msra.mxu0 0.0
  %4196 = vmatpush.msra.mxu0 0.0
  %4197 = vmatpush.msra.mxu0 0.0
  %4198 = vmatpush.msra.mxu0 0.0
  %4199 = vmatpush.msra.mxu0 %v4179
  %4200 = vmatpush.msra.mxu0 %v4178
  %4201 = vmatpush.msra.mxu0 %v4177
  %4202 = vmatpush.msra.mxu0 %v4176
  %4203 = vmatmul.f32.gmra.mxu0 %v4185
  %v4204 = vpop.f32.mrf.mxu0
  %v4205 = vadd.f32 %v4182, %v4204
  %4206 = vdwg.mxu0
  %4207 = vrot.lane.b32.xlu0 %v4143, 3
  %v4208 = vpop.permute.xlu0 %4207
  %v4210 = vsel %vm822, %v4205, %v4208
  %vm4211 = vcmask 285696
  %v4212 = vsel %vm4211, %v4210, 0.0
  %4213 = vst [vmem:[%s15] sm:$0xf] %v4212
  // Predicated region
  $region62: #{parametric_fc_forward.1} parent=0 // pred_check
    _
  $region63: #{parametric_fc_forward.1} parent=0 // pred_check_branch
    %4215 = sbr.rel (0) target = $region65
  $region64: #{parametric_fc_forward.1} parent=0 // pred_region
    _
  $region65: #{parametric_fc_forward.1} parent=0 // pred_fallthru
    _
  // Predicated region
  $region66: #{parametric_fc_forward.1} parent=0 // pred_check
    _
  $region67: #{parametric_fc_forward.1} parent=0 // pred_check_branch
    %4217 = sbr.rel (0) target = $region69
  $region68: #{parametric_fc_forward.1} parent=0 // pred_region
    _
  $region69: #{parametric_fc_forward.1} parent=0 // pred_fallthru
    _

</llo_original>
